<compile_context>
chip_gen: v6e
topology: v6e:2x2x1
jax: 0.10.0
libtpu: 0.0.40
codegen_flags: <defaults>
</compile_context>

<pallas_src>
import functools
import math

import jax
import jax.numpy as jnp
from jax import lax
from jax.experimental import pallas as pl
from jax.experimental.pallas import tpu as pltpu

_EPS = 1e-5


# ----------------------------------------------------------------------------
# Pallas kernels
# ----------------------------------------------------------------------------
def _layernorm(x, g, b, eps):
    mean = jnp.mean(x, axis=-1, keepdims=True)
    var = jnp.mean(jnp.square(x - mean), axis=-1, keepdims=True)
    return (x - mean) * lax.rsqrt(var + eps) * g + b


def _ln_linear_kernel(x_ref, g_ref, b_ref, w_ref, bias_ref, o_ref, *, eps):
    xn = _layernorm(x_ref[...], g_ref[...], b_ref[...], eps)
    y = jnp.dot(xn.astype(w_ref.dtype), w_ref[...],
                preferred_element_type=jnp.float32) + bias_ref[...]
    o_ref[...] = y.astype(o_ref.dtype)


def _ln_qkv_kernel(x_ref, g_ref, b_ref, w_ref, bias_ref, q_ref, kv_ref, *, eps, d_model):
    xn = _layernorm(x_ref[...], g_ref[...], b_ref[...], eps)
    y = jnp.dot(xn.astype(w_ref.dtype), w_ref[...],
                preferred_element_type=jnp.float32) + bias_ref[...]
    q_ref[...] = y[:, :d_model].astype(q_ref.dtype)
    kv_ref[...] = y[:, d_model:].astype(kv_ref.dtype)


def _linear_kernel(x_ref, w_ref, bias_ref, o_ref):
    y = jnp.dot(x_ref[...].astype(w_ref.dtype), w_ref[...],
                preferred_element_type=jnp.float32) + bias_ref[...]
    o_ref[...] = y.astype(o_ref.dtype)


def _attn_kernel(lens_ref, q_ref, kv_ref, wo_ref, bo_ref, res_ref, o_ref, *,
                 num_heads, scale, causal):
    # One grid step per batch element: all heads, fused output projection + residual.
    b = pl.program_id(0)
    length = lens_ref[b]

    q = q_ref[0]                           # (Tq, D)  bf16
    kv = kv_ref[0]                         # (Tk, 2D) bf16
    tq, d = q.shape
    tk = kv.shape[0]
    dk = d // num_heads
    k = kv[:, :d]
    v = kv[:, d:]

    col = lax.broadcasted_iota(jnp.int32, (tq, tk), 1)
    valid = col < length
    if causal:
        row = lax.broadcasted_iota(jnp.int32, (tq, tk), 0)
        valid = jnp.logical_and(valid, col <= row)

    ctx_heads = []
    for h in range(num_heads):
        qh = q[:, h * dk:(h + 1) * dk]
        kh = k[:, h * dk:(h + 1) * dk]
        vh = v[:, h * dk:(h + 1) * dk]
        # q @ k^T without an explicit transpose (contract last dims).
        s = lax.dot_general(qh, kh, (((1,), (1,)), ((), ())),
                            preferred_element_type=jnp.float32) * scale
        s = jnp.where(valid, s, -1e30)
        p = jnp.exp(s - jnp.max(s, axis=-1, keepdims=True))
        attn = p * pl.reciprocal(jnp.sum(p, axis=-1, keepdims=True), approx=True)
        attn = jnp.where(valid, attn, 0.0)      # matches torch masked_fill(.., 0.0)
        ctx_heads.append(jnp.dot(attn.astype(vh.dtype), vh,
                                 preferred_element_type=jnp.float32))
    ctx = jnp.concatenate(ctx_heads, axis=-1)   # (Tq, D) f32 — lane-dense

    out = jnp.dot(ctx.astype(wo_ref.dtype), wo_ref[...],
                  preferred_element_type=jnp.float32) + bo_ref[...]
    o_ref[0] = res_ref[0] + out


def _ln_ffn_res_kernel(x_ref, g_ref, b_ref, w1_ref, b1_ref, w2_ref, b2_ref, o_ref, *, eps):
    x = x_ref[...]
    xn = _layernorm(x, g_ref[...], b_ref[...], eps)
    h = jnp.dot(xn.astype(w1_ref.dtype), w1_ref[...],
                preferred_element_type=jnp.float32) + b1_ref[...]
    h = jnp.maximum(h, 0.0)
    y = jnp.dot(h.astype(w2_ref.dtype), w2_ref[...],
                preferred_element_type=jnp.float32) + b2_ref[...]
    o_ref[...] = x + y


# ----------------------------------------------------------------------------
# Pallas wrappers
# ----------------------------------------------------------------------------
def _pick_tile(n, cap, align):
    """Largest tile <= cap that divides n and respects the (8,128) alignment rule."""
    if n <= cap:
        return n
    t = (cap // align) * align
    while t >= align:
        if n % t == 0:
            return t
        t -= align
    return n


def ln_linear(x2d, gamma, beta, w, bias, out_dtype=jnp.float32):
    """out = LayerNorm(x) @ w + bias.   x:(M,D) f32, w:(D,N) bf16 (pre-transposed)."""
    M, D = x2d.shape
    N = w.shape[1]
    tm = _pick_tile(M, 256, 8)
    tn = _pick_tile(N, 512, 128)
    out_bytes = 2 if out_dtype == jnp.bfloat16 else 4
    return pl.pallas_call(
        functools.partial(_ln_linear_kernel, eps=_EPS),
        grid=(M // tm, N // tn),
        out_shape=jax.ShapeDtypeStruct((M, N), out_dtype),
        in_specs=[
            pl.BlockSpec((tm, D), lambda i, j: (i, 0)),
            pl.BlockSpec((1, D), lambda i, j: (0, 0)),
            pl.BlockSpec((1, D), lambda i, j: (0, 0)),
            pl.BlockSpec((D, tn), lambda i, j: (0, j)),
            pl.BlockSpec((1, tn), lambda i, j: (0, j)),
        ],
        out_specs=pl.BlockSpec((tm, tn), lambda i, j: (i, j)),
        compiler_params=pltpu.CompilerParams(
            dimension_semantics=("parallel", "parallel")),
        cost_estimate=pl.CostEstimate(
            flops=2 * M * D * N, transcendentals=0,
            bytes_accessed=4 * M * D + 2 * D * N + out_bytes * M * N),
    )(x2d, gamma, beta, w, bias)


def ln_qkv(x2d, gamma, beta, wqkv, bqkv, d_model):
    """(q, kv) = split(LayerNorm(x) @ wqkv + bqkv), both bf16.  wqkv:(D,3D)."""
    M, D = x2d.shape
    tm = _pick_tile(M, 256, 8)
    return pl.pallas_call(
        functools.partial(_ln_qkv_kernel, eps=_EPS, d_model=d_model),
        grid=(M // tm,),
        out_shape=(jax.ShapeDtypeStruct((M, D), jnp.bfloat16),
                   jax.ShapeDtypeStruct((M, 2 * D), jnp.bfloat16)),
        in_specs=[
            pl.BlockSpec((tm, D), lambda i: (i, 0)),
            pl.BlockSpec((1, D), lambda i: (0, 0)),
            pl.BlockSpec((1, D), lambda i: (0, 0)),
            pl.BlockSpec((D, 3 * D), lambda i: (0, 0)),
            pl.BlockSpec((1, 3 * D), lambda i: (0, 0)),
        ],
        out_specs=(pl.BlockSpec((tm, D), lambda i: (i, 0)),
                   pl.BlockSpec((tm, 2 * D), lambda i: (i, 0))),
        compiler_params=pltpu.CompilerParams(dimension_semantics=("parallel",)),
        cost_estimate=pl.CostEstimate(
            flops=2 * M * D * 3 * D, transcendentals=0,
            bytes_accessed=4 * M * D + 2 * D * 3 * D + 2 * M * 3 * D),
    )(x2d, gamma, beta, wqkv, bqkv)


def linear(x2d, w, bias, out_dtype=jnp.float32):
    """out = x @ w + bias (no LayerNorm)."""
    M, D = x2d.shape
    N = w.shape[1]
    tm = _pick_tile(M, 256, 8)
    tn = _pick_tile(N, 512, 128)
    out_bytes = 2 if out_dtype == jnp.bfloat16 else 4
    return pl.pallas_call(
        _linear_kernel,
        grid=(M // tm, N // tn),
        out_shape=jax.ShapeDtypeStruct((M, N), out_dtype),
        in_specs=[
            pl.BlockSpec((tm, D), lambda i, j: (i, 0)),
            pl.BlockSpec((D, tn), lambda i, j: (0, j)),
            pl.BlockSpec((1, tn), lambda i, j: (0, j)),
        ],
        out_specs=pl.BlockSpec((tm, tn), lambda i, j: (i, j)),
        compiler_params=pltpu.CompilerParams(
            dimension_semantics=("parallel", "parallel")),
        cost_estimate=pl.CostEstimate(
            flops=2 * M * D * N, transcendentals=0,
            bytes_accessed=4 * M * D + 2 * D * N + out_bytes * M * N),
    )(x2d, w, bias)


def attention(q, kv, wo, bo, residual, lens, num_heads, causal):
    """All-heads attention + output projection + residual add.

    q:(B,Tq,D) bf16, kv:(B,Tk,2D) bf16, wo:(D,D) bf16, bo:(1,D) f32,
    residual:(B,Tq,D) f32, lens:(B,) int32 (scalar prefetch) -> (B,Tq,D) f32.
    """
    B, Tq, D = q.shape
    Tk = kv.shape[1]
    dk = D // num_heads
    kern = functools.partial(_attn_kernel, num_heads=num_heads,
                             scale=1.0 / math.sqrt(dk), causal=causal)
    return pl.pallas_call(
        kern,
        grid_spec=pltpu.PrefetchScalarGridSpec(
            num_scalar_prefetch=1,
            grid=(B,),
            in_specs=[
                pl.BlockSpec((1, Tq, D), lambda b, lens: (b, 0, 0)),
                pl.BlockSpec((1, Tk, 2 * D), lambda b, lens: (b, 0, 0)),
                pl.BlockSpec((D, D), lambda b, lens: (0, 0)),
                pl.BlockSpec((1, D), lambda b, lens: (0, 0)),
                pl.BlockSpec((1, Tq, D), lambda b, lens: (b, 0, 0)),
            ],
            out_specs=pl.BlockSpec((1, Tq, D), lambda b, lens: (b, 0, 0)),
        ),
        out_shape=jax.ShapeDtypeStruct((B, Tq, D), jnp.float32),
        compiler_params=pltpu.CompilerParams(dimension_semantics=("parallel",)),
    )(lens, q, kv, wo, bo, residual)


def ln_ffn_residual(x2d, gamma, beta, w1, b1, w2, b2):
    """out = x + relu(LayerNorm(x) @ w1 + b1) @ w2 + b2."""
    M, D = x2d.shape
    U = w1.shape[1]
    tm = _pick_tile(M, 256, 8)
    return pl.pallas_call(
        functools.partial(_ln_ffn_res_kernel, eps=_EPS),
        grid=(M // tm,),
        out_shape=jax.ShapeDtypeStruct((M, D), jnp.float32),
        in_specs=[
            pl.BlockSpec((tm, D), lambda i: (i, 0)),
            pl.BlockSpec((1, D), lambda i: (0, 0)),
            pl.BlockSpec((1, D), lambda i: (0, 0)),
            pl.BlockSpec((D, U), lambda i: (0, 0)),
            pl.BlockSpec((1, U), lambda i: (0, 0)),
            pl.BlockSpec((U, D), lambda i: (0, 0)),
            pl.BlockSpec((1, D), lambda i: (0, 0)),
        ],
        out_specs=pl.BlockSpec((tm, D), lambda i: (i, 0)),
        compiler_params=pltpu.CompilerParams(dimension_semantics=("parallel",)),
        cost_estimate=pl.CostEstimate(
            flops=4 * M * D * U, transcendentals=0,
            bytes_accessed=8 * M * D + 4 * D * U),
    )(x2d, gamma, beta, w1, b1, w2, b2)


# ----------------------------------------------------------------------------
# Transformer decoder built on the fused kernels
# ----------------------------------------------------------------------------
def decoder_layer(x2d, memory2d, B, T, T_in, lp, tgt_lens, mem_lens, num_heads):
    """wenet DecoderLayer (normalize_before=True), operating on a (B*T, D) slab."""
    D = x2d.shape[1]

    # --- self attention: LN -> merged QKV -> attention(+out proj, +residual) ---
    q, kv = ln_qkv(x2d, lp["norm1_g"], lp["norm1_b"], lp["wqkv"], lp["bqkv"], D)
    x2d = attention(q.reshape(B, T, D), kv.reshape(B, T, 2 * D),
                    lp["wo_s"], lp["bo_s"], x2d.reshape(B, T, D),
                    tgt_lens, num_heads, causal=True).reshape(B * T, D)

    # --- cross attention: LN -> Q ; memory -> merged KV ; attention(+out, +residual) ---
    qc = ln_linear(x2d, lp["norm2_g"], lp["norm2_b"], lp["wq_c"], lp["bq_c"],
                   out_dtype=jnp.bfloat16)
    kvc = linear(memory2d, lp["wkv_c"], lp["bkv_c"], out_dtype=jnp.bfloat16)
    x2d = attention(qc.reshape(B, T, D), kvc.reshape(B, T_in, 2 * D),
                    lp["wo_c"], lp["bo_c"], x2d.reshape(B, T, D),
                    mem_lens, num_heads, causal=False).reshape(B * T, D)

    # --- feed forward: LN -> w1 -> relu -> w2 -> +residual (single kernel) ---
    x2d = ln_ffn_residual(x2d, lp["norm3_g"], lp["norm3_b"],
                          lp["ffn_w1"], lp["ffn_b1"], lp["ffn_w2"], lp["ffn_b2"])
    return x2d


def transformer_decoder_forward(params, memory, memory_mask, ys_in_pad, ys_in_lens,
                                num_heads):
    """TransformerDecoder.forward (inference)."""
    B, T = ys_in_pad.shape
    D = params["embed"].shape[1]
    T_in = memory.shape[1]

    # memory_mask is a length-prefix mask (standard wenet ~make_pad_mask); compress to
    # per-batch lengths so the mask is rebuilt in-kernel (no HBM mask traffic).
    mem_lens = jnp.sum(memory_mask[:, 0, :].astype(jnp.int32), axis=-1)
    tgt_lens = ys_in_lens.astype(jnp.int32)

    # embed + scaled positional encoding (dropout = no-op at inference)
    x = params["embed"][ys_in_pad] * math.sqrt(D) + params["pe"][:T][None]
    x2d = x.reshape(B * T, D)
    memory2d = memory.reshape(B * T_in, D)

    for lp in params["layers"]:
        x2d = decoder_layer(x2d, memory2d, B, T, T_in, lp, tgt_lens, mem_lens, num_heads)

    # normalize_before=True -> after_norm, fused with the output layer.
    V = params["out_w"].shape[1]
    logits = ln_linear(x2d, params["after_norm_g"], params["after_norm_b"],
                       params["out_w"], params["out_b"]).reshape(B, T, V)

    # olens = tgt_mask.sum(1) without materialising tgt_mask:
    # tgt_mask[b,i,j] = (j < len_b) & (j <= i)  =>  sum over i = (T - j) * (j < len_b)
    jcol = jnp.arange(T, dtype=jnp.int32)
    olens = (jcol[None, :] < tgt_lens[:, None]).astype(jnp.int32) * (T - jcol)[None, :]
    return logits, jnp.float32(0.0), olens


@functools.partial(jax.jit, static_argnames=("reverse_weight", "num_heads"))
def bi_transformer_decoder_forward(left_params, right_params, memory, memory_mask,
                                   ys_in_pad, ys_in_lens, r_ys_in_pad,
                                   reverse_weight=0.0, num_heads=4):
    l_x, _, olens = transformer_decoder_forward(
        left_params, memory, memory_mask, ys_in_pad, ys_in_lens, num_heads)
    r_x = jnp.float32(0.0)
    if reverse_weight > 0.0:
        r_x, _, olens = transformer_decoder_forward(
            right_params, memory, memory_mask, r_ys_in_pad, ys_in_lens, num_heads)
    return l_x, r_x, olens


# ----------------------------------------------------------------------------
# Deterministic parameter construction (weights pre-transposed (in,out), bf16)
# ----------------------------------------------------------------------------
def _sinusoidal_pe(max_len, d):
    pos = jnp.arange(max_len, dtype=jnp.float32)[:, None]
    div = jnp.exp(jnp.arange(0, d, 2, dtype=jnp.float32) * (-math.log(10000.0) / d))
    pe = jnp.zeros((max_len, d), jnp.float32)
    pe = pe.at[:, 0::2].set(jnp.sin(pos * div))
    pe = pe.at[:, 1::2].set(jnp.cos(pos * div))
    return pe


def init_decoder_params(key, vocab, d, linear_units, num_blocks, max_len=128):
    ks = iter(jax.random.split(key, 2 + 8 * max(num_blocks, 1)))
    nrm = lambda shape: 0.02 * jax.random.normal(next(ks), shape, jnp.float32)
    wbf = lambda shape: nrm(shape).astype(jnp.bfloat16)
    ones = lambda n: jnp.ones((1, n), jnp.float32)
    zeros = lambda n: jnp.zeros((1, n), jnp.float32)

    layers = []
    for _ in range(num_blocks):
        layers.append(dict(
            norm1_g=ones(d), norm1_b=zeros(d),
            norm2_g=ones(d), norm2_b=zeros(d),
            norm3_g=ones(d), norm3_b=zeros(d),
            wqkv=wbf((d, 3 * d)), bqkv=zeros(3 * d),        # merged Q/K/V
            wo_s=wbf((d, d)), bo_s=zeros(d),
            wq_c=wbf((d, d)), bq_c=zeros(d),
            wkv_c=wbf((d, 2 * d)), bkv_c=zeros(2 * d),      # merged cross K/V
            wo_c=wbf((d, d)), bo_c=zeros(d),
            ffn_w1=wbf((d, linear_units)), ffn_b1=zeros(linear_units),
            ffn_w2=wbf((linear_units, d)), ffn_b2=zeros(d),
        ))

    return dict(
        embed=nrm((vocab, d)),
        pe=_sinusoidal_pe(max_len, d),
        layers=layers,
        after_norm_g=ones(d),
        after_norm_b=zeros(d),
        out_w=wbf((d, vocab)),
        out_b=zeros(vocab),
    )


# ----------------------------------------------------------------------------
if __name__ == "__main__":
    # Small config: vocab=16, D=32, heads=4, ffn=64, 2 L->R blocks, 1 R->L block.
    VOCAB, D, HEADS, UNITS = 16, 32, 4, 64
    NUM_BLOCKS, R_NUM_BLOCKS = 2, 1
    B, T_IN, T_OUT = 2, 10, 8

    key = jax.random.PRNGKey(0)
    k_left, k_right, k_mem, k_tok = jax.random.split(key, 4)

    left_params = init_decoder_params(k_left, VOCAB, D, UNITS, NUM_BLOCKS)
    right_params = init_decoder_params(k_right, VOCAB, D, UNITS, R_NUM_BLOCKS)

    memory = jax.random.normal(k_mem, (B, T_IN, D), jnp.float32)
    mem_lens = jnp.array([10, 7], jnp.int32)
    memory_mask = (jnp.arange(T_IN)[None, :] < mem_lens[:, None])[:, None, :]  # (B,1,T_in)

    ys_in_pad = jax.random.randint(k_tok, (B, T_OUT), 0, VOCAB, jnp.int32)
    ys_in_lens = jnp.array([8, 5], jnp.int32)
    r_ys_in_pad = ys_in_pad[:, ::-1]
    reverse_weight = 0.3

    l_x, r_x, olens = bi_transformer_decoder_forward(
        left_params, right_params, memory, memory_mask,
        ys_in_pad, ys_in_lens, r_ys_in_pad,
        reverse_weight=reverse_weight, num_heads=HEADS)

    jax.block_until_ready((l_x, r_x, olens))
    assert l_x.shape == (B, T_OUT, VOCAB)
    assert r_x.shape == (B, T_OUT, VOCAB)
    assert olens.shape == (B, T_OUT)
    assert bool(jnp.all(jnp.isfinite(l_x))) and bool(jnp.all(jnp.isfinite(r_x)))
    print("KERNEL_OK")
</pallas_src>

<mosaic_0001>
module attributes {stable_mosaic.version = 11 : i64} {
  func.func @_ln_linear_kernel(%arg0: i32, %arg1: i32, %arg2: memref<16x32xf32, #tpu.memory_space<vmem>>, %arg3: memref<1x32xf32, #tpu.memory_space<vmem>>, %arg4: memref<1x32xf32, #tpu.memory_space<vmem>>, %arg5: memref<32x32xbf16, #tpu.memory_space<vmem>>, %arg6: memref<1x32xf32, #tpu.memory_space<vmem>>, %arg7: memref<16x32xbf16, #tpu.memory_space<vmem>>) attributes {dimension_semantics = [#tpu.dimension_semantics<parallel>, #tpu.dimension_semantics<parallel>], iteration_bounds = array<i64: 1, 1>, scalar_prefetch = 0 : i64, scratch_operands = 0 : i64, tpu.core_type = #tpu.core_type<tc>, window_params = [{transform_indices = @transform_0, window_bounds = array<i64: 16, 32>}, {pipeline_mode = #tpu.pipeline_mode<synchronous>, transform_indices = @transform_1, window_bounds = array<i64: 1, 32>}, {pipeline_mode = #tpu.pipeline_mode<synchronous>, transform_indices = @transform_2, window_bounds = array<i64: 1, 32>}, {transform_indices = @transform_3, window_bounds = array<i64: 32, 32>}, {transform_indices = @transform_4, window_bounds = array<i64: 1, 32>}, {transform_indices = @transform_5, window_bounds = array<i64: 16, 32>}]} {
    %c0 = arith.constant 0 : index
    %c0_0 = arith.constant 0 : index
    %0 = vector.load %arg2[%c0, %c0_0] : memref<16x32xf32, #tpu.memory_space<vmem>>, vector<16x32xf32>
    %c0_1 = arith.constant 0 : index
    %c0_2 = arith.constant 0 : index
    %1 = vector.load %arg3[%c0_1, %c0_2] : memref<1x32xf32, #tpu.memory_space<vmem>>, vector<1x32xf32>
    %c0_3 = arith.constant 0 : index
    %c0_4 = arith.constant 0 : index
    %2 = vector.load %arg4[%c0_3, %c0_4] : memref<1x32xf32, #tpu.memory_space<vmem>>, vector<1x32xf32>
    %cst = arith.constant dense<0.000000e+00> : vector<16xf32>
    %3 = vector.multi_reduction <add>, %0, %cst [1] : vector<16x32xf32> to vector<16xf32>
    %4 = vector.shape_cast %3 : vector<16xf32> to vector<16x1xf32>
    %cst_5 = arith.constant 3.200000e+01 : f32
    %5 = vector.broadcast %cst_5 : f32 to vector<16x1xf32>
    %6 = arith.divf %4, %5 : vector<16x1xf32>
    %7 = vector.broadcast %6 : vector<16x1xf32> to vector<16x32xf32>
    %8 = arith.subf %0, %7 : vector<16x32xf32>
    %9 = arith.mulf %8, %8 : vector<16x32xf32>
    %cst_6 = arith.constant dense<0.000000e+00> : vector<16xf32>
    %10 = vector.multi_reduction <add>, %9, %cst_6 [1] : vector<16x32xf32> to vector<16xf32>
    %11 = vector.shape_cast %10 : vector<16xf32> to vector<16x1xf32>
    %cst_7 = arith.constant 3.200000e+01 : f32
    %12 = vector.broadcast %cst_7 : f32 to vector<16x1xf32>
    %13 = arith.divf %11, %12 : vector<16x1xf32>
    %14 = vector.broadcast %6 : vector<16x1xf32> to vector<16x32xf32>
    %15 = arith.subf %0, %14 : vector<16x32xf32>
    %cst_8 = arith.constant 9.99999974E-6 : f32
    %16 = vector.broadcast %cst_8 : f32 to vector<16x1xf32>
    %17 = arith.addf %13, %16 : vector<16x1xf32>
    %18 = math.rsqrt %17 : vector<16x1xf32>
    %19 = vector.broadcast %18 : vector<16x1xf32> to vector<16x32xf32>
    %20 = arith.mulf %15, %19 : vector<16x32xf32>
    %21 = vector.broadcast %1 : vector<1x32xf32> to vector<16x32xf32>
    %22 = arith.mulf %20, %21 : vector<16x32xf32>
    %23 = vector.broadcast %2 : vector<1x32xf32> to vector<16x32xf32>
    %24 = arith.addf %22, %23 : vector<16x32xf32>
    %25 = arith.truncf %24 : vector<16x32xf32> to vector<16x32xbf16>
    %c0_9 = arith.constant 0 : index
    %c0_10 = arith.constant 0 : index
    %26 = vector.load %arg5[%c0_9, %c0_10] : memref<32x32xbf16, #tpu.memory_space<vmem>>, vector<32x32xbf16>
    %cst_11 = arith.constant dense<0.000000e+00> : vector<16x32xf32>
    %27 = tpu.matmul %25, %26, %cst_11 {dimension_numbers = #tpu.dot_dimension_numbers<[1], [0], [0], [1], [0, 0, 1, 1], [], []>} : vector<16x32xbf16>, vector<32x32xbf16>, vector<16x32xf32> -> vector<16x32xf32>
    %c0_12 = arith.constant 0 : index
    %c0_13 = arith.constant 0 : index
    %28 = vector.load %arg6[%c0_12, %c0_13] : memref<1x32xf32, #tpu.memory_space<vmem>>, vector<1x32xf32>
    %29 = vector.broadcast %28 : vector<1x32xf32> to vector<16x32xf32>
    %30 = arith.addf %27, %29 : vector<16x32xf32>
    %31 = arith.truncf %30 : vector<16x32xf32> to vector<16x32xbf16>
    %c0_14 = arith.constant 0 : index
    %c0_15 = arith.constant 0 : index
    %32 = vector.load %arg7[%c0_14, %c0_15] : memref<16x32xbf16, #tpu.memory_space<vmem>>, vector<16x32xbf16>
    tpu.vector_store %arg7[%c0_14, %c0_15], %31 {strides = array<i32>} : memref<16x32xbf16, #tpu.memory_space<vmem>>, vector<16x32xbf16>,
    return
  }
  func.func @transform_0(%arg0: i32, %arg1: i32) -> (i32, i32) {
    %c0_i32 = arith.constant 0 : i32
    %c0_i32_0 = arith.constant 0 : i32
    return %arg0, %c0_i32 : i32, i32
  }
  func.func @transform_1(%arg0: i32, %arg1: i32) -> (i32, i32) {
    %c0_i32 = arith.constant 0 : i32
    %c0_i32_0 = arith.constant 0 : i32
    %c0_i32_1 = arith.constant 0 : i32
    return %c0_i32, %c0_i32_0 : i32, i32
  }
  func.func @transform_2(%arg0: i32, %arg1: i32) -> (i32, i32) {
    %c0_i32 = arith.constant 0 : i32
    %c0_i32_0 = arith.constant 0 : i32
    %c0_i32_1 = arith.constant 0 : i32
    return %c0_i32, %c0_i32_0 : i32, i32
  }
  func.func @transform_3(%arg0: i32, %arg1: i32) -> (i32, i32) {
    %c0_i32 = arith.constant 0 : i32
    %c0_i32_0 = arith.constant 0 : i32
    return %c0_i32, %arg1 : i32, i32
  }
  func.func @transform_4(%arg0: i32, %arg1: i32) -> (i32, i32) {
    %c0_i32 = arith.constant 0 : i32
    %c0_i32_0 = arith.constant 0 : i32
    return %c0_i32, %arg1 : i32, i32
  }
  func.func @transform_5(%arg0: i32, %arg1: i32) -> (i32, i32) {
    %c0_i32 = arith.constant 0 : i32
    return %arg0, %arg1 : i32, i32
  }
}

module attributes {stable_mosaic.version = 11 : i64} {
  func.func @_ln_qkv_kernel(%arg0: i32, %arg1: memref<16x32xf32, #tpu.memory_space<vmem>>, %arg2: memref<1x32xf32, #tpu.memory_space<vmem>>, %arg3: memref<1x32xf32, #tpu.memory_space<vmem>>, %arg4: memref<32x96xbf16, #tpu.memory_space<vmem>>, %arg5: memref<1x96xf32, #tpu.memory_space<vmem>>, %arg6: memref<16x32xbf16, #tpu.memory_space<vmem>>, %arg7: memref<16x64xbf16, #tpu.memory_space<vmem>>) attributes {dimension_semantics = [#tpu.dimension_semantics<parallel>], iteration_bounds = array<i64: 1>, scalar_prefetch = 0 : i64, scratch_operands = 0 : i64, tpu.core_type = #tpu.core_type<tc>, window_params = [{transform_indices = @transform_0, window_bounds = array<i64: 16, 32>}, {pipeline_mode = #tpu.pipeline_mode<synchronous>, transform_indices = @transform_1, window_bounds = array<i64: 1, 32>}, {pipeline_mode = #tpu.pipeline_mode<synchronous>, transform_indices = @transform_2, window_bounds = array<i64: 1, 32>}, {pipeline_mode = #tpu.pipeline_mode<synchronous>, transform_indices = @transform_3, window_bounds = array<i64: 32, 96>}, {pipeline_mode = #tpu.pipeline_mode<synchronous>, transform_indices = @transform_4, window_bounds = array<i64: 1, 96>}, {transform_indices = @transform_5, window_bounds = array<i64: 16, 32>}, {transform_indices = @transform_6, window_bounds = array<i64: 16, 64>}]} {
    %c0 = arith.constant 0 : index
    %c0_0 = arith.constant 0 : index
    %0 = vector.load %arg1[%c0, %c0_0] : memref<16x32xf32, #tpu.memory_space<vmem>>, vector<16x32xf32>
    %c0_1 = arith.constant 0 : index
    %c0_2 = arith.constant 0 : index
    %1 = vector.load %arg2[%c0_1, %c0_2] : memref<1x32xf32, #tpu.memory_space<vmem>>, vector<1x32xf32>
    %c0_3 = arith.constant 0 : index
    %c0_4 = arith.constant 0 : index
    %2 = vector.load %arg3[%c0_3, %c0_4] : memref<1x32xf32, #tpu.memory_space<vmem>>, vector<1x32xf32>
    %cst = arith.constant dense<0.000000e+00> : vector<16xf32>
    %3 = vector.multi_reduction <add>, %0, %cst [1] : vector<16x32xf32> to vector<16xf32>
    %4 = vector.shape_cast %3 : vector<16xf32> to vector<16x1xf32>
    %cst_5 = arith.constant 3.200000e+01 : f32
    %5 = vector.broadcast %cst_5 : f32 to vector<16x1xf32>
    %6 = arith.divf %4, %5 : vector<16x1xf32>
    %7 = vector.broadcast %6 : vector<16x1xf32> to vector<16x32xf32>
    %8 = arith.subf %0, %7 : vector<16x32xf32>
    %9 = arith.mulf %8, %8 : vector<16x32xf32>
    %cst_6 = arith.constant dense<0.000000e+00> : vector<16xf32>
    %10 = vector.multi_reduction <add>, %9, %cst_6 [1] : vector<16x32xf32> to vector<16xf32>
    %11 = vector.shape_cast %10 : vector<16xf32> to vector<16x1xf32>
    %cst_7 = arith.constant 3.200000e+01 : f32
    %12 = vector.broadcast %cst_7 : f32 to vector<16x1xf32>
    %13 = arith.divf %11, %12 : vector<16x1xf32>
    %14 = vector.broadcast %6 : vector<16x1xf32> to vector<16x32xf32>
    %15 = arith.subf %0, %14 : vector<16x32xf32>
    %cst_8 = arith.constant 9.99999974E-6 : f32
    %16 = vector.broadcast %cst_8 : f32 to vector<16x1xf32>
    %17 = arith.addf %13, %16 : vector<16x1xf32>
    %18 = math.rsqrt %17 : vector<16x1xf32>
    %19 = vector.broadcast %18 : vector<16x1xf32> to vector<16x32xf32>
    %20 = arith.mulf %15, %19 : vector<16x32xf32>
    %21 = vector.broadcast %1 : vector<1x32xf32> to vector<16x32xf32>
    %22 = arith.mulf %20, %21 : vector<16x32xf32>
    %23 = vector.broadcast %2 : vector<1x32xf32> to vector<16x32xf32>
    %24 = arith.addf %22, %23 : vector<16x32xf32>
    %25 = arith.truncf %24 : vector<16x32xf32> to vector<16x32xbf16>
    %c0_9 = arith.constant 0 : index
    %c0_10 = arith.constant 0 : index
    %26 = vector.load %arg4[%c0_9, %c0_10] : memref<32x96xbf16, #tpu.memory_space<vmem>>, vector<32x96xbf16>
    %cst_11 = arith.constant dense<0.000000e+00> : vector<16x96xf32>
    %27 = tpu.matmul %25, %26, %cst_11 {dimension_numbers = #tpu.dot_dimension_numbers<[1], [0], [0], [1], [0, 0, 1, 1], [], []>} : vector<16x32xbf16>, vector<32x96xbf16>, vector<16x96xf32> -> vector<16x96xf32>
    %c0_12 = arith.constant 0 : index
    %c0_13 = arith.constant 0 : index
    %28 = vector.load %arg5[%c0_12, %c0_13] : memref<1x96xf32, #tpu.memory_space<vmem>>, vector<1x96xf32>
    %29 = vector.broadcast %28 : vector<1x96xf32> to vector<16x96xf32>
    %30 = arith.addf %27, %29 : vector<16x96xf32>
    %31 = vector.extract_strided_slice %30 {offsets = [0, 0], sizes = [16, 32], strides = [1, 1]} : vector<16x96xf32> to vector<16x32xf32>
    %32 = arith.truncf %31 : vector<16x32xf32> to vector<16x32xbf16>
    %c0_14 = arith.constant 0 : index
    %c0_15 = arith.constant 0 : index
    %33 = vector.load %arg6[%c0_14, %c0_15] : memref<16x32xbf16, #tpu.memory_space<vmem>>, vector<16x32xbf16>
    tpu.vector_store %arg6[%c0_14, %c0_15], %32 {strides = array<i32>} : memref<16x32xbf16, #tpu.memory_space<vmem>>, vector<16x32xbf16>,
    %34 = vector.extract_strided_slice %30 {offsets = [0, 32], sizes = [16, 64], strides = [1, 1]} : vector<16x96xf32> to vector<16x64xf32>
    %35 = arith.truncf %34 : vector<16x64xf32> to vector<16x64xbf16>
    %c0_16 = arith.constant 0 : index
    %c0_17 = arith.constant 0 : index
    %36 = vector.load %arg7[%c0_16, %c0_17] : memref<16x64xbf16, #tpu.memory_space<vmem>>, vector<16x64xbf16>
    tpu.vector_store %arg7[%c0_16, %c0_17], %35 {strides = array<i32>} : memref<16x64xbf16, #tpu.memory_space<vmem>>, vector<16x64xbf16>,
    return
  }
  func.func @transform_0(%arg0: i32) -> (i32, i32) {
    %c0_i32 = arith.constant 0 : i32
    %c0_i32_0 = arith.constant 0 : i32
    return %arg0, %c0_i32 : i32, i32
  }
  func.func @transform_1(%arg0: i32) -> (i32, i32) {
    %c0_i32 = arith.constant 0 : i32
    %c0_i32_0 = arith.constant 0 : i32
    %c0_i32_1 = arith.constant 0 : i32
    return %c0_i32, %c0_i32_0 : i32, i32
  }
  func.func @transform_2(%arg0: i32) -> (i32, i32) {
    %c0_i32 = arith.constant 0 : i32
    %c0_i32_0 = arith.constant 0 : i32
    %c0_i32_1 = arith.constant 0 : i32
    return %c0_i32, %c0_i32_0 : i32, i32
  }
  func.func @transform_3(%arg0: i32) -> (i32, i32) {
    %c0_i32 = arith.constant 0 : i32
    %c0_i32_0 = arith.constant 0 : i32
    %c0_i32_1 = arith.constant 0 : i32
    return %c0_i32, %c0_i32_0 : i32, i32
  }
  func.func @transform_4(%arg0: i32) -> (i32, i32) {
    %c0_i32 = arith.constant 0 : i32
    %c0_i32_0 = arith.constant 0 : i32
    %c0_i32_1 = arith.constant 0 : i32
    return %c0_i32, %c0_i32_0 : i32, i32
  }
  func.func @transform_5(%arg0: i32) -> (i32, i32) {
    %c0_i32 = arith.constant 0 : i32
    %c0_i32_0 = arith.constant 0 : i32
    return %arg0, %c0_i32 : i32, i32
  }
  func.func @transform_6(%arg0: i32) -> (i32, i32) {
    %c0_i32 = arith.constant 0 : i32
    %c0_i32_0 = arith.constant 0 : i32
    return %arg0, %c0_i32 : i32, i32
  }
}

module attributes {stable_mosaic.version = 11 : i64} {
  func.func @_linear_kernel(%arg0: i32, %arg1: i32, %arg2: memref<20x32xf32, #tpu.memory_space<vmem>>, %arg3: memref<32x64xbf16, #tpu.memory_space<vmem>>, %arg4: memref<1x64xf32, #tpu.memory_space<vmem>>, %arg5: memref<20x64xbf16, #tpu.memory_space<vmem>>) attributes {dimension_semantics = [#tpu.dimension_semantics<parallel>, #tpu.dimension_semantics<parallel>], iteration_bounds = array<i64: 1, 1>, scalar_prefetch = 0 : i64, scratch_operands = 0 : i64, tpu.core_type = #tpu.core_type<tc>, window_params = [{transform_indices = @transform_0, window_bounds = array<i64: 20, 32>}, {transform_indices = @transform_1, window_bounds = array<i64: 32, 64>}, {transform_indices = @transform_2, window_bounds = array<i64: 1, 64>}, {transform_indices = @transform_3, window_bounds = array<i64: 20, 64>}]} {
    %c0 = arith.constant 0 : index
    %c0_0 = arith.constant 0 : index
    %0 = vector.load %arg2[%c0, %c0_0] : memref<20x32xf32, #tpu.memory_space<vmem>>, vector<20x32xf32>
    %1 = arith.truncf %0 : vector<20x32xf32> to vector<20x32xbf16>
    %c0_1 = arith.constant 0 : index
    %c0_2 = arith.constant 0 : index
    %2 = vector.load %arg3[%c0_1, %c0_2] : memref<32x64xbf16, #tpu.memory_space<vmem>>, vector<32x64xbf16>
    %cst = arith.constant dense<0.000000e+00> : vector<20x64xf32>
    %3 = tpu.matmul %1, %2, %cst {dimension_numbers = #tpu.dot_dimension_numbers<[1], [0], [0], [1], [0, 0, 1, 1], [], []>} : vector<20x32xbf16>, vector<32x64xbf16>, vector<20x64xf32> -> vector<20x64xf32>
    %c0_3 = arith.constant 0 : index
    %c0_4 = arith.constant 0 : index
    %4 = vector.load %arg4[%c0_3, %c0_4] : memref<1x64xf32, #tpu.memory_space<vmem>>, vector<1x64xf32>
    %5 = vector.broadcast %4 : vector<1x64xf32> to vector<20x64xf32>
    %6 = arith.addf %3, %5 : vector<20x64xf32>
    %7 = arith.truncf %6 : vector<20x64xf32> to vector<20x64xbf16>
    %c0_5 = arith.constant 0 : index
    %c0_6 = arith.constant 0 : index
    %8 = vector.load %arg5[%c0_5, %c0_6] : memref<20x64xbf16, #tpu.memory_space<vmem>>, vector<20x64xbf16>
    tpu.vector_store %arg5[%c0_5, %c0_6], %7 {strides = array<i32>} : memref<20x64xbf16, #tpu.memory_space<vmem>>, vector<20x64xbf16>,
    return
  }
  func.func @transform_0(%arg0: i32, %arg1: i32) -> (i32, i32) {
    %c0_i32 = arith.constant 0 : i32
    %c0_i32_0 = arith.constant 0 : i32
    return %arg0, %c0_i32 : i32, i32
  }
  func.func @transform_1(%arg0: i32, %arg1: i32) -> (i32, i32) {
    %c0_i32 = arith.constant 0 : i32
    %c0_i32_0 = arith.constant 0 : i32
    return %c0_i32, %arg1 : i32, i32
  }
  func.func @transform_2(%arg0: i32, %arg1: i32) -> (i32, i32) {
    %c0_i32 = arith.constant 0 : i32
    %c0_i32_0 = arith.constant 0 : i32
    return %c0_i32, %arg1 : i32, i32
  }
  func.func @transform_3(%arg0: i32, %arg1: i32) -> (i32, i32) {
    %c0_i32 = arith.constant 0 : i32
    return %arg0, %arg1 : i32, i32
  }
}

module attributes {stable_mosaic.version = 11 : i64} {
  func.func @_attn_kernel(%arg0: i32, %arg1: memref<2xi32, #tpu.memory_space<smem>>, %arg2: memref<1x8x32xbf16, #tpu.memory_space<vmem>>, %arg3: memref<1x8x64xbf16, #tpu.memory_space<vmem>>, %arg4: memref<32x32xbf16, #tpu.memory_space<vmem>>, %arg5: memref<1x32xf32, #tpu.memory_space<vmem>>, %arg6: memref<1x8x32xf32, #tpu.memory_space<vmem>>, %arg7: memref<1x8x32xf32, #tpu.memory_space<vmem>>) attributes {dimension_semantics = [#tpu.dimension_semantics<parallel>], iteration_bounds = array<i64: 2>, scalar_prefetch = 1 : i64, scratch_operands = 0 : i64, tpu.core_type = #tpu.core_type<tc>, window_params = [{transform_indices = @transform_0, window_bounds = array<i64: 1, 8, 32>}, {transform_indices = @transform_1, window_bounds = array<i64: 1, 8, 64>}, {pipeline_mode = #tpu.pipeline_mode<synchronous>, transform_indices = @transform_2, window_bounds = array<i64: 32, 32>}, {pipeline_mode = #tpu.pipeline_mode<synchronous>, transform_indices = @transform_3, window_bounds = array<i64: 1, 32>}, {transform_indices = @transform_4, window_bounds = array<i64: 1, 8, 32>}, {transform_indices = @transform_5, window_bounds = array<i64: 1, 8, 32>}]} {
    %0 = arith.index_cast %arg0 : i32 to index
    %1 = memref.load %arg1[%0] : memref<2xi32, #tpu.memory_space<smem>>
    %c0 = arith.constant 0 : index
    %c0_0 = arith.constant 0 : index
    %c0_1 = arith.constant 0 : index
    %2 = vector.load %arg2[%c0, %c0_0, %c0_1] : memref<1x8x32xbf16, #tpu.memory_space<vmem>>, vector<1x8x32xbf16>
    %3 = vector.shape_cast %2 : vector<1x8x32xbf16> to vector<8x32xbf16>
    %c0_2 = arith.constant 0 : index
    %c0_3 = arith.constant 0 : index
    %c0_4 = arith.constant 0 : index
    %4 = vector.load %arg3[%c0_2, %c0_3, %c0_4] : memref<1x8x64xbf16, #tpu.memory_space<vmem>>, vector<1x8x64xbf16>
    %5 = vector.shape_cast %4 : vector<1x8x64xbf16> to vector<8x64xbf16>
    %6 = vector.extract_strided_slice %5 {offsets = [0, 0], sizes = [8, 32], strides = [1, 1]} : vector<8x64xbf16> to vector<8x32xbf16>
    %7 = vector.extract_strided_slice %5 {offsets = [0, 32], sizes = [8, 32], strides = [1, 1]} : vector<8x64xbf16> to vector<8x32xbf16>
    %8 = tpu.iota {dimensions = array<i32: 1>} : vector<8x8xi32>
    %9 = vector.broadcast %1 : i32 to vector<8x8xi32>
    %10 = arith.cmpi slt, %8, %9 : vector<8x8xi32>
    %11 = tpu.iota {dimensions = array<i32: 0>} : vector<8x8xi32>
    %12 = arith.cmpi sle, %8, %11 : vector<8x8xi32>
    %13 = arith.andi %10, %12 : vector<8x8xi1>
    %14 = vector.extract_strided_slice %3 {offsets = [0, 0], sizes = [8, 8], strides = [1, 1]} : vector<8x32xbf16> to vector<8x8xbf16>
    %15 = vector.extract_strided_slice %6 {offsets = [0, 0], sizes = [8, 8], strides = [1, 1]} : vector<8x32xbf16> to vector<8x8xbf16>
    %16 = vector.extract_strided_slice %7 {offsets = [0, 0], sizes = [8, 8], strides = [1, 1]} : vector<8x32xbf16> to vector<8x8xbf16>
    %cst = arith.constant dense<0.000000e+00> : vector<8x8xf32>
    %17 = tpu.matmul %14, %15, %cst {dimension_numbers = #tpu.dot_dimension_numbers<[1], [1], [0], [0], [0, 0, 1, 0], [], []>} : vector<8x8xbf16>, vector<8x8xbf16>, vector<8x8xf32> -> vector<8x8xf32>
    %cst_5 = arith.constant 0.353553385 : f32
    %18 = vector.broadcast %cst_5 : f32 to vector<8x8xf32>
    %19 = arith.mulf %17, %18 : vector<8x8xf32>
    %cst_6 = arith.constant -1.000000e+30 : f32
    %20 = vector.broadcast %cst_6 : f32 to vector<8x8xf32>
    %21 = arith.select %13, %19, %20 : vector<8x8xi1>, vector<8x8xf32>
    %cst_7 = arith.constant dense<0xFF800000> : vector<8xf32>
    %22 = vector.multi_reduction <maximumf>, %21, %cst_7 [1] : vector<8x8xf32> to vector<8xf32>
    %23 = vector.shape_cast %22 : vector<8xf32> to vector<8x1xf32>
    %24 = vector.broadcast %23 : vector<8x1xf32> to vector<8x8xf32>
    %25 = arith.subf %21, %24 : vector<8x8xf32>
    %26 = math.exp %25 : vector<8x8xf32>
    %cst_8 = arith.constant dense<0.000000e+00> : vector<8xf32>
    %27 = vector.multi_reduction <add>, %26, %cst_8 [1] : vector<8x8xf32> to vector<8xf32>
    %28 = vector.shape_cast %27 : vector<8xf32> to vector<8x1xf32>
    %29 = tpu.reciprocal %28 {approx = true} : vector<8x1xf32> -> vector<8x1xf32>
    %30 = vector.broadcast %29 : vector<8x1xf32> to vector<8x8xf32>
    %31 = arith.mulf %26, %30 : vector<8x8xf32>
    %cst_9 = arith.constant 0.000000e+00 : f32
    %32 = vector.broadcast %cst_9 : f32 to vector<8x8xf32>
    %33 = arith.select %13, %31, %32 : vector<8x8xi1>, vector<8x8xf32>
    %34 = arith.truncf %33 : vector<8x8xf32> to vector<8x8xbf16>
    %cst_10 = arith.constant dense<0.000000e+00> : vector<8x8xf32>
    %35 = tpu.matmul %34, %16, %cst_10 {dimension_numbers = #tpu.dot_dimension_numbers<[1], [0], [0], [1], [0, 0, 1, 1], [], []>} : vector<8x8xbf16>, vector<8x8xbf16>, vector<8x8xf32> -> vector<8x8xf32>
    %36 = vector.extract_strided_slice %3 {offsets = [0, 8], sizes = [8, 8], strides = [1, 1]} : vector<8x32xbf16> to vector<8x8xbf16>
    %37 = vector.extract_strided_slice %6 {offsets = [0, 8], sizes = [8, 8], strides = [1, 1]} : vector<8x32xbf16> to vector<8x8xbf16>
    %38 = vector.extract_strided_slice %7 {offsets = [0, 8], sizes = [8, 8], strides = [1, 1]} : vector<8x32xbf16> to vector<8x8xbf16>
    %cst_11 = arith.constant dense<0.000000e+00> : vector<8x8xf32>
    %39 = tpu.matmul %36, %37, %cst_11 {dimension_numbers = #tpu.dot_dimension_numbers<[1], [1], [0], [0], [0, 0, 1, 0], [], []>} : vector<8x8xbf16>, vector<8x8xbf16>, vector<8x8xf32> -> vector<8x8xf32>
    %cst_12 = arith.constant 0.353553385 : f32
    %40 = vector.broadcast %cst_12 : f32 to vector<8x8xf32>
    %41 = arith.mulf %39, %40 : vector<8x8xf32>
    %cst_13 = arith.constant -1.000000e+30 : f32
    %42 = vector.broadcast %cst_13 : f32 to vector<8x8xf32>
    %43 = arith.select %13, %41, %42 : vector<8x8xi1>, vector<8x8xf32>
    %cst_14 = arith.constant dense<0xFF800000> : vector<8xf32>
    %44 = vector.multi_reduction <maximumf>, %43, %cst_14 [1] : vector<8x8xf32> to vector<8xf32>
    %45 = vector.shape_cast %44 : vector<8xf32> to vector<8x1xf32>
    %46 = vector.broadcast %45 : vector<8x1xf32> to vector<8x8xf32>
    %47 = arith.subf %43, %46 : vector<8x8xf32>
    %48 = math.exp %47 : vector<8x8xf32>
    %cst_15 = arith.constant dense<0.000000e+00> : vector<8xf32>
    %49 = vector.multi_reduction <add>, %48, %cst_15 [1] : vector<8x8xf32> to vector<8xf32>
    %50 = vector.shape_cast %49 : vector<8xf32> to vector<8x1xf32>
    %51 = tpu.reciprocal %50 {approx = true} : vector<8x1xf32> -> vector<8x1xf32>
    %52 = vector.broadcast %51 : vector<8x1xf32> to vector<8x8xf32>
    %53 = arith.mulf %48, %52 : vector<8x8xf32>
    %cst_16 = arith.constant 0.000000e+00 : f32
    %54 = vector.broadcast %cst_16 : f32 to vector<8x8xf32>
    %55 = arith.select %13, %53, %54 : vector<8x8xi1>, vector<8x8xf32>
    %56 = arith.truncf %55 : vector<8x8xf32> to vector<8x8xbf16>
    %cst_17 = arith.constant dense<0.000000e+00> : vector<8x8xf32>
    %57 = tpu.matmul %56, %38, %cst_17 {dimension_numbers = #tpu.dot_dimension_numbers<[1], [0], [0], [1], [0, 0, 1, 1], [], []>} : vector<8x8xbf16>, vector<8x8xbf16>, vector<8x8xf32> -> vector<8x8xf32>
    %58 = vector.extract_strided_slice %3 {offsets = [0, 16], sizes = [8, 8], strides = [1, 1]} : vector<8x32xbf16> to vector<8x8xbf16>
    %59 = vector.extract_strided_slice %6 {offsets = [0, 16], sizes = [8, 8], strides = [1, 1]} : vector<8x32xbf16> to vector<8x8xbf16>
    %60 = vector.extract_strided_slice %7 {offsets = [0, 16], sizes = [8, 8], strides = [1, 1]} : vector<8x32xbf16> to vector<8x8xbf16>
    %cst_18 = arith.constant dense<0.000000e+00> : vector<8x8xf32>
    %61 = tpu.matmul %58, %59, %cst_18 {dimension_numbers = #tpu.dot_dimension_numbers<[1], [1], [0], [0], [0, 0, 1, 0], [], []>} : vector<8x8xbf16>, vector<8x8xbf16>, vector<8x8xf32> -> vector<8x8xf32>
    %cst_19 = arith.constant 0.353553385 : f32
    %62 = vector.broadcast %cst_19 : f32 to vector<8x8xf32>
    %63 = arith.mulf %61, %62 : vector<8x8xf32>
    %cst_20 = arith.constant -1.000000e+30 : f32
    %64 = vector.broadcast %cst_20 : f32 to vector<8x8xf32>
    %65 = arith.select %13, %63, %64 : vector<8x8xi1>, vector<8x8xf32>
    %cst_21 = arith.constant dense<0xFF800000> : vector<8xf32>
    %66 = vector.multi_reduction <maximumf>, %65, %cst_21 [1] : vector<8x8xf32> to vector<8xf32>
    %67 = vector.shape_cast %66 : vector<8xf32> to vector<8x1xf32>
    %68 = vector.broadcast %67 : vector<8x1xf32> to vector<8x8xf32>
    %69 = arith.subf %65, %68 : vector<8x8xf32>
    %70 = math.exp %69 : vector<8x8xf32>
    %cst_22 = arith.constant dense<0.000000e+00> : vector<8xf32>
    %71 = vector.multi_reduction <add>, %70, %cst_22 [1] : vector<8x8xf32> to vector<8xf32>
    %72 = vector.shape_cast %71 : vector<8xf32> to vector<8x1xf32>
    %73 = tpu.reciprocal %72 {approx = true} : vector<8x1xf32> -> vector<8x1xf32>
    %74 = vector.broadcast %73 : vector<8x1xf32> to vector<8x8xf32>
    %75 = arith.mulf %70, %74 : vector<8x8xf32>
    %cst_23 = arith.constant 0.000000e+00 : f32
    %76 = vector.broadcast %cst_23 : f32 to vector<8x8xf32>
    %77 = arith.select %13, %75, %76 : vector<8x8xi1>, vector<8x8xf32>
    %78 = arith.truncf %77 : vector<8x8xf32> to vector<8x8xbf16>
    %cst_24 = arith.constant dense<0.000000e+00> : vector<8x8xf32>
    %79 = tpu.matmul %78, %60, %cst_24 {dimension_numbers = #tpu.dot_dimension_numbers<[1], [0], [0], [1], [0, 0, 1, 1], [], []>} : vector<8x8xbf16>, vector<8x8xbf16>, vector<8x8xf32> -> vector<8x8xf32>
    %80 = vector.extract_strided_slice %3 {offsets = [0, 24], sizes = [8, 8], strides = [1, 1]} : vector<8x32xbf16> to vector<8x8xbf16>
    %81 = vector.extract_strided_slice %6 {offsets = [0, 24], sizes = [8, 8], strides = [1, 1]} : vector<8x32xbf16> to vector<8x8xbf16>
    %82 = vector.extract_strided_slice %7 {offsets = [0, 24], sizes = [8, 8], strides = [1, 1]} : vector<8x32xbf16> to vector<8x8xbf16>
    %cst_25 = arith.constant dense<0.000000e+00> : vector<8x8xf32>
    %83 = tpu.matmul %80, %81, %cst_25 {dimension_numbers = #tpu.dot_dimension_numbers<[1], [1], [0], [0], [0, 0, 1, 0], [], []>} : vector<8x8xbf16>, vector<8x8xbf16>, vector<8x8xf32> -> vector<8x8xf32>
    %cst_26 = arith.constant 0.353553385 : f32
    %84 = vector.broadcast %cst_26 : f32 to vector<8x8xf32>
    %85 = arith.mulf %83, %84 : vector<8x8xf32>
    %cst_27 = arith.constant -1.000000e+30 : f32
    %86 = vector.broadcast %cst_27 : f32 to vector<8x8xf32>
    %87 = arith.select %13, %85, %86 : vector<8x8xi1>, vector<8x8xf32>
    %cst_28 = arith.constant dense<0xFF800000> : vector<8xf32>
    %88 = vector.multi_reduction <maximumf>, %87, %cst_28 [1] : vector<8x8xf32> to vector<8xf32>
    %89 = vector.shape_cast %88 : vector<8xf32> to vector<8x1xf32>
    %90 = vector.broadcast %89 : vector<8x1xf32> to vector<8x8xf32>
    %91 = arith.subf %87, %90 : vector<8x8xf32>
    %92 = math.exp %91 : vector<8x8xf32>
    %cst_29 = arith.constant dense<0.000000e+00> : vector<8xf32>
    %93 = vector.multi_reduction <add>, %92, %cst_29 [1] : vector<8x8xf32> to vector<8xf32>
    %94 = vector.shape_cast %93 : vector<8xf32> to vector<8x1xf32>
    %95 = tpu.reciprocal %94 {approx = true} : vector<8x1xf32> -> vector<8x1xf32>
    %96 = vector.broadcast %95 : vector<8x1xf32> to vector<8x8xf32>
    %97 = arith.mulf %92, %96 : vector<8x8xf32>
    %cst_30 = arith.constant 0.000000e+00 : f32
    %98 = vector.broadcast %cst_30 : f32 to vector<8x8xf32>
    %99 = arith.select %13, %97, %98 : vector<8x8xi1>, vector<8x8xf32>
    %100 = arith.truncf %99 : vector<8x8xf32> to vector<8x8xbf16>
    %cst_31 = arith.constant dense<0.000000e+00> : vector<8x8xf32>
    %101 = tpu.matmul %100, %82, %cst_31 {dimension_numbers = #tpu.dot_dimension_numbers<[1], [0], [0], [1], [0, 0, 1, 1], [], []>} : vector<8x8xbf16>, vector<8x8xbf16>, vector<8x8xf32> -> vector<8x8xf32>
    %102 = tpu.concatenate %35, %57, %79, %101 in 1 : vector<8x8xf32>, vector<8x8xf32>, vector<8x8xf32>, vector<8x8xf32> -> vector<8x32xf32>
    %103 = arith.truncf %102 : vector<8x32xf32> to vector<8x32xbf16>
    %c0_32 = arith.constant 0 : index
    %c0_33 = arith.constant 0 : index
    %104 = vector.load %arg4[%c0_32, %c0_33] : memref<32x32xbf16, #tpu.memory_space<vmem>>, vector<32x32xbf16>
    %cst_34 = arith.constant dense<0.000000e+00> : vector<8x32xf32>
    %105 = tpu.matmul %103, %104, %cst_34 {dimension_numbers = #tpu.dot_dimension_numbers<[1], [0], [0], [1], [0, 0, 1, 1], [], []>} : vector<8x32xbf16>, vector<32x32xbf16>, vector<8x32xf32> -> vector<8x32xf32>
    %c0_35 = arith.constant 0 : index
    %c0_36 = arith.constant 0 : index
    %106 = vector.load %arg5[%c0_35, %c0_36] : memref<1x32xf32, #tpu.memory_space<vmem>>, vector<1x32xf32>
    %107 = vector.broadcast %106 : vector<1x32xf32> to vector<8x32xf32>
    %108 = arith.addf %105, %107 : vector<8x32xf32>
    %c0_37 = arith.constant 0 : index
    %c0_38 = arith.constant 0 : index
    %c0_39 = arith.constant 0 : index
    %109 = vector.load %arg6[%c0_37, %c0_38, %c0_39] : memref<1x8x32xf32, #tpu.memory_space<vmem>>, vector<1x8x32xf32>
    %110 = vector.shape_cast %109 : vector<1x8x32xf32> to vector<8x32xf32>
    %111 = arith.addf %110, %108 : vector<8x32xf32>
    %c0_40 = arith.constant 0 : index
    %c0_41 = arith.constant 0 : index
    %c0_42 = arith.constant 0 : index
    %112 = vector.load %arg7[%c0_40, %c0_41, %c0_42] : memref<1x8x32xf32, #tpu.memory_space<vmem>>, vector<1x8x32xf32>
    %113 = vector.shape_cast %112 : vector<1x8x32xf32> to vector<8x32xf32>
    %114 = vector.shape_cast %111 : vector<8x32xf32> to vector<1x8x32xf32>
    tpu.vector_store %arg7[%c0_40, %c0_41, %c0_42], %114 {strides = array<i32>} : memref<1x8x32xf32, #tpu.memory_space<vmem>>, vector<1x8x32xf32>,
    return
  }
  func.func @transform_0(%arg0: i32, %arg1: memref<2xi32, #tpu.memory_space<smem>>) -> (i32, i32, i32) {
    %c0_i32 = arith.constant 0 : i32
    %c0_i32_0 = arith.constant 0 : i32
    %c0_i32_1 = arith.constant 0 : i32
    return %arg0, %c0_i32, %c0_i32_0 : i32, i32, i32
  }
  func.func @transform_1(%arg0: i32, %arg1: memref<2xi32, #tpu.memory_space<smem>>) -> (i32, i32, i32) {
    %c0_i32 = arith.constant 0 : i32
    %c0_i32_0 = arith.constant 0 : i32
    %c0_i32_1 = arith.constant 0 : i32
    return %arg0, %c0_i32, %c0_i32_0 : i32, i32, i32
  }
  func.func @transform_2(%arg0: i32, %arg1: memref<2xi32, #tpu.memory_space<smem>>) -> (i32, i32) {
    %c0_i32 = arith.constant 0 : i32
    %c0_i32_0 = arith.constant 0 : i32
    %c0_i32_1 = arith.constant 0 : i32
    return %c0_i32, %c0_i32_0 : i32, i32
  }
  func.func @transform_3(%arg0: i32, %arg1: memref<2xi32, #tpu.memory_space<smem>>) -> (i32, i32) {
    %c0_i32 = arith.constant 0 : i32
    %c0_i32_0 = arith.constant 0 : i32
    %c0_i32_1 = arith.constant 0 : i32
    return %c0_i32, %c0_i32_0 : i32, i32
  }
  func.func @transform_4(%arg0: i32, %arg1: memref<2xi32, #tpu.memory_space<smem>>) -> (i32, i32, i32) {
    %c0_i32 = arith.constant 0 : i32
    %c0_i32_0 = arith.constant 0 : i32
    %c0_i32_1 = arith.constant 0 : i32
    return %arg0, %c0_i32, %c0_i32_0 : i32, i32, i32
  }
  func.func @transform_5(%arg0: i32, %arg1: memref<2xi32, #tpu.memory_space<smem>>) -> (i32, i32, i32) {
    %c0_i32 = arith.constant 0 : i32
    %c0_i32_0 = arith.constant 0 : i32
    %c0_i32_1 = arith.constant 0 : i32
    return %arg0, %c0_i32, %c0_i32_0 : i32, i32, i32
  }
}

module attributes {stable_mosaic.version = 11 : i64} {
  func.func @_attn_kernel(%arg0: i32, %arg1: memref<2xi32, #tpu.memory_space<smem>>, %arg2: memref<1x8x32xbf16, #tpu.memory_space<vmem>>, %arg3: memref<1x10x64xbf16, #tpu.memory_space<vmem>>, %arg4: memref<32x32xbf16, #tpu.memory_space<vmem>>, %arg5: memref<1x32xf32, #tpu.memory_space<vmem>>, %arg6: memref<1x8x32xf32, #tpu.memory_space<vmem>>, %arg7: memref<1x8x32xf32, #tpu.memory_space<vmem>>) attributes {dimension_semantics = [#tpu.dimension_semantics<parallel>], iteration_bounds = array<i64: 2>, scalar_prefetch = 1 : i64, scratch_operands = 0 : i64, tpu.core_type = #tpu.core_type<tc>, window_params = [{transform_indices = @transform_0, window_bounds = array<i64: 1, 8, 32>}, {transform_indices = @transform_1, window_bounds = array<i64: 1, 10, 64>}, {pipeline_mode = #tpu.pipeline_mode<synchronous>, transform_indices = @transform_2, window_bounds = array<i64: 32, 32>}, {pipeline_mode = #tpu.pipeline_mode<synchronous>, transform_indices = @transform_3, window_bounds = array<i64: 1, 32>}, {transform_indices = @transform_4, window_bounds = array<i64: 1, 8, 32>}, {transform_indices = @transform_5, window_bounds = array<i64: 1, 8, 32>}]} {
    %0 = arith.index_cast %arg0 : i32 to index
    %1 = memref.load %arg1[%0] : memref<2xi32, #tpu.memory_space<smem>>
    %c0 = arith.constant 0 : index
    %c0_0 = arith.constant 0 : index
    %c0_1 = arith.constant 0 : index
    %2 = vector.load %arg2[%c0, %c0_0, %c0_1] : memref<1x8x32xbf16, #tpu.memory_space<vmem>>, vector<1x8x32xbf16>
    %3 = vector.shape_cast %2 : vector<1x8x32xbf16> to vector<8x32xbf16>
    %c0_2 = arith.constant 0 : index
    %c0_3 = arith.constant 0 : index
    %c0_4 = arith.constant 0 : index
    %4 = vector.load %arg3[%c0_2, %c0_3, %c0_4] : memref<1x10x64xbf16, #tpu.memory_space<vmem>>, vector<1x10x64xbf16>
    %5 = vector.shape_cast %4 : vector<1x10x64xbf16> to vector<10x64xbf16>
    %6 = vector.extract_strided_slice %5 {offsets = [0, 0], sizes = [10, 32], strides = [1, 1]} : vector<10x64xbf16> to vector<10x32xbf16>
    %7 = vector.extract_strided_slice %5 {offsets = [0, 32], sizes = [10, 32], strides = [1, 1]} : vector<10x64xbf16> to vector<10x32xbf16>
    %8 = tpu.iota {dimensions = array<i32: 1>} : vector<8x10xi32>
    %9 = vector.broadcast %1 : i32 to vector<8x10xi32>
    %10 = arith.cmpi slt, %8, %9 : vector<8x10xi32>
    %11 = vector.extract_strided_slice %3 {offsets = [0, 0], sizes = [8, 8], strides = [1, 1]} : vector<8x32xbf16> to vector<8x8xbf16>
    %12 = vector.extract_strided_slice %6 {offsets = [0, 0], sizes = [10, 8], strides = [1, 1]} : vector<10x32xbf16> to vector<10x8xbf16>
    %13 = vector.extract_strided_slice %7 {offsets = [0, 0], sizes = [10, 8], strides = [1, 1]} : vector<10x32xbf16> to vector<10x8xbf16>
    %cst = arith.constant dense<0.000000e+00> : vector<8x10xf32>
    %14 = tpu.matmul %11, %12, %cst {dimension_numbers = #tpu.dot_dimension_numbers<[1], [1], [0], [0], [0, 0, 1, 0], [], []>} : vector<8x8xbf16>, vector<10x8xbf16>, vector<8x10xf32> -> vector<8x10xf32>
    %cst_5 = arith.constant 0.353553385 : f32
    %15 = vector.broadcast %cst_5 : f32 to vector<8x10xf32>
    %16 = arith.mulf %14, %15 : vector<8x10xf32>
    %cst_6 = arith.constant -1.000000e+30 : f32
    %17 = vector.broadcast %cst_6 : f32 to vector<8x10xf32>
    %18 = arith.select %10, %16, %17 : vector<8x10xi1>, vector<8x10xf32>
    %cst_7 = arith.constant dense<0xFF800000> : vector<8xf32>
    %19 = vector.multi_reduction <maximumf>, %18, %cst_7 [1] : vector<8x10xf32> to vector<8xf32>
    %20 = vector.shape_cast %19 : vector<8xf32> to vector<8x1xf32>
    %21 = vector.broadcast %20 : vector<8x1xf32> to vector<8x10xf32>
    %22 = arith.subf %18, %21 : vector<8x10xf32>
    %23 = math.exp %22 : vector<8x10xf32>
    %cst_8 = arith.constant dense<0.000000e+00> : vector<8xf32>
    %24 = vector.multi_reduction <add>, %23, %cst_8 [1] : vector<8x10xf32> to vector<8xf32>
    %25 = vector.shape_cast %24 : vector<8xf32> to vector<8x1xf32>
    %26 = tpu.reciprocal %25 {approx = true} : vector<8x1xf32> -> vector<8x1xf32>
    %27 = vector.broadcast %26 : vector<8x1xf32> to vector<8x10xf32>
    %28 = arith.mulf %23, %27 : vector<8x10xf32>
    %cst_9 = arith.constant 0.000000e+00 : f32
    %29 = vector.broadcast %cst_9 : f32 to vector<8x10xf32>
    %30 = arith.select %10, %28, %29 : vector<8x10xi1>, vector<8x10xf32>
    %31 = arith.truncf %30 : vector<8x10xf32> to vector<8x10xbf16>
    %cst_10 = arith.constant dense<0.000000e+00> : vector<8x8xf32>
    %32 = tpu.matmul %31, %13, %cst_10 {dimension_numbers = #tpu.dot_dimension_numbers<[1], [0], [0], [1], [0, 0, 1, 1], [], []>} : vector<8x10xbf16>, vector<10x8xbf16>, vector<8x8xf32> -> vector<8x8xf32>
    %33 = vector.extract_strided_slice %3 {offsets = [0, 8], sizes = [8, 8], strides = [1, 1]} : vector<8x32xbf16> to vector<8x8xbf16>
    %34 = vector.extract_strided_slice %6 {offsets = [0, 8], sizes = [10, 8], strides = [1, 1]} : vector<10x32xbf16> to vector<10x8xbf16>
    %35 = vector.extract_strided_slice %7 {offsets = [0, 8], sizes = [10, 8], strides = [1, 1]} : vector<10x32xbf16> to vector<10x8xbf16>
    %cst_11 = arith.constant dense<0.000000e+00> : vector<8x10xf32>
    %36 = tpu.matmul %33, %34, %cst_11 {dimension_numbers = #tpu.dot_dimension_numbers<[1], [1], [0], [0], [0, 0, 1, 0], [], []>} : vector<8x8xbf16>, vector<10x8xbf16>, vector<8x10xf32> -> vector<8x10xf32>
    %cst_12 = arith.constant 0.353553385 : f32
    %37 = vector.broadcast %cst_12 : f32 to vector<8x10xf32>
    %38 = arith.mulf %36, %37 : vector<8x10xf32>
    %cst_13 = arith.constant -1.000000e+30 : f32
    %39 = vector.broadcast %cst_13 : f32 to vector<8x10xf32>
    %40 = arith.select %10, %38, %39 : vector<8x10xi1>, vector<8x10xf32>
    %cst_14 = arith.constant dense<0xFF800000> : vector<8xf32>
    %41 = vector.multi_reduction <maximumf>, %40, %cst_14 [1] : vector<8x10xf32> to vector<8xf32>
    %42 = vector.shape_cast %41 : vector<8xf32> to vector<8x1xf32>
    %43 = vector.broadcast %42 : vector<8x1xf32> to vector<8x10xf32>
    %44 = arith.subf %40, %43 : vector<8x10xf32>
    %45 = math.exp %44 : vector<8x10xf32>
    %cst_15 = arith.constant dense<0.000000e+00> : vector<8xf32>
    %46 = vector.multi_reduction <add>, %45, %cst_15 [1] : vector<8x10xf32> to vector<8xf32>
    %47 = vector.shape_cast %46 : vector<8xf32> to vector<8x1xf32>
    %48 = tpu.reciprocal %47 {approx = true} : vector<8x1xf32> -> vector<8x1xf32>
    %49 = vector.broadcast %48 : vector<8x1xf32> to vector<8x10xf32>
    %50 = arith.mulf %45, %49 : vector<8x10xf32>
    %cst_16 = arith.constant 0.000000e+00 : f32
    %51 = vector.broadcast %cst_16 : f32 to vector<8x10xf32>
    %52 = arith.select %10, %50, %51 : vector<8x10xi1>, vector<8x10xf32>
    %53 = arith.truncf %52 : vector<8x10xf32> to vector<8x10xbf16>
    %cst_17 = arith.constant dense<0.000000e+00> : vector<8x8xf32>
    %54 = tpu.matmul %53, %35, %cst_17 {dimension_numbers = #tpu.dot_dimension_numbers<[1], [0], [0], [1], [0, 0, 1, 1], [], []>} : vector<8x10xbf16>, vector<10x8xbf16>, vector<8x8xf32> -> vector<8x8xf32>
    %55 = vector.extract_strided_slice %3 {offsets = [0, 16], sizes = [8, 8], strides = [1, 1]} : vector<8x32xbf16> to vector<8x8xbf16>
    %56 = vector.extract_strided_slice %6 {offsets = [0, 16], sizes = [10, 8], strides = [1, 1]} : vector<10x32xbf16> to vector<10x8xbf16>
    %57 = vector.extract_strided_slice %7 {offsets = [0, 16], sizes = [10, 8], strides = [1, 1]} : vector<10x32xbf16> to vector<10x8xbf16>
    %cst_18 = arith.constant dense<0.000000e+00> : vector<8x10xf32>
    %58 = tpu.matmul %55, %56, %cst_18 {dimension_numbers = #tpu.dot_dimension_numbers<[1], [1], [0], [0], [0, 0, 1, 0], [], []>} : vector<8x8xbf16>, vector<10x8xbf16>, vector<8x10xf32> -> vector<8x10xf32>
    %cst_19 = arith.constant 0.353553385 : f32
    %59 = vector.broadcast %cst_19 : f32 to vector<8x10xf32>
    %60 = arith.mulf %58, %59 : vector<8x10xf32>
    %cst_20 = arith.constant -1.000000e+30 : f32
    %61 = vector.broadcast %cst_20 : f32 to vector<8x10xf32>
    %62 = arith.select %10, %60, %61 : vector<8x10xi1>, vector<8x10xf32>
    %cst_21 = arith.constant dense<0xFF800000> : vector<8xf32>
    %63 = vector.multi_reduction <maximumf>, %62, %cst_21 [1] : vector<8x10xf32> to vector<8xf32>
    %64 = vector.shape_cast %63 : vector<8xf32> to vector<8x1xf32>
    %65 = vector.broadcast %64 : vector<8x1xf32> to vector<8x10xf32>
    %66 = arith.subf %62, %65 : vector<8x10xf32>
    %67 = math.exp %66 : vector<8x10xf32>
    %cst_22 = arith.constant dense<0.000000e+00> : vector<8xf32>
    %68 = vector.multi_reduction <add>, %67, %cst_22 [1] : vector<8x10xf32> to vector<8xf32>
    %69 = vector.shape_cast %68 : vector<8xf32> to vector<8x1xf32>
    %70 = tpu.reciprocal %69 {approx = true} : vector<8x1xf32> -> vector<8x1xf32>
    %71 = vector.broadcast %70 : vector<8x1xf32> to vector<8x10xf32>
    %72 = arith.mulf %67, %71 : vector<8x10xf32>
    %cst_23 = arith.constant 0.000000e+00 : f32
    %73 = vector.broadcast %cst_23 : f32 to vector<8x10xf32>
    %74 = arith.select %10, %72, %73 : vector<8x10xi1>, vector<8x10xf32>
    %75 = arith.truncf %74 : vector<8x10xf32> to vector<8x10xbf16>
    %cst_24 = arith.constant dense<0.000000e+00> : vector<8x8xf32>
    %76 = tpu.matmul %75, %57, %cst_24 {dimension_numbers = #tpu.dot_dimension_numbers<[1], [0], [0], [1], [0, 0, 1, 1], [], []>} : vector<8x10xbf16>, vector<10x8xbf16>, vector<8x8xf32> -> vector<8x8xf32>
    %77 = vector.extract_strided_slice %3 {offsets = [0, 24], sizes = [8, 8], strides = [1, 1]} : vector<8x32xbf16> to vector<8x8xbf16>
    %78 = vector.extract_strided_slice %6 {offsets = [0, 24], sizes = [10, 8], strides = [1, 1]} : vector<10x32xbf16> to vector<10x8xbf16>
    %79 = vector.extract_strided_slice %7 {offsets = [0, 24], sizes = [10, 8], strides = [1, 1]} : vector<10x32xbf16> to vector<10x8xbf16>
    %cst_25 = arith.constant dense<0.000000e+00> : vector<8x10xf32>
    %80 = tpu.matmul %77, %78, %cst_25 {dimension_numbers = #tpu.dot_dimension_numbers<[1], [1], [0], [0], [0, 0, 1, 0], [], []>} : vector<8x8xbf16>, vector<10x8xbf16>, vector<8x10xf32> -> vector<8x10xf32>
    %cst_26 = arith.constant 0.353553385 : f32
    %81 = vector.broadcast %cst_26 : f32 to vector<8x10xf32>
    %82 = arith.mulf %80, %81 : vector<8x10xf32>
    %cst_27 = arith.constant -1.000000e+30 : f32
    %83 = vector.broadcast %cst_27 : f32 to vector<8x10xf32>
    %84 = arith.select %10, %82, %83 : vector<8x10xi1>, vector<8x10xf32>
    %cst_28 = arith.constant dense<0xFF800000> : vector<8xf32>
    %85 = vector.multi_reduction <maximumf>, %84, %cst_28 [1] : vector<8x10xf32> to vector<8xf32>
    %86 = vector.shape_cast %85 : vector<8xf32> to vector<8x1xf32>
    %87 = vector.broadcast %86 : vector<8x1xf32> to vector<8x10xf32>
    %88 = arith.subf %84, %87 : vector<8x10xf32>
    %89 = math.exp %88 : vector<8x10xf32>
    %cst_29 = arith.constant dense<0.000000e+00> : vector<8xf32>
    %90 = vector.multi_reduction <add>, %89, %cst_29 [1] : vector<8x10xf32> to vector<8xf32>
    %91 = vector.shape_cast %90 : vector<8xf32> to vector<8x1xf32>
    %92 = tpu.reciprocal %91 {approx = true} : vector<8x1xf32> -> vector<8x1xf32>
    %93 = vector.broadcast %92 : vector<8x1xf32> to vector<8x10xf32>
    %94 = arith.mulf %89, %93 : vector<8x10xf32>
    %cst_30 = arith.constant 0.000000e+00 : f32
    %95 = vector.broadcast %cst_30 : f32 to vector<8x10xf32>
    %96 = arith.select %10, %94, %95 : vector<8x10xi1>, vector<8x10xf32>
    %97 = arith.truncf %96 : vector<8x10xf32> to vector<8x10xbf16>
    %cst_31 = arith.constant dense<0.000000e+00> : vector<8x8xf32>
    %98 = tpu.matmul %97, %79, %cst_31 {dimension_numbers = #tpu.dot_dimension_numbers<[1], [0], [0], [1], [0, 0, 1, 1], [], []>} : vector<8x10xbf16>, vector<10x8xbf16>, vector<8x8xf32> -> vector<8x8xf32>
    %99 = tpu.concatenate %32, %54, %76, %98 in 1 : vector<8x8xf32>, vector<8x8xf32>, vector<8x8xf32>, vector<8x8xf32> -> vector<8x32xf32>
    %100 = arith.truncf %99 : vector<8x32xf32> to vector<8x32xbf16>
    %c0_32 = arith.constant 0 : index
    %c0_33 = arith.constant 0 : index
    %101 = vector.load %arg4[%c0_32, %c0_33] : memref<32x32xbf16, #tpu.memory_space<vmem>>, vector<32x32xbf16>
    %cst_34 = arith.constant dense<0.000000e+00> : vector<8x32xf32>
    %102 = tpu.matmul %100, %101, %cst_34 {dimension_numbers = #tpu.dot_dimension_numbers<[1], [0], [0], [1], [0, 0, 1, 1], [], []>} : vector<8x32xbf16>, vector<32x32xbf16>, vector<8x32xf32> -> vector<8x32xf32>
    %c0_35 = arith.constant 0 : index
    %c0_36 = arith.constant 0 : index
    %103 = vector.load %arg5[%c0_35, %c0_36] : memref<1x32xf32, #tpu.memory_space<vmem>>, vector<1x32xf32>
    %104 = vector.broadcast %103 : vector<1x32xf32> to vector<8x32xf32>
    %105 = arith.addf %102, %104 : vector<8x32xf32>
    %c0_37 = arith.constant 0 : index
    %c0_38 = arith.constant 0 : index
    %c0_39 = arith.constant 0 : index
    %106 = vector.load %arg6[%c0_37, %c0_38, %c0_39] : memref<1x8x32xf32, #tpu.memory_space<vmem>>, vector<1x8x32xf32>
    %107 = vector.shape_cast %106 : vector<1x8x32xf32> to vector<8x32xf32>
    %108 = arith.addf %107, %105 : vector<8x32xf32>
    %c0_40 = arith.constant 0 : index
    %c0_41 = arith.constant 0 : index
    %c0_42 = arith.constant 0 : index
    %109 = vector.load %arg7[%c0_40, %c0_41, %c0_42] : memref<1x8x32xf32, #tpu.memory_space<vmem>>, vector<1x8x32xf32>
    %110 = vector.shape_cast %109 : vector<1x8x32xf32> to vector<8x32xf32>
    %111 = vector.shape_cast %108 : vector<8x32xf32> to vector<1x8x32xf32>
    tpu.vector_store %arg7[%c0_40, %c0_41, %c0_42], %111 {strides = array<i32>} : memref<1x8x32xf32, #tpu.memory_space<vmem>>, vector<1x8x32xf32>,
    return
  }
  func.func @transform_0(%arg0: i32, %arg1: memref<2xi32, #tpu.memory_space<smem>>) -> (i32, i32, i32) {
    %c0_i32 = arith.constant 0 : i32
    %c0_i32_0 = arith.constant 0 : i32
    %c0_i32_1 = arith.constant 0 : i32
    return %arg0, %c0_i32, %c0_i32_0 : i32, i32, i32
  }
  func.func @transform_1(%arg0: i32, %arg1: memref<2xi32, #tpu.memory_space<smem>>) -> (i32, i32, i32) {
    %c0_i32 = arith.constant 0 : i32
    %c0_i32_0 = arith.constant 0 : i32
    %c0_i32_1 = arith.constant 0 : i32
    return %arg0, %c0_i32, %c0_i32_0 : i32, i32, i32
  }
  func.func @transform_2(%arg0: i32, %arg1: memref<2xi32, #tpu.memory_space<smem>>) -> (i32, i32) {
    %c0_i32 = arith.constant 0 : i32
    %c0_i32_0 = arith.constant 0 : i32
    %c0_i32_1 = arith.constant 0 : i32
    return %c0_i32, %c0_i32_0 : i32, i32
  }
  func.func @transform_3(%arg0: i32, %arg1: memref<2xi32, #tpu.memory_space<smem>>) -> (i32, i32) {
    %c0_i32 = arith.constant 0 : i32
    %c0_i32_0 = arith.constant 0 : i32
    %c0_i32_1 = arith.constant 0 : i32
    return %c0_i32, %c0_i32_0 : i32, i32
  }
  func.func @transform_4(%arg0: i32, %arg1: memref<2xi32, #tpu.memory_space<smem>>) -> (i32, i32, i32) {
    %c0_i32 = arith.constant 0 : i32
    %c0_i32_0 = arith.constant 0 : i32
    %c0_i32_1 = arith.constant 0 : i32
    return %arg0, %c0_i32, %c0_i32_0 : i32, i32, i32
  }
  func.func @transform_5(%arg0: i32, %arg1: memref<2xi32, #tpu.memory_space<smem>>) -> (i32, i32, i32) {
    %c0_i32 = arith.constant 0 : i32
    %c0_i32_0 = arith.constant 0 : i32
    %c0_i32_1 = arith.constant 0 : i32
    return %arg0, %c0_i32, %c0_i32_0 : i32, i32, i32
  }
}

module attributes {stable_mosaic.version = 11 : i64} {
  func.func @_ln_ffn_res_kernel(%arg0: i32, %arg1: memref<16x32xf32, #tpu.memory_space<vmem>>, %arg2: memref<1x32xf32, #tpu.memory_space<vmem>>, %arg3: memref<1x32xf32, #tpu.memory_space<vmem>>, %arg4: memref<32x64xbf16, #tpu.memory_space<vmem>>, %arg5: memref<1x64xf32, #tpu.memory_space<vmem>>, %arg6: memref<64x32xbf16, #tpu.memory_space<vmem>>, %arg7: memref<1x32xf32, #tpu.memory_space<vmem>>, %arg8: memref<16x32xf32, #tpu.memory_space<vmem>>) attributes {dimension_semantics = [#tpu.dimension_semantics<parallel>], iteration_bounds = array<i64: 1>, scalar_prefetch = 0 : i64, scratch_operands = 0 : i64, tpu.core_type = #tpu.core_type<tc>, window_params = [{transform_indices = @transform_0, window_bounds = array<i64: 16, 32>}, {pipeline_mode = #tpu.pipeline_mode<synchronous>, transform_indices = @transform_1, window_bounds = array<i64: 1, 32>}, {pipeline_mode = #tpu.pipeline_mode<synchronous>, transform_indices = @transform_2, window_bounds = array<i64: 1, 32>}, {pipeline_mode = #tpu.pipeline_mode<synchronous>, transform_indices = @transform_3, window_bounds = array<i64: 32, 64>}, {pipeline_mode = #tpu.pipeline_mode<synchronous>, transform_indices = @transform_4, window_bounds = array<i64: 1, 64>}, {pipeline_mode = #tpu.pipeline_mode<synchronous>, transform_indices = @transform_5, window_bounds = array<i64: 64, 32>}, {pipeline_mode = #tpu.pipeline_mode<synchronous>, transform_indices = @transform_6, window_bounds = array<i64: 1, 32>}, {transform_indices = @transform_7, window_bounds = array<i64: 16, 32>}]} {
    %c0 = arith.constant 0 : index
    %c0_0 = arith.constant 0 : index
    %0 = vector.load %arg1[%c0, %c0_0] : memref<16x32xf32, #tpu.memory_space<vmem>>, vector<16x32xf32>
    %c0_1 = arith.constant 0 : index
    %c0_2 = arith.constant 0 : index
    %1 = vector.load %arg2[%c0_1, %c0_2] : memref<1x32xf32, #tpu.memory_space<vmem>>, vector<1x32xf32>
    %c0_3 = arith.constant 0 : index
    %c0_4 = arith.constant 0 : index
    %2 = vector.load %arg3[%c0_3, %c0_4] : memref<1x32xf32, #tpu.memory_space<vmem>>, vector<1x32xf32>
    %cst = arith.constant dense<0.000000e+00> : vector<16xf32>
    %3 = vector.multi_reduction <add>, %0, %cst [1] : vector<16x32xf32> to vector<16xf32>
    %4 = vector.shape_cast %3 : vector<16xf32> to vector<16x1xf32>
    %cst_5 = arith.constant 3.200000e+01 : f32
    %5 = vector.broadcast %cst_5 : f32 to vector<16x1xf32>
    %6 = arith.divf %4, %5 : vector<16x1xf32>
    %7 = vector.broadcast %6 : vector<16x1xf32> to vector<16x32xf32>
    %8 = arith.subf %0, %7 : vector<16x32xf32>
    %9 = arith.mulf %8, %8 : vector<16x32xf32>
    %cst_6 = arith.constant dense<0.000000e+00> : vector<16xf32>
    %10 = vector.multi_reduction <add>, %9, %cst_6 [1] : vector<16x32xf32> to vector<16xf32>
    %11 = vector.shape_cast %10 : vector<16xf32> to vector<16x1xf32>
    %cst_7 = arith.constant 3.200000e+01 : f32
    %12 = vector.broadcast %cst_7 : f32 to vector<16x1xf32>
    %13 = arith.divf %11, %12 : vector<16x1xf32>
    %14 = vector.broadcast %6 : vector<16x1xf32> to vector<16x32xf32>
    %15 = arith.subf %0, %14 : vector<16x32xf32>
    %cst_8 = arith.constant 9.99999974E-6 : f32
    %16 = vector.broadcast %cst_8 : f32 to vector<16x1xf32>
    %17 = arith.addf %13, %16 : vector<16x1xf32>
    %18 = math.rsqrt %17 : vector<16x1xf32>
    %19 = vector.broadcast %18 : vector<16x1xf32> to vector<16x32xf32>
    %20 = arith.mulf %15, %19 : vector<16x32xf32>
    %21 = vector.broadcast %1 : vector<1x32xf32> to vector<16x32xf32>
    %22 = arith.mulf %20, %21 : vector<16x32xf32>
    %23 = vector.broadcast %2 : vector<1x32xf32> to vector<16x32xf32>
    %24 = arith.addf %22, %23 : vector<16x32xf32>
    %25 = arith.truncf %24 : vector<16x32xf32> to vector<16x32xbf16>
    %c0_9 = arith.constant 0 : index
    %c0_10 = arith.constant 0 : index
    %26 = vector.load %arg4[%c0_9, %c0_10] : memref<32x64xbf16, #tpu.memory_space<vmem>>, vector<32x64xbf16>
    %cst_11 = arith.constant dense<0.000000e+00> : vector<16x64xf32>
    %27 = tpu.matmul %25, %26, %cst_11 {dimension_numbers = #tpu.dot_dimension_numbers<[1], [0], [0], [1], [0, 0, 1, 1], [], []>} : vector<16x32xbf16>, vector<32x64xbf16>, vector<16x64xf32> -> vector<16x64xf32>
    %c0_12 = arith.constant 0 : index
    %c0_13 = arith.constant 0 : index
    %28 = vector.load %arg5[%c0_12, %c0_13] : memref<1x64xf32, #tpu.memory_space<vmem>>, vector<1x64xf32>
    %29 = vector.broadcast %28 : vector<1x64xf32> to vector<16x64xf32>
    %30 = arith.addf %27, %29 : vector<16x64xf32>
    %cst_14 = arith.constant 0.000000e+00 : f32
    %31 = vector.broadcast %cst_14 : f32 to vector<16x64xf32>
    %32 = arith.maximumf %30, %31 : vector<16x64xf32>
    %33 = arith.truncf %32 : vector<16x64xf32> to vector<16x64xbf16>
    %c0_15 = arith.constant 0 : index
    %c0_16 = arith.constant 0 : index
    %34 = vector.load %arg6[%c0_15, %c0_16] : memref<64x32xbf16, #tpu.memory_space<vmem>>, vector<64x32xbf16>
    %cst_17 = arith.constant dense<0.000000e+00> : vector<16x32xf32>
    %35 = tpu.matmul %33, %34, %cst_17 {dimension_numbers = #tpu.dot_dimension_numbers<[1], [0], [0], [1], [0, 0, 1, 1], [], []>} : vector<16x64xbf16>, vector<64x32xbf16>, vector<16x32xf32> -> vector<16x32xf32>
    %c0_18 = arith.constant 0 : index
    %c0_19 = arith.constant 0 : index
    %36 = vector.load %arg7[%c0_18, %c0_19] : memref<1x32xf32, #tpu.memory_space<vmem>>, vector<1x32xf32>
    %37 = vector.broadcast %36 : vector<1x32xf32> to vector<16x32xf32>
    %38 = arith.addf %35, %37 : vector<16x32xf32>
    %39 = arith.addf %0, %38 : vector<16x32xf32>
    %c0_20 = arith.constant 0 : index
    %c0_21 = arith.constant 0 : index
    %40 = vector.load %arg8[%c0_20, %c0_21] : memref<16x32xf32, #tpu.memory_space<vmem>>, vector<16x32xf32>
    tpu.vector_store %arg8[%c0_20, %c0_21], %39 {strides = array<i32>} : memref<16x32xf32, #tpu.memory_space<vmem>>, vector<16x32xf32>,
    return
  }
  func.func @transform_0(%arg0: i32) -> (i32, i32) {
    %c0_i32 = arith.constant 0 : i32
    %c0_i32_0 = arith.constant 0 : i32
    return %arg0, %c0_i32 : i32, i32
  }
  func.func @transform_1(%arg0: i32) -> (i32, i32) {
    %c0_i32 = arith.constant 0 : i32
    %c0_i32_0 = arith.constant 0 : i32
    %c0_i32_1 = arith.constant 0 : i32
    return %c0_i32, %c0_i32_0 : i32, i32
  }
  func.func @transform_2(%arg0: i32) -> (i32, i32) {
    %c0_i32 = arith.constant 0 : i32
    %c0_i32_0 = arith.constant 0 : i32
    %c0_i32_1 = arith.constant 0 : i32
    return %c0_i32, %c0_i32_0 : i32, i32
  }
  func.func @transform_3(%arg0: i32) -> (i32, i32) {
    %c0_i32 = arith.constant 0 : i32
    %c0_i32_0 = arith.constant 0 : i32
    %c0_i32_1 = arith.constant 0 : i32
    return %c0_i32, %c0_i32_0 : i32, i32
  }
  func.func @transform_4(%arg0: i32) -> (i32, i32) {
    %c0_i32 = arith.constant 0 : i32
    %c0_i32_0 = arith.constant 0 : i32
    %c0_i32_1 = arith.constant 0 : i32
    return %c0_i32, %c0_i32_0 : i32, i32
  }
  func.func @transform_5(%arg0: i32) -> (i32, i32) {
    %c0_i32 = arith.constant 0 : i32
    %c0_i32_0 = arith.constant 0 : i32
    %c0_i32_1 = arith.constant 0 : i32
    return %c0_i32, %c0_i32_0 : i32, i32
  }
  func.func @transform_6(%arg0: i32) -> (i32, i32) {
    %c0_i32 = arith.constant 0 : i32
    %c0_i32_0 = arith.constant 0 : i32
    %c0_i32_1 = arith.constant 0 : i32
    return %c0_i32, %c0_i32_0 : i32, i32
  }
  func.func @transform_7(%arg0: i32) -> (i32, i32) {
    %c0_i32 = arith.constant 0 : i32
    %c0_i32_0 = arith.constant 0 : i32
    return %arg0, %c0_i32 : i32, i32
  }
}

module attributes {stable_mosaic.version = 11 : i64} {
  func.func @_ln_linear_kernel(%arg0: i32, %arg1: i32, %arg2: memref<16x32xf32, #tpu.memory_space<vmem>>, %arg3: memref<1x32xf32, #tpu.memory_space<vmem>>, %arg4: memref<1x32xf32, #tpu.memory_space<vmem>>, %arg5: memref<32x16xbf16, #tpu.memory_space<vmem>>, %arg6: memref<1x16xf32, #tpu.memory_space<vmem>>, %arg7: memref<16x16xf32, #tpu.memory_space<vmem>>) attributes {dimension_semantics = [#tpu.dimension_semantics<parallel>, #tpu.dimension_semantics<parallel>], iteration_bounds = array<i64: 1, 1>, scalar_prefetch = 0 : i64, scratch_operands = 0 : i64, tpu.core_type = #tpu.core_type<tc>, window_params = [{transform_indices = @transform_0, window_bounds = array<i64: 16, 32>}, {pipeline_mode = #tpu.pipeline_mode<synchronous>, transform_indices = @transform_1, window_bounds = array<i64: 1, 32>}, {pipeline_mode = #tpu.pipeline_mode<synchronous>, transform_indices = @transform_2, window_bounds = array<i64: 1, 32>}, {transform_indices = @transform_3, window_bounds = array<i64: 32, 16>}, {transform_indices = @transform_4, window_bounds = array<i64: 1, 16>}, {transform_indices = @transform_5, window_bounds = array<i64: 16, 16>}]} {
    %c0 = arith.constant 0 : index
    %c0_0 = arith.constant 0 : index
    %0 = vector.load %arg2[%c0, %c0_0] : memref<16x32xf32, #tpu.memory_space<vmem>>, vector<16x32xf32>
    %c0_1 = arith.constant 0 : index
    %c0_2 = arith.constant 0 : index
    %1 = vector.load %arg3[%c0_1, %c0_2] : memref<1x32xf32, #tpu.memory_space<vmem>>, vector<1x32xf32>
    %c0_3 = arith.constant 0 : index
    %c0_4 = arith.constant 0 : index
    %2 = vector.load %arg4[%c0_3, %c0_4] : memref<1x32xf32, #tpu.memory_space<vmem>>, vector<1x32xf32>
    %cst = arith.constant dense<0.000000e+00> : vector<16xf32>
    %3 = vector.multi_reduction <add>, %0, %cst [1] : vector<16x32xf32> to vector<16xf32>
    %4 = vector.shape_cast %3 : vector<16xf32> to vector<16x1xf32>
    %cst_5 = arith.constant 3.200000e+01 : f32
    %5 = vector.broadcast %cst_5 : f32 to vector<16x1xf32>
    %6 = arith.divf %4, %5 : vector<16x1xf32>
    %7 = vector.broadcast %6 : vector<16x1xf32> to vector<16x32xf32>
    %8 = arith.subf %0, %7 : vector<16x32xf32>
    %9 = arith.mulf %8, %8 : vector<16x32xf32>
    %cst_6 = arith.constant dense<0.000000e+00> : vector<16xf32>
    %10 = vector.multi_reduction <add>, %9, %cst_6 [1] : vector<16x32xf32> to vector<16xf32>
    %11 = vector.shape_cast %10 : vector<16xf32> to vector<16x1xf32>
    %cst_7 = arith.constant 3.200000e+01 : f32
    %12 = vector.broadcast %cst_7 : f32 to vector<16x1xf32>
    %13 = arith.divf %11, %12 : vector<16x1xf32>
    %14 = vector.broadcast %6 : vector<16x1xf32> to vector<16x32xf32>
    %15 = arith.subf %0, %14 : vector<16x32xf32>
    %cst_8 = arith.constant 9.99999974E-6 : f32
    %16 = vector.broadcast %cst_8 : f32 to vector<16x1xf32>
    %17 = arith.addf %13, %16 : vector<16x1xf32>
    %18 = math.rsqrt %17 : vector<16x1xf32>
    %19 = vector.broadcast %18 : vector<16x1xf32> to vector<16x32xf32>
    %20 = arith.mulf %15, %19 : vector<16x32xf32>
    %21 = vector.broadcast %1 : vector<1x32xf32> to vector<16x32xf32>
    %22 = arith.mulf %20, %21 : vector<16x32xf32>
    %23 = vector.broadcast %2 : vector<1x32xf32> to vector<16x32xf32>
    %24 = arith.addf %22, %23 : vector<16x32xf32>
    %25 = arith.truncf %24 : vector<16x32xf32> to vector<16x32xbf16>
    %c0_9 = arith.constant 0 : index
    %c0_10 = arith.constant 0 : index
    %26 = vector.load %arg5[%c0_9, %c0_10] : memref<32x16xbf16, #tpu.memory_space<vmem>>, vector<32x16xbf16>
    %cst_11 = arith.constant dense<0.000000e+00> : vector<16x16xf32>
    %27 = tpu.matmul %25, %26, %cst_11 {dimension_numbers = #tpu.dot_dimension_numbers<[1], [0], [0], [1], [0, 0, 1, 1], [], []>} : vector<16x32xbf16>, vector<32x16xbf16>, vector<16x16xf32> -> vector<16x16xf32>
    %c0_12 = arith.constant 0 : index
    %c0_13 = arith.constant 0 : index
    %28 = vector.load %arg6[%c0_12, %c0_13] : memref<1x16xf32, #tpu.memory_space<vmem>>, vector<1x16xf32>
    %29 = vector.broadcast %28 : vector<1x16xf32> to vector<16x16xf32>
    %30 = arith.addf %27, %29 : vector<16x16xf32>
    %c0_14 = arith.constant 0 : index
    %c0_15 = arith.constant 0 : index
    %31 = vector.load %arg7[%c0_14, %c0_15] : memref<16x16xf32, #tpu.memory_space<vmem>>, vector<16x16xf32>
    tpu.vector_store %arg7[%c0_14, %c0_15], %30 {strides = array<i32>} : memref<16x16xf32, #tpu.memory_space<vmem>>, vector<16x16xf32>,
    return
  }
  func.func @transform_0(%arg0: i32, %arg1: i32) -> (i32, i32) {
    %c0_i32 = arith.constant 0 : i32
    %c0_i32_0 = arith.constant 0 : i32
    return %arg0, %c0_i32 : i32, i32
  }
  func.func @transform_1(%arg0: i32, %arg1: i32) -> (i32, i32) {
    %c0_i32 = arith.constant 0 : i32
    %c0_i32_0 = arith.constant 0 : i32
    %c0_i32_1 = arith.constant 0 : i32
    return %c0_i32, %c0_i32_0 : i32, i32
  }
  func.func @transform_2(%arg0: i32, %arg1: i32) -> (i32, i32) {
    %c0_i32 = arith.constant 0 : i32
    %c0_i32_0 = arith.constant 0 : i32
    %c0_i32_1 = arith.constant 0 : i32
    return %c0_i32, %c0_i32_0 : i32, i32
  }
  func.func @transform_3(%arg0: i32, %arg1: i32) -> (i32, i32) {
    %c0_i32 = arith.constant 0 : i32
    %c0_i32_0 = arith.constant 0 : i32
    return %c0_i32, %arg1 : i32, i32
  }
  func.func @transform_4(%arg0: i32, %arg1: i32) -> (i32, i32) {
    %c0_i32 = arith.constant 0 : i32
    %c0_i32_0 = arith.constant 0 : i32
    return %c0_i32, %arg1 : i32, i32
  }
  func.func @transform_5(%arg0: i32, %arg1: i32) -> (i32, i32) {
    %c0_i32 = arith.constant 0 : i32
    return %arg0, %arg1 : i32, i32
  }
}

</mosaic_0001>

<llo_original>
// kernel: bi_transformer_decoder_forward.22
$region0: #{bi_transformer_decoder_forward.22}
  #allocation0 [shape = 'u32[]', space=smem, size = 0x4, offset = 0x4, fixed_abs, tag = 'smem constant byte address 0x4 - core index']
  #allocation1 [shape = 'u32[144,128]{1,0:T(1,128)}', space=vmem, size = 0x12000, scoped, tag = 'internal scratch']
  %s0 = inlined_call_operand.vmem [shape: f32[16,32], index: 0, kind: input, shape index: {}]
  %s1 = inlined_call_operand.vmem [shape: f32[1,32], index: 1, kind: input, shape index: {}]
  %s2 = inlined_call_operand.vmem [shape: f32[1,32], index: 2, kind: input, shape index: {}]
  %s3 = inlined_call_operand.vmem [shape: bf16[32,32], index: 3, kind: input, shape index: {}]
  %s4 = inlined_call_operand.vmem [shape: f32[1,32], index: 4, kind: input, shape index: {}]
  %s5 = inlined_call_operand.vmem [shape: bf16[16,32], index: 5, kind: output, shape index: {}]
  %s6 = sld [smem:[#allocation0]]
  $region30: #{bi_transformer_decoder_forward.22} parent=0
    _
  %s8 = ssub.s32 1, %s6
  %s9 = scalar_select 0, %s8, %s6
  // Predicated region
  $region2: #{bi_transformer_decoder_forward.22} parent=0 // pred_check
    _
  $region3: #{bi_transformer_decoder_forward.22} parent=0 // pred_check_branch
    %11 = sbr.rel (0) target = $region5
  $region4: #{bi_transformer_decoder_forward.22} parent=0 // pred_region
    _
  $region5: #{bi_transformer_decoder_forward.22} parent=0 // pred_fallthru
    _
  // Predicated region
  $region6: #{bi_transformer_decoder_forward.22} parent=0 // pred_check
    _
  $region7: #{bi_transformer_decoder_forward.22} parent=0 // pred_check_branch
    %13 = sbr.rel (0) target = $region9
  $region8: #{bi_transformer_decoder_forward.22} parent=0 // pred_region
    _
  $region9: #{bi_transformer_decoder_forward.22} parent=0 // pred_fallthru
    _
  // Predicated region
  $region10: #{bi_transformer_decoder_forward.22} parent=0 // pred_check
    _
  $region11: #{bi_transformer_decoder_forward.22} parent=0 // pred_check_branch
    %15 = sbr.rel (0) target = $region13
  $region12: #{bi_transformer_decoder_forward.22} parent=0 // pred_region
    _
  $region13: #{bi_transformer_decoder_forward.22} parent=0 // pred_fallthru
    _
  // Predicated region
  $region14: #{bi_transformer_decoder_forward.22} parent=0 // pred_check
    _
  $region15: #{bi_transformer_decoder_forward.22} parent=0 // pred_check_branch
    %17 = sbr.rel (0) target = $region17
  $region16: #{bi_transformer_decoder_forward.22} parent=0 // pred_region
    _
  $region17: #{bi_transformer_decoder_forward.22} parent=0 // pred_fallthru
    _
  // Predicated region
  $region18: #{bi_transformer_decoder_forward.22} parent=0 // pred_check
    _
  $region19: #{bi_transformer_decoder_forward.22} parent=0 // pred_check_branch
    %19 = sbr.rel (0) target = $region21
  $region20: #{bi_transformer_decoder_forward.22} parent=0 // pred_region
    _
  $region21: #{bi_transformer_decoder_forward.22} parent=0 // pred_fallthru
    _
  %v21 = vld [vmem:[%s0] sm:$0xff]
  %v22 = vld [vmem:[%s0 + $0x8] sm:$0xff]
  %v23 = vld [vmem:[%s1] sm:$0x1]
  %v24 = vld [vmem:[%s2] sm:$0x1]
  %vm25 = vcmask 261120
  %v26 = vsel %vm25, %v21, 0.0
  %27 = vadd.xlane.f32.xlu0 %v26
  %v28 = vpop.xlane.xlu0 %27
  %v29 = vsel %vm25, %v22, 0.0
  %30 = vadd.xlane.f32.xlu0 %v29
  %v31 = vpop.xlane.xlu0 %30
  %v32 = vrcp.pop 32.0
  %v33 = vmul.f32 %v28, %v32
  %v34 = vmul.f32 %v31, %v32
  %v35 = vsub.f32 %v21, %v33
  %v36 = vsub.f32 %v22, %v34
  %v37 = vmul.f32 %v35, %v35
  %v38 = vmul.f32 %v36, %v36
  %v39 = vsel %vm25, %v37, 0.0
  %40 = vadd.xlane.f32.xlu0 %v39
  %v41 = vpop.xlane.xlu0 %40
  %v42 = vsel %vm25, %v38, 0.0
  %43 = vadd.xlane.f32.xlu0 %v42
  %v44 = vpop.xlane.xlu0 %43
  %v45 = vmul.f32 %v41, %v32
  %v46 = vmul.f32 %v44, %v32
  %v47 = vadd.f32 %v45, 1e-05
  %v48 = vadd.f32 %v46, 1e-05
  %v49 = vrsqrt.pop %v47
  %v50 = vrsqrt.pop %v48
  %v51 = vmul.f32 %v35, %v49
  %v52 = vmul.f32 %v36, %v50
  %v54 = vlaneseq
  %v55 = vshrl.u32 %v54, 7
  %v56 = vsub.s32 0, %v55
  %v57 = vrot.slane %v23, %v56
  %v59 = vmul.f32 %v51, %v57
  %v60 = vmul.f32 %v52, %v57
  %v62 = vlaneseq
  %v63 = vshrl.u32 %v62, 7
  %v64 = vsub.s32 0, %v63
  %v65 = vrot.slane %v24, %v64
  %v67 = vadd.f32 %v59, %v65
  %v68 = vadd.f32 %v60, %v65
  %v69 = vpack.c.bf16 %v68, %v67
  %v70 = vld [vmem:[%s3] sm:$0xf]
  %v71 = vld [vmem:[%s3 + $0x4] sm:$0xf]
  %v72 = vld [vmem:[%s3 + $0x8] sm:$0xf]
  %v73 = vld [vmem:[%s3 + $0xc] sm:$0xf]
  %v74 = vld [vmem:[%s4] sm:$0x1]
  %v76 = vlaneseq
  %v77 = vshrl.u32 %v76, 7
  %v78 = vsub.s32 0, %v77
  %v79 = vrot.slane %v74, %v78
  %v85 = vunpack.c.l.b16 %v70
  %v86 = vunpack.c.l.b16 %v71
  %v87 = vunpack.c.l.b16 %v72
  %v88 = vunpack.c.l.b16 %v73
  %v89 = vpack.c.b16 %v86, %v85
  %v90 = vpack.c.b16 %v88, %v87
  %v94 = vsel %vm25, %v69, 0
  %96 = vmatprep.subr.bf16.mxu0 0
  %97 = vmatpush1.bf16.msra.mxu0 0
  %98 = vmatprep.subr.bf16.mxu0 0
  %99 = vmatpush1.bf16.msra.mxu0 0
  %100 = vmatprep.subr.bf16.mxu0 0
  %101 = vmatpush1.bf16.msra.mxu0 0
  %102 = vmatprep.subr.bf16.mxu0 0
  %103 = vmatpush1.bf16.msra.mxu0 0
  %104 = vmatprep.subr.bf16.mxu0 0
  %105 = vmatpush1.bf16.msra.mxu0 0
  %106 = vmatprep.subr.bf16.mxu0 0
  %107 = vmatpush1.bf16.msra.mxu0 0
  %108 = vmatprep.subr.bf16.mxu0 0
  %109 = vmatpush1.bf16.msra.mxu0 %v90
  %110 = vmatprep.subr.bf16.mxu0 0
  %111 = vmatpush1.bf16.msra.mxu0 %v89
  %112 = vmatprep.subr.bf16.mxu0 0
  %113 = vmatpush2.bf16.msra.mxu0 0
  %114 = vmatprep.subr.bf16.mxu0 0
  %115 = vmatpush2.bf16.msra.mxu0 0
  %116 = vmatprep.subr.bf16.mxu0 0
  %117 = vmatpush2.bf16.msra.mxu0 0
  %118 = vmatprep.subr.bf16.mxu0 0
  %119 = vmatpush2.bf16.msra.mxu0 0
  %120 = vmatprep.subr.bf16.mxu0 0
  %121 = vmatpush2.bf16.msra.mxu0 0
  %122 = vmatprep.subr.bf16.mxu0 0
  %123 = vmatpush2.bf16.msra.mxu0 0
  %124 = vmatprep.subr.bf16.mxu0 0
  %125 = vmatpush2.bf16.msra.mxu0 0
  %126 = vmatprep.subr.bf16.mxu0 0
  %127 = vmatpush2.bf16.msra.mxu0 0
  %128 = vmatprep.mubr.bf16.mxu0 0
  %129 = vmatmul.mubr.bf16.gmra.mxu0 %v94
  %v130 = vpop.f32.mrf.mxu0
  %v131 = vadd.f32 %v79, %v130
  %v132 = vpop.f32.mrf.mxu0
  %v133 = vpop.f32.mrf.mxu0
  %v134 = vadd.f32 %v79, %v133
  %v135 = vpop.f32.mrf.mxu0
  %136 = vdwg.mxu0
  %v137 = vpack.c.bf16 %v134, %v131
  %v139 = vunpack.c.l.b16 %v137
  %v140 = vunpack.c.h.b16 %v137
  %v141 = vpack.c.b16 %v139, %v139
  %v142 = vpack.c.b16 %v140, %v140
  %vm145 = vcmask 257024
  %146 = vst.msk [vmem:[%s5] sm:$0xf] %vm145, %v141
  %147 = vst.msk [vmem:[%s5 + $0x4] sm:$0xf] %vm145, %v142
  // Predicated region
  $region22: #{bi_transformer_decoder_forward.22} parent=0 // pred_check
    _
  $region23: #{bi_transformer_decoder_forward.22} parent=0 // pred_check_branch
    %149 = sbr.rel (0) target = $region25
  $region24: #{bi_transformer_decoder_forward.22} parent=0 // pred_region
    _
  $region25: #{bi_transformer_decoder_forward.22} parent=0 // pred_fallthru
    _
  // Predicated region
  $region26: #{bi_transformer_decoder_forward.22} parent=0 // pred_check
    _
  $region27: #{bi_transformer_decoder_forward.22} parent=0 // pred_check_branch
    %151 = sbr.rel (0) target = $region29
  $region28: #{bi_transformer_decoder_forward.22} parent=0 // pred_region
    _
  $region29: #{bi_transformer_decoder_forward.22} parent=0 // pred_fallthru
    _

// kernel: bi_transformer_decoder_forward.23
$region0: #{bi_transformer_decoder_forward.23}
  #allocation0 [shape = 'u32[]', space=smem, size = 0x4, offset = 0x4, fixed_abs, tag = 'smem constant byte address 0x4 - core index']
  #allocation1 [shape = 'u32[144,128]{1,0:T(1,128)}', space=vmem, size = 0x12000, scoped, tag = 'internal scratch']
  %s0 = inlined_call_operand.vmem [shape: f32[20,32], index: 0, kind: input, shape index: {}]
  %s1 = inlined_call_operand.vmem [shape: bf16[32,64], index: 1, kind: input, shape index: {}]
  %s2 = inlined_call_operand.vmem [shape: f32[1,64], index: 2, kind: input, shape index: {}]
  %s3 = inlined_call_operand.vmem [shape: bf16[20,64], index: 3, kind: output, shape index: {}]
  %s4 = sld [smem:[#allocation0]]
  $region22: #{bi_transformer_decoder_forward.23} parent=0
    _
  %s6 = ssub.s32 1, %s4
  %s7 = scalar_select 0, %s6, %s4
  // Predicated region
  $region2: #{bi_transformer_decoder_forward.23} parent=0 // pred_check
    _
  $region3: #{bi_transformer_decoder_forward.23} parent=0 // pred_check_branch
    %9 = sbr.rel (0) target = $region5
  $region4: #{bi_transformer_decoder_forward.23} parent=0 // pred_region
    _
  $region5: #{bi_transformer_decoder_forward.23} parent=0 // pred_fallthru
    _
  // Predicated region
  $region6: #{bi_transformer_decoder_forward.23} parent=0 // pred_check
    _
  $region7: #{bi_transformer_decoder_forward.23} parent=0 // pred_check_branch
    %11 = sbr.rel (0) target = $region9
  $region8: #{bi_transformer_decoder_forward.23} parent=0 // pred_region
    _
  $region9: #{bi_transformer_decoder_forward.23} parent=0 // pred_fallthru
    _
  // Predicated region
  $region10: #{bi_transformer_decoder_forward.23} parent=0 // pred_check
    _
  $region11: #{bi_transformer_decoder_forward.23} parent=0 // pred_check_branch
    %13 = sbr.rel (0) target = $region13
  $region12: #{bi_transformer_decoder_forward.23} parent=0 // pred_region
    _
  $region13: #{bi_transformer_decoder_forward.23} parent=0 // pred_fallthru
    _
  %v15 = vld [vmem:[%s0] sm:$0xff]
  %v16 = vld [vmem:[%s0 + $0x8] sm:$0xff]
  %v17 = vld [vmem:[%s0 + $0x10] sm:$0xf]
  %v18 = vpack.c.bf16 %v16, %v15
  %v19 = vpack.c.bf16 %v17, %v17
  %v20 = vld [vmem:[%s1] sm:$0xf]
  %v21 = vld [vmem:[%s1 + $0x4] sm:$0xf]
  %v22 = vld [vmem:[%s1 + $0x8] sm:$0xf]
  %v23 = vld [vmem:[%s1 + $0xc] sm:$0xf]
  %v24 = vld [vmem:[%s2] sm:$0x1]
  %v26 = vlaneseq
  %v27 = vshrl.u32 %v26, 7
  %v28 = vsub.s32 0, %v27
  %v29 = vrot.slane %v24, %v28
  %v35 = vunpack.c.l.b16 %v20
  %v36 = vunpack.c.l.b16 %v21
  %v37 = vunpack.c.l.b16 %v22
  %v38 = vunpack.c.l.b16 %v23
  %v39 = vpack.c.b16 %v36, %v35
  %v40 = vpack.c.b16 %v38, %v37
  %vm43 = vcmask 261120
  %v45 = vsel %vm43, %v18, 0
  %v48 = vsel %vm43, %v19, 0
  %50 = vmatprep.subr.bf16.mxu0 0
  %51 = vmatpush1.bf16.msra.mxu0 0
  %52 = vmatprep.subr.bf16.mxu0 0
  %53 = vmatpush1.bf16.msra.mxu0 0
  %54 = vmatprep.subr.bf16.mxu0 0
  %55 = vmatpush1.bf16.msra.mxu0 0
  %56 = vmatprep.subr.bf16.mxu0 0
  %57 = vmatpush1.bf16.msra.mxu0 0
  %58 = vmatprep.subr.bf16.mxu0 0
  %59 = vmatpush1.bf16.msra.mxu0 0
  %60 = vmatprep.subr.bf16.mxu0 0
  %61 = vmatpush1.bf16.msra.mxu0 0
  %62 = vmatprep.subr.bf16.mxu0 0
  %63 = vmatpush1.bf16.msra.mxu0 %v40
  %64 = vmatprep.subr.bf16.mxu0 0
  %65 = vmatpush1.bf16.msra.mxu0 %v39
  %66 = vmatprep.subr.bf16.mxu0 0
  %67 = vmatpush2.bf16.msra.mxu0 0
  %68 = vmatprep.subr.bf16.mxu0 0
  %69 = vmatpush2.bf16.msra.mxu0 0
  %70 = vmatprep.subr.bf16.mxu0 0
  %71 = vmatpush2.bf16.msra.mxu0 0
  %72 = vmatprep.subr.bf16.mxu0 0
  %73 = vmatpush2.bf16.msra.mxu0 0
  %74 = vmatprep.subr.bf16.mxu0 0
  %75 = vmatpush2.bf16.msra.mxu0 0
  %76 = vmatprep.subr.bf16.mxu0 0
  %77 = vmatpush2.bf16.msra.mxu0 0
  %78 = vmatprep.subr.bf16.mxu0 0
  %79 = vmatpush2.bf16.msra.mxu0 0
  %80 = vmatprep.subr.bf16.mxu0 0
  %81 = vmatpush2.bf16.msra.mxu0 0
  %82 = vmatprep.mubr.bf16.mxu0 0
  %83 = vmatmul.mubr.bf16.gmra.mxu0 %v45
  %v84 = vpop.f32.mrf.mxu0
  %v85 = vadd.f32 %v29, %v84
  %v86 = vpop.f32.mrf.mxu0
  %v87 = vpop.f32.mrf.mxu0
  %v88 = vadd.f32 %v29, %v87
  %v89 = vpop.f32.mrf.mxu0
  %90 = vmatprep.mubr.bf16.mxu0 0
  %91 = vmatmul.mubr.bf16.gmra.mxu0 %v48
  %v92 = vpop.f32.mrf.mxu0
  %v93 = vadd.f32 %v29, %v92
  %v94 = vpop.f32.mrf.mxu0
  %v95 = vpop.f32.mrf.mxu0
  %v96 = vpop.f32.mrf.mxu0
  %97 = vdwg.mxu0
  %v98 = vpack.c.bf16 %v88, %v85
  %v99 = vpack.c.bf16 %v93, %v93
  %v102 = vunpack.c.l.b16 %v98
  %v103 = vunpack.c.h.b16 %v98
  %v104 = vunpack.c.l.b16 %v99
  %v105 = vpack.c.b16 %v102, %v102
  %v106 = vpack.c.b16 %v103, %v103
  %v107 = vpack.c.b16 %v104, %v104
  %vm111 = vcmask 519168
  %112 = vst.msk [vmem:[%s3] sm:$0xf] %vm111, %v105
  %113 = vst.msk [vmem:[%s3 + $0x4] sm:$0xf] %vm111, %v106
  %vm114 = vcmask 517120
  %115 = vst.msk [vmem:[%s3 + $0x8] sm:$0x3] %vm114, %v107
  // Predicated region
  $region14: #{bi_transformer_decoder_forward.23} parent=0 // pred_check
    _
  $region15: #{bi_transformer_decoder_forward.23} parent=0 // pred_check_branch
    %117 = sbr.rel (0) target = $region17
  $region16: #{bi_transformer_decoder_forward.23} parent=0 // pred_region
    _
  $region17: #{bi_transformer_decoder_forward.23} parent=0 // pred_fallthru
    _
  // Predicated region
  $region18: #{bi_transformer_decoder_forward.23} parent=0 // pred_check
    _
  $region19: #{bi_transformer_decoder_forward.23} parent=0 // pred_check_branch
    %119 = sbr.rel (0) target = $region21
  $region20: #{bi_transformer_decoder_forward.23} parent=0 // pred_region
    _
  $region21: #{bi_transformer_decoder_forward.23} parent=0 // pred_fallthru
    _

// kernel: bi_transformer_decoder_forward.20
$region0: #{bi_transformer_decoder_forward.20}
  #allocation0 [shape = 'u32[]', space=smem, size = 0x4, offset = 0x4, fixed_abs, tag = 'smem constant byte address 0x4 - core index']
  #allocation1 [shape = 'u32[144,128]{1,0:T(1,128)}', space=vmem, size = 0x12000, scoped, tag = 'internal scratch']
  %s0 = inlined_call_operand.vmem [shape: f32[16,32], index: 0, kind: input, shape index: {}]
  %s1 = inlined_call_operand.vmem [shape: f32[1,32], index: 1, kind: input, shape index: {}]
  %s2 = inlined_call_operand.vmem [shape: f32[1,32], index: 2, kind: input, shape index: {}]
  %s3 = inlined_call_operand.vmem [shape: bf16[32,96], index: 3, kind: input, shape index: {}]
  %s4 = inlined_call_operand.vmem [shape: f32[1,96], index: 4, kind: input, shape index: {}]
  %s5 = inlined_call_operand.vmem [shape: bf16[16,32], index: 5, kind: output, shape index: {0}]
  %s6 = inlined_call_operand.vmem [shape: bf16[16,64], index: 6, kind: output, shape index: {1}]
  %7 = xla_tuple %s5, %s6
  %s8 = sld [smem:[#allocation0]]
  $region38: #{bi_transformer_decoder_forward.20} parent=0
    _
  %s10 = ssub.s32 1, %s8
  %s11 = scalar_select 0, %s10, %s8
  // Predicated region
  $region2: #{bi_transformer_decoder_forward.20} parent=0 // pred_check
    _
  $region3: #{bi_transformer_decoder_forward.20} parent=0 // pred_check_branch
    %13 = sbr.rel (0) target = $region5
  $region4: #{bi_transformer_decoder_forward.20} parent=0 // pred_region
    _
  $region5: #{bi_transformer_decoder_forward.20} parent=0 // pred_fallthru
    _
  // Predicated region
  $region6: #{bi_transformer_decoder_forward.20} parent=0 // pred_check
    _
  $region7: #{bi_transformer_decoder_forward.20} parent=0 // pred_check_branch
    %15 = sbr.rel (0) target = $region9
  $region8: #{bi_transformer_decoder_forward.20} parent=0 // pred_region
    _
  $region9: #{bi_transformer_decoder_forward.20} parent=0 // pred_fallthru
    _
  // Predicated region
  $region10: #{bi_transformer_decoder_forward.20} parent=0 // pred_check
    _
  $region11: #{bi_transformer_decoder_forward.20} parent=0 // pred_check_branch
    %17 = sbr.rel (0) target = $region13
  $region12: #{bi_transformer_decoder_forward.20} parent=0 // pred_region
    _
  $region13: #{bi_transformer_decoder_forward.20} parent=0 // pred_fallthru
    _
  // Predicated region
  $region14: #{bi_transformer_decoder_forward.20} parent=0 // pred_check
    _
  $region15: #{bi_transformer_decoder_forward.20} parent=0 // pred_check_branch
    %19 = sbr.rel (0) target = $region17
  $region16: #{bi_transformer_decoder_forward.20} parent=0 // pred_region
    _
  $region17: #{bi_transformer_decoder_forward.20} parent=0 // pred_fallthru
    _
  // Predicated region
  $region18: #{bi_transformer_decoder_forward.20} parent=0 // pred_check
    _
  $region19: #{bi_transformer_decoder_forward.20} parent=0 // pred_check_branch
    %21 = sbr.rel (0) target = $region21
  $region20: #{bi_transformer_decoder_forward.20} parent=0 // pred_region
    _
  $region21: #{bi_transformer_decoder_forward.20} parent=0 // pred_fallthru
    _
  %v23 = vld [vmem:[%s0] sm:$0xff]
  %v24 = vld [vmem:[%s0 + $0x8] sm:$0xff]
  %v25 = vld [vmem:[%s1] sm:$0x1]
  %v26 = vld [vmem:[%s2] sm:$0x1]
  %vm27 = vcmask 261120
  %v28 = vsel %vm27, %v23, 0.0
  %29 = vadd.xlane.f32.xlu0 %v28
  %v30 = vpop.xlane.xlu0 %29
  %v31 = vsel %vm27, %v24, 0.0
  %32 = vadd.xlane.f32.xlu0 %v31
  %v33 = vpop.xlane.xlu0 %32
  %v34 = vrcp.pop 32.0
  %v35 = vmul.f32 %v30, %v34
  %v36 = vmul.f32 %v33, %v34
  %v37 = vsub.f32 %v23, %v35
  %v38 = vsub.f32 %v24, %v36
  %v39 = vmul.f32 %v37, %v37
  %v40 = vmul.f32 %v38, %v38
  %v41 = vsel %vm27, %v39, 0.0
  %42 = vadd.xlane.f32.xlu0 %v41
  %v43 = vpop.xlane.xlu0 %42
  %v44 = vsel %vm27, %v40, 0.0
  %45 = vadd.xlane.f32.xlu0 %v44
  %v46 = vpop.xlane.xlu0 %45
  %v47 = vmul.f32 %v43, %v34
  %v48 = vmul.f32 %v46, %v34
  %v49 = vadd.f32 %v47, 1e-05
  %v50 = vadd.f32 %v48, 1e-05
  %v51 = vrsqrt.pop %v49
  %v52 = vrsqrt.pop %v50
  %v53 = vmul.f32 %v37, %v51
  %v54 = vmul.f32 %v38, %v52
  %v56 = vlaneseq
  %v57 = vshrl.u32 %v56, 7
  %v58 = vsub.s32 0, %v57
  %v59 = vrot.slane %v25, %v58
  %v61 = vmul.f32 %v53, %v59
  %v62 = vmul.f32 %v54, %v59
  %v64 = vlaneseq
  %v65 = vshrl.u32 %v64, 7
  %v66 = vsub.s32 0, %v65
  %v67 = vrot.slane %v26, %v66
  %v69 = vadd.f32 %v61, %v67
  %v70 = vadd.f32 %v62, %v67
  %v71 = vpack.c.bf16 %v70, %v69
  %v72 = vld [vmem:[%s3] sm:$0xf]
  %v73 = vld [vmem:[%s3 + $0x4] sm:$0xf]
  %v74 = vld [vmem:[%s3 + $0x8] sm:$0xf]
  %v75 = vld [vmem:[%s3 + $0xc] sm:$0xf]
  %v76 = vld [vmem:[%s4] sm:$0x1]
  %v78 = vlaneseq
  %v79 = vshrl.u32 %v78, 7
  %v80 = vsub.s32 0, %v79
  %v81 = vrot.slane %v76, %v80
  %v87 = vunpack.c.l.b16 %v72
  %v88 = vunpack.c.l.b16 %v73
  %v89 = vunpack.c.l.b16 %v74
  %v90 = vunpack.c.l.b16 %v75
  %v91 = vpack.c.b16 %v88, %v87
  %v92 = vpack.c.b16 %v90, %v89
  %v96 = vsel %vm27, %v71, 0
  %98 = vmatprep.subr.bf16.mxu0 0
  %99 = vmatpush1.bf16.msra.mxu0 0
  %100 = vmatprep.subr.bf16.mxu0 0
  %101 = vmatpush1.bf16.msra.mxu0 0
  %102 = vmatprep.subr.bf16.mxu0 0
  %103 = vmatpush1.bf16.msra.mxu0 0
  %104 = vmatprep.subr.bf16.mxu0 0
  %105 = vmatpush1.bf16.msra.mxu0 0
  %106 = vmatprep.subr.bf16.mxu0 0
  %107 = vmatpush1.bf16.msra.mxu0 0
  %108 = vmatprep.subr.bf16.mxu0 0
  %109 = vmatpush1.bf16.msra.mxu0 0
  %110 = vmatprep.subr.bf16.mxu0 0
  %111 = vmatpush1.bf16.msra.mxu0 %v92
  %112 = vmatprep.subr.bf16.mxu0 0
  %113 = vmatpush1.bf16.msra.mxu0 %v91
  %114 = vmatprep.subr.bf16.mxu0 0
  %115 = vmatpush2.bf16.msra.mxu0 0
  %116 = vmatprep.subr.bf16.mxu0 0
  %117 = vmatpush2.bf16.msra.mxu0 0
  %118 = vmatprep.subr.bf16.mxu0 0
  %119 = vmatpush2.bf16.msra.mxu0 0
  %120 = vmatprep.subr.bf16.mxu0 0
  %121 = vmatpush2.bf16.msra.mxu0 0
  %122 = vmatprep.subr.bf16.mxu0 0
  %123 = vmatpush2.bf16.msra.mxu0 0
  %124 = vmatprep.subr.bf16.mxu0 0
  %125 = vmatpush2.bf16.msra.mxu0 0
  %126 = vmatprep.subr.bf16.mxu0 0
  %127 = vmatpush2.bf16.msra.mxu0 0
  %128 = vmatprep.subr.bf16.mxu0 0
  %129 = vmatpush2.bf16.msra.mxu0 0
  %130 = vmatprep.mubr.bf16.mxu0 0
  %131 = vmatmul.mubr.bf16.gmra.mxu0 %v96
  %v132 = vpop.f32.mrf.mxu0
  %v133 = vadd.f32 %v81, %v132
  %v134 = vpop.f32.mrf.mxu0
  %v135 = vpop.f32.mrf.mxu0
  %v136 = vadd.f32 %v81, %v135
  %v137 = vpop.f32.mrf.mxu0
  %138 = vdwg.mxu0
  %v139 = vpack.c.bf16 %v136, %v133
  %v141 = vunpack.c.l.b16 %v139
  %v142 = vunpack.c.h.b16 %v139
  %v143 = vpack.c.b16 %v141, %v141
  %v144 = vpack.c.b16 %v142, %v142
  %vm147 = vcmask 257024
  %148 = vst.msk [vmem:[%s5] sm:$0xf] %vm147, %v143
  %149 = vst.msk [vmem:[%s5 + $0x4] sm:$0xf] %vm147, %v144
  %150 = vrot.lane.b32.xlu0 %v143, 96
  %v151 = vpop.permute.xlu0 %150
  %152 = vrot.lane.b32.xlu0 %v144, 96
  %v153 = vpop.permute.xlu0 %152
  %vm156 = vcmask 519168
  %157 = vst.msk [vmem:[%s6] sm:$0xf] %vm156, %v151
  %158 = vst.msk [vmem:[%s6 + $0x4] sm:$0xf] %vm156, %v153
  // Predicated region
  $region22: #{bi_transformer_decoder_forward.20} parent=0 // pred_check
    _
  $region23: #{bi_transformer_decoder_forward.20} parent=0 // pred_check_branch
    %160 = sbr.rel (0) target = $region25
  $region24: #{bi_transformer_decoder_forward.20} parent=0 // pred_region
    _
  $region25: #{bi_transformer_decoder_forward.20} parent=0 // pred_fallthru
    _
  // Predicated region
  $region26: #{bi_transformer_decoder_forward.20} parent=0 // pred_check
    _
  $region27: #{bi_transformer_decoder_forward.20} parent=0 // pred_check_branch
    %162 = sbr.rel (0) target = $region29
  $region28: #{bi_transformer_decoder_forward.20} parent=0 // pred_region
    _
  $region29: #{bi_transformer_decoder_forward.20} parent=0 // pred_fallthru
    _
  // Predicated region
  $region30: #{bi_transformer_decoder_forward.20} parent=0 // pred_check
    _
  $region31: #{bi_transformer_decoder_forward.20} parent=0 // pred_check_branch
    %164 = sbr.rel (0) target = $region33
  $region32: #{bi_transformer_decoder_forward.20} parent=0 // pred_region
    _
  $region33: #{bi_transformer_decoder_forward.20} parent=0 // pred_fallthru
    _
  // Predicated region
  $region34: #{bi_transformer_decoder_forward.20} parent=0 // pred_check
    _
  $region35: #{bi_transformer_decoder_forward.20} parent=0 // pred_check_branch
    %166 = sbr.rel (0) target = $region37
  $region36: #{bi_transformer_decoder_forward.20} parent=0 // pred_region
    _
  $region37: #{bi_transformer_decoder_forward.20} parent=0 // pred_fallthru
    _

// kernel: bi_transformer_decoder_forward.21
$region0: #{bi_transformer_decoder_forward.21}
  #allocation0 [shape = 'u32[]', space=smem, size = 0x4, offset = 0x4, fixed_abs, tag = 'smem constant byte address 0x4 - core index']
  #allocation1 [shape = 'u32[144,128]{1,0:T(1,128)}', space=vmem, size = 0x12000, scoped, tag = 'internal scratch']
  #allocation2 [shape = 's32[1]{0}', space=sflag, size = 0x4, scoped, tag = 'scoped memory for bi_transformer_decoder_forward.21']
  #allocation3 [shape = 'u8[512]{0}', space=smem, size = 0x200, scoped, tag = 'prefetched SMEM operand 0']
  %s0 = inlined_call_operand.vmem [shape: s32[2], index: 0, kind: input, shape index: {}]
  %s1 = inlined_call_operand.vmem [shape: bf16[2,8,32], index: 1, kind: input, shape index: {}]
  %s2 = inlined_call_operand.vmem [shape: bf16[2,8,64], index: 2, kind: input, shape index: {}]
  %s3 = inlined_call_operand.vmem [shape: bf16[32,32], index: 3, kind: input, shape index: {}]
  %s4 = inlined_call_operand.vmem [shape: f32[1,32], index: 4, kind: input, shape index: {}]
  %s5 = inlined_call_operand.vmem [shape: f32[2,8,32], index: 5, kind: input, shape index: {}]
  %s6 = inlined_call_operand.vmem [shape: f32[2,8,32], index: 6, kind: output, shape index: {}]
  %s7 = sld [smem:[#allocation0]]
  $region53: #{bi_transformer_decoder_forward.21} parent=0
    _
  %s9 = ssub.s32 1, %s7
  %s10 = scalar_select 0, %s9, %s7
  %s11 = sshll.u32 %s0, 4
  %s12 = int_to_ptr.vmem [resolvable:$true] %s11
  %14 = dma.vmem_to_smem %s12, 16, [#allocation3], [#allocation2]
  %15 = dma.done [#allocation2], 16
  %16 = sfence
  loop: start=0, step=1, limit=4
  $region2: #{bi_transformer_decoder_forward.21} parent=0 // loop_pre_header
    _
  $region3: #{bi_transformer_decoder_forward.21} parent=0 // loop_header
    %s18 = sphi 0, %s22
    %p19 = scmp.ge.s32.totalorder %s18, 4
    %s28 = sphi 0, %s30
    %s31 = sphi 0, %s28
    %s32 = sphi 0, %s31
    %s48 = sphi 0, %s32
    %s54 = sphi 0, %s56
    %s57 = sphi 0, %s54
    %s58 = sphi 0, %s57
    %s74 = sphi 0, %s58
    %s78 = sphi 0, %s78
    %s80 = sphi 0, %s78
    %s81 = sphi 0, %s80
    %s95 = sphi 0, %s81
    %s99 = sphi 0, %s99
    %s101 = sphi 0, %s99
    %s102 = sphi 0, %s101
    %s116 = sphi 0, %s102
    %s122 = sphi 0, %s124
    %s125 = sphi 0, %s122
    %s126 = sphi 0, %s125
    %s142 = sphi 0, %s126
    %s148 = sphi 0, %s150
    %s151 = sphi 0, %s148
    %s152 = sphi 0, %s151
    %s168 = sphi 0, %s152
  $region4: #{bi_transformer_decoder_forward.21} parent=0 // loop_header_branch
    %21 = sbr.rel (%p19) target = $region8
  $region5: #{bi_transformer_decoder_forward.21} parent=0 // loop_body
    %s23 = ssub.s32 %s18, 1
    %s24 = ssub.s32 %s18, 2
    %s25 = sadd.s32 %s18, 1
    %s26 = ssub.s32 %s18, %s25
    %p27 = scmp.eq.s32.totalorder %s26, 0
    %s29 = sadd.s32 %s28, 1
    %s30 = scalar_select %p27, %s28, %s29
    %p33 = pneg %p27
    %p34 = scmp.eq.s32.totalorder %s18, 1
    %p35 = por %p33, %p34
    %p36 = scmp.ne.s32.totalorder %s28, %s31
    %p37 = scmp.eq.s32.totalorder %s18, 0
    %p38 = por %p36, %p37
    %p39 = scmp.ne.s32.totalorder %s28, %s31
    %p40 = scmp.eq.s32.totalorder %s23, 1
    %p41 = por %p39, %p40
    %p42 = scmp.ne.s32.totalorder %s31, %s32
    %p43 = scmp.eq.s32.totalorder %s23, 0
    %p44 = por %p42, %p43
    %p45 = scmp.ne.s32.totalorder %s31, %s32
    %p46 = scmp.eq.s32.totalorder %s24, 1
    %p47 = por %p45, %p46
    %p49 = scmp.ne.s32.totalorder %s32, %s48
    %p50 = scmp.eq.s32.totalorder %s24, 0
    %p51 = por %p49, %p50
    %s52 = ssub.s32 %s18, %s25
    %p53 = scmp.eq.s32.totalorder %s52, 0
    %s55 = sadd.s32 %s54, 1
    %s56 = scalar_select %p53, %s54, %s55
    %p59 = pneg %p53
    %p60 = scmp.eq.s32.totalorder %s18, 1
    %p61 = por %p59, %p60
    %p62 = scmp.ne.s32.totalorder %s54, %s57
    %p63 = scmp.eq.s32.totalorder %s18, 0
    %p64 = por %p62, %p63
    %p65 = scmp.ne.s32.totalorder %s54, %s57
    %p66 = scmp.eq.s32.totalorder %s23, 1
    %p67 = por %p65, %p66
    %p68 = scmp.ne.s32.totalorder %s57, %s58
    %p69 = scmp.eq.s32.totalorder %s23, 0
    %p70 = por %p68, %p69
    %p71 = scmp.ne.s32.totalorder %s57, %s58
    %p72 = scmp.eq.s32.totalorder %s24, 1
    %p73 = por %p71, %p72
    %p75 = scmp.ne.s32.totalorder %s58, %s74
    %p76 = scmp.eq.s32.totalorder %s24, 0
    %p77 = por %p75, %p76
    %s79 = sadd.s32 %s78, 1
    %p82 = scmp.eq.s32.totalorder %s18, 1
    %p83 = scmp.ne.s32.totalorder %s78, %s80
    %p84 = scmp.eq.s32.totalorder %s18, 0
    %p85 = por %p83, %p84
    %p86 = scmp.ne.s32.totalorder %s78, %s80
    %p87 = scmp.eq.s32.totalorder %s23, 1
    %p88 = por %p86, %p87
    %p89 = scmp.ne.s32.totalorder %s80, %s81
    %p90 = scmp.eq.s32.totalorder %s23, 0
    %p91 = por %p89, %p90
    %p92 = scmp.ne.s32.totalorder %s80, %s81
    %p93 = scmp.eq.s32.totalorder %s24, 1
    %p94 = por %p92, %p93
    %p96 = scmp.ne.s32.totalorder %s81, %s95
    %p97 = scmp.eq.s32.totalorder %s24, 0
    %p98 = por %p96, %p97
    %s100 = sadd.s32 %s99, 1
    %p103 = scmp.eq.s32.totalorder %s18, 1
    %p104 = scmp.ne.s32.totalorder %s99, %s101
    %p105 = scmp.eq.s32.totalorder %s18, 0
    %p106 = por %p104, %p105
    %p107 = scmp.ne.s32.totalorder %s99, %s101
    %p108 = scmp.eq.s32.totalorder %s23, 1
    %p109 = por %p107, %p108
    %p110 = scmp.ne.s32.totalorder %s101, %s102
    %p111 = scmp.eq.s32.totalorder %s23, 0
    %p112 = por %p110, %p111
    %p113 = scmp.ne.s32.totalorder %s101, %s102
    %p114 = scmp.eq.s32.totalorder %s24, 1
    %p115 = por %p113, %p114
    %p117 = scmp.ne.s32.totalorder %s102, %s116
    %p118 = scmp.eq.s32.totalorder %s24, 0
    %p119 = por %p117, %p118
    %s120 = ssub.s32 %s18, %s25
    %p121 = scmp.eq.s32.totalorder %s120, 0
    %s123 = sadd.s32 %s122, 1
    %s124 = scalar_select %p121, %s122, %s123
    %p127 = pneg %p121
    %p128 = scmp.eq.s32.totalorder %s18, 1
    %p129 = por %p127, %p128
    %p130 = scmp.ne.s32.totalorder %s122, %s125
    %p131 = scmp.eq.s32.totalorder %s18, 0
    %p132 = por %p130, %p131
    %p133 = scmp.ne.s32.totalorder %s122, %s125
    %p134 = scmp.eq.s32.totalorder %s23, 1
    %p135 = por %p133, %p134
    %p136 = scmp.ne.s32.totalorder %s125, %s126
    %p137 = scmp.eq.s32.totalorder %s23, 0
    %p138 = por %p136, %p137
    %p139 = scmp.ne.s32.totalorder %s125, %s126
    %p140 = scmp.eq.s32.totalorder %s24, 1
    %p141 = por %p139, %p140
    %p143 = scmp.ne.s32.totalorder %s126, %s142
    %p144 = scmp.eq.s32.totalorder %s24, 0
    %p145 = por %p143, %p144
    %s146 = ssub.s32 %s18, %s25
    %p147 = scmp.eq.s32.totalorder %s146, 0
    %s149 = sadd.s32 %s148, 1
    %s150 = scalar_select %p147, %s148, %s149
    %p153 = pneg %p147
    %p154 = scmp.eq.s32.totalorder %s18, 1
    %p155 = por %p153, %p154
    %p156 = scmp.ne.s32.totalorder %s148, %s151
    %p157 = scmp.eq.s32.totalorder %s18, 0
    %p158 = por %p156, %p157
    %p159 = scmp.ne.s32.totalorder %s148, %s151
    %p160 = scmp.eq.s32.totalorder %s23, 1
    %p161 = por %p159, %p160
    %p162 = scmp.ne.s32.totalorder %s151, %s152
    %p163 = scmp.eq.s32.totalorder %s23, 0
    %p164 = por %p162, %p163
    %p165 = scmp.ne.s32.totalorder %s151, %s152
    %p166 = scmp.eq.s32.totalorder %s24, 1
    %p167 = por %p165, %p166
    %p169 = scmp.ne.s32.totalorder %s152, %s168
    %p170 = scmp.eq.s32.totalorder %s24, 0
    %p171 = por %p169, %p170
    %p172 = scmp.le.s32.totalorder 1, %s18
    %p173 = scmp.lt.s32.totalorder %s18, 3
    %p174 = pnand %p172, %p173
    %p175 = pneg %p174
    // Predicated region
    $region9: #{bi_transformer_decoder_forward.21} parent=5 // pred_check
      _
    $region10: #{bi_transformer_decoder_forward.21} parent=5 // pred_check_branch
      %177 = sbr.rel (%p174) target = $region12
    $region11: #{bi_transformer_decoder_forward.21} parent=5 // pred_region
      %s178 = ssub.s32 %s18, 1
      // Predicated region
      $region13: #{bi_transformer_decoder_forward.21} parent=11 // pred_check
        %p179 = pneg %p91
      $region14: #{bi_transformer_decoder_forward.21} parent=11 // pred_check_branch
        %181 = sbr.rel (%p179) target = $region16
      $region15: #{bi_transformer_decoder_forward.21} parent=11 // pred_region
        _
      $region16: #{bi_transformer_decoder_forward.21} parent=11 // pred_fallthru
        _
      // Predicated region
      $region17: #{bi_transformer_decoder_forward.21} parent=11 // pred_check
        %p182 = pneg %p112
      $region18: #{bi_transformer_decoder_forward.21} parent=11 // pred_check_branch
        %184 = sbr.rel (%p182) target = $region20
      $region19: #{bi_transformer_decoder_forward.21} parent=11 // pred_region
        _
      $region20: #{bi_transformer_decoder_forward.21} parent=11 // pred_fallthru
        _
    $region12: #{bi_transformer_decoder_forward.21} parent=5 // pred_fallthru
      _
    %p185 = scmp.lt.s32.totalorder %s18, 2
    // Predicated region
    $region21: #{bi_transformer_decoder_forward.21} parent=5 // pred_check
      %p186 = pneg %p185
    $region22: #{bi_transformer_decoder_forward.21} parent=5 // pred_check_branch
      %188 = sbr.rel (%p186) target = $region24
    $region23: #{bi_transformer_decoder_forward.21} parent=5 // pred_region
      // Predicated region
      $region25: #{bi_transformer_decoder_forward.21} parent=23 // pred_check
        %p189 = pneg %p38
      $region26: #{bi_transformer_decoder_forward.21} parent=23 // pred_check_branch
        %191 = sbr.rel (%p189) target = $region28
      $region27: #{bi_transformer_decoder_forward.21} parent=23 // pred_region
        %p192 = scmp.lt.s32.totalorder %s18, 1
        %s193 = scalar_select %p192, %s18, 1
        %s194 = smul.addr %s193, 4
        %s195 = scalar_lea.vmem %s1, %s194
      $region28: #{bi_transformer_decoder_forward.21} parent=23 // pred_fallthru
        _
      // Predicated region
      $region29: #{bi_transformer_decoder_forward.21} parent=23 // pred_check
        %p196 = pneg %p64
      $region30: #{bi_transformer_decoder_forward.21} parent=23 // pred_check_branch
        %198 = sbr.rel (%p196) target = $region32
      $region31: #{bi_transformer_decoder_forward.21} parent=23 // pred_region
        %p199 = scmp.lt.s32.totalorder %s18, 1
        %s200 = scalar_select %p199, %s18, 1
        %s201 = smul.addr %s200, 4
        %s202 = scalar_lea.vmem %s2, %s201
      $region32: #{bi_transformer_decoder_forward.21} parent=23 // pred_fallthru
        _
      // Predicated region
      $region33: #{bi_transformer_decoder_forward.21} parent=23 // pred_check
        %p203 = pneg %p132
      $region34: #{bi_transformer_decoder_forward.21} parent=23 // pred_check_branch
        %205 = sbr.rel (%p203) target = $region36
      $region35: #{bi_transformer_decoder_forward.21} parent=23 // pred_region
        %p206 = scmp.lt.s32.totalorder %s18, 1
        %s207 = scalar_select %p206, %s18, 1
        %s208 = smul.addr %s207, 8
        %s209 = scalar_lea.vmem %s5, %s208
      $region36: #{bi_transformer_decoder_forward.21} parent=23 // pred_fallthru
        _
    $region24: #{bi_transformer_decoder_forward.21} parent=5 // pred_fallthru
      _
    %p210 = scmp.le.s32.totalorder 1, %s18
    %p211 = scmp.lt.s32.totalorder %s18, 3
    %p212 = pnand %p210, %p211
    %p213 = pneg %p212
    // Predicated region
    $region37: #{bi_transformer_decoder_forward.21} parent=5 // pred_check
      _
    $region38: #{bi_transformer_decoder_forward.21} parent=5 // pred_check_branch
      %215 = sbr.rel (%p212) target = $region40
    $region39: #{bi_transformer_decoder_forward.21} parent=5 // pred_region
      %s216 = ssub.s32 %s18, 1
      %p217 = scmp.lt.s32.totalorder %s23, 1
      %s218 = scalar_select %p217, %s23, 1
      %s219 = smul.addr %s218, 4
      %s220 = scalar_lea.vmem %s1, %s219
      %p221 = pneg %p44
      %p222 = pneg %p41
      %p223 = scmp.lt.s32.totalorder %s23, 1
      %s224 = scalar_select %p223, %s23, 1
      %s225 = smul.addr %s224, 4
      %s226 = scalar_lea.vmem %s2, %s225
      %p227 = pneg %p70
      %p228 = pneg %p67
      %p229 = pneg %p91
      %p230 = pneg %p88
      %p231 = pneg %p112
      %p232 = pneg %p109
      %p233 = scmp.lt.s32.totalorder %s23, 1
      %s234 = scalar_select %p233, %s23, 1
      %s235 = smul.addr %s234, 8
      %s236 = scalar_lea.vmem %s5, %s235
      %p237 = pneg %p138
      %p238 = pneg %p135
      %p239 = pneg %p164
      %p240 = pneg %p161
      %p241 = scmp.lt.s32.totalorder %s23, 1
      %s242 = scalar_select %p241, %s23, 1
      %s243 = smul.addr %s242, 8
      %s244 = scalar_lea.vmem %s6, %s243
      %p245 = scmp.lt.s32.totalorder %s23, 1
      %s246 = scalar_select %p245, %s23, 1
      %s247 = smul.addr %s246, 4
      %s248 = scalar_lea.vmem %s1, %s247
      %p249 = scmp.lt.s32.totalorder %s23, 1
      %s250 = scalar_select %p249, %s23, 1
      %s251 = smul.addr %s250, 4
      %s252 = scalar_lea.vmem %s2, %s251
      %p253 = scmp.lt.s32.totalorder %s23, 1
      %s254 = scalar_select %p253, %s23, 1
      %s255 = smul.addr %s254, 8
      %s256 = scalar_lea.vmem %s5, %s255
      %p257 = scmp.lt.s32.totalorder %s23, 1
      %s258 = scalar_select %p257, %s23, 1
      %s259 = smul.addr %s258, 8
      %s260 = scalar_lea.vmem %s6, %s259
      %s262 = sld [smem:[#allocation3 + %s23]]
      %v263 = vld [vmem:[%s248] sm:$0xf]
      %v264 = vld [vmem:[%s252] sm:$0xf]
      %v265 = vlaneseq
      %v266 = vand.u32 %v265, 127
      %v267 = vstv %s262
      %vm268 = vcmp.lt.s32.totalorder %v266, %v267
      %v269 = vlaneseq
      %v270 = vshrl.u32 %v269, 7
      %vm271 = vcmp.le.s32.totalorder %v266, %v270
      %vm272 = vmand %vm268, %vm271
      %vm273 = vcmask 64512
      %v275 = vsel %vm273, %v263, 0
      %v278 = vsel %vm273, %v264, 0
      %280 = vmatprep.subr.bf16.mxu0 0
      %281 = vmatpush1.bf16.xpose.msra.mxu0 0
      %282 = vmatprep.subr.bf16.mxu0 0
      %283 = vmatpush1.bf16.xpose.msra.mxu0 0
      %284 = vmatprep.subr.bf16.mxu0 0
      %285 = vmatpush1.bf16.xpose.msra.mxu0 0
      %286 = vmatprep.subr.bf16.mxu0 0
      %287 = vmatpush1.bf16.xpose.msra.mxu0 0
      %288 = vmatprep.subr.bf16.mxu0 0
      %289 = vmatpush1.bf16.xpose.msra.mxu0 0
      %290 = vmatprep.subr.bf16.mxu0 0
      %291 = vmatpush1.bf16.xpose.msra.mxu0 0
      %292 = vmatprep.subr.bf16.mxu0 0
      %293 = vmatpush1.bf16.xpose.msra.mxu0 0
      %294 = vmatprep.subr.bf16.mxu0 0
      %295 = vmatpush1.bf16.xpose.msra.mxu0 %v278
      %296 = vmatprep.subr.bf16.mxu0 0
      %297 = vmatpush2.bf16.xpose.msra.mxu0 0
      %298 = vmatprep.subr.bf16.mxu0 0
      %299 = vmatpush2.bf16.xpose.msra.mxu0 0
      %300 = vmatprep.subr.bf16.mxu0 0
      %301 = vmatpush2.bf16.xpose.msra.mxu0 0
      %302 = vmatprep.subr.bf16.mxu0 0
      %303 = vmatpush2.bf16.xpose.msra.mxu0 0
      %304 = vmatprep.subr.bf16.mxu0 0
      %305 = vmatpush2.bf16.xpose.msra.mxu0 0
      %306 = vmatprep.subr.bf16.mxu0 0
      %307 = vmatpush2.bf16.xpose.msra.mxu0 0
      %308 = vmatprep.subr.bf16.mxu0 0
      %309 = vmatpush2.bf16.xpose.msra.mxu0 0
      %310 = vmatprep.subr.bf16.mxu0 0
      %311 = vmatpush2.bf16.xpose.msra.mxu0 0
      %312 = vmatprep.mubr.bf16.mxu0 0
      %313 = vmatmul.mubr.bf16.gmra.mxu0 %v275
      %v314 = vpop.f32.mrf.mxu0
      %v315 = vadd.f32 0.0, %v314
      %v316 = vpop.f32.mrf.mxu0
      %v317 = vpop.f32.mrf.mxu0
      %v318 = vpop.f32.mrf.mxu0
      %319 = vdwg.mxu0
      %v320 = vmul.f32 %v315, 0.35355338
      %v321 = vsel %vm272, %v320, -1e+30
      %v322 = vsel %vm273, %v321, -inf
      %323 = vmax.xlane.f32.xlu0 %v322
      %v324 = vpop.xlane.xlu0 %323
      %v325 = vsub.f32 %v321, %v324
      %v326 = vmul.f32 %v325, 1.442695
      %v327 = vpow.pop %v326
      %v328 = vsel %vm273, %v327, 0.0
      %329 = vadd.xlane.f32.xlu0 %v328
      %v330 = vpop.xlane.xlu0 %329
      %v331 = vrcp.pop %v330
      %v332 = vmul.f32 %v327, %v331
      %v333 = vsel %vm272, %v332, 0.0
      %v334 = vpack.c.bf16 %v333, %v333
      %v336 = vunpack.c.l.b16 %v264
      %v337 = vpack.c.b16 %v336, %v336
      %338 = vrot.lane.b32.xlu0 %v337, 96
      %v339 = vpop.permute.xlu0 %338
      %v341 = vsel %vm273, %v334, 0
      %vm343 = vcmask 1043456
      %v345 = vsel %vm343, %v339, 0
      %347 = vmatprep.subr.bf16.mxu0 0
      %348 = vmatpush1.bf16.msra.mxu0 0
      %349 = vmatprep.subr.bf16.mxu0 0
      %350 = vmatpush1.bf16.msra.mxu0 0
      %351 = vmatprep.subr.bf16.mxu0 0
      %352 = vmatpush1.bf16.msra.mxu0 0
      %353 = vmatprep.subr.bf16.mxu0 0
      %354 = vmatpush1.bf16.msra.mxu0 0
      %355 = vmatprep.subr.bf16.mxu0 0
      %356 = vmatpush1.bf16.msra.mxu0 0
      %357 = vmatprep.subr.bf16.mxu0 0
      %358 = vmatpush1.bf16.msra.mxu0 0
      %359 = vmatprep.subr.bf16.mxu0 0
      %360 = vmatpush1.bf16.msra.mxu0 0
      %361 = vmatprep.subr.bf16.mxu0 0
      %362 = vmatpush1.bf16.msra.mxu0 %v345
      %363 = vmatprep.subr.bf16.mxu0 0
      %364 = vmatpush2.bf16.msra.mxu0 0
      %365 = vmatprep.subr.bf16.mxu0 0
      %366 = vmatpush2.bf16.msra.mxu0 0
      %367 = vmatprep.subr.bf16.mxu0 0
      %368 = vmatpush2.bf16.msra.mxu0 0
      %369 = vmatprep.subr.bf16.mxu0 0
      %370 = vmatpush2.bf16.msra.mxu0 0
      %371 = vmatprep.subr.bf16.mxu0 0
      %372 = vmatpush2.bf16.msra.mxu0 0
      %373 = vmatprep.subr.bf16.mxu0 0
      %374 = vmatpush2.bf16.msra.mxu0 0
      %375 = vmatprep.subr.bf16.mxu0 0
      %376 = vmatpush2.bf16.msra.mxu0 0
      %377 = vmatprep.subr.bf16.mxu0 0
      %378 = vmatpush2.bf16.msra.mxu0 0
      %379 = vmatprep.mubr.bf16.mxu0 0
      %380 = vmatmul.mubr.bf16.gmra.mxu0 %v341
      %v381 = vpop.f32.mrf.mxu0
      %v382 = vadd.f32 0.0, %v381
      %v383 = vpop.f32.mrf.mxu0
      %v384 = vpop.f32.mrf.mxu0
      %v385 = vpop.f32.mrf.mxu0
      %386 = vdwg.mxu0
      %v388 = vunpack.c.l.b16 %v263
      %v389 = vpack.c.b16 %v388, %v388
      %390 = vrot.lane.b32.xlu0 %v389, 120
      %v391 = vpop.permute.xlu0 %390
      %392 = vrot.lane.b32.xlu0 %v337, 120
      %v393 = vpop.permute.xlu0 %392
      %v395 = vsel %vm273, %v391, 0
      %v398 = vsel %vm273, %v393, 0
      %400 = vmatprep.subr.bf16.mxu0 0
      %401 = vmatpush1.bf16.xpose.msra.mxu0 0
      %402 = vmatprep.subr.bf16.mxu0 0
      %403 = vmatpush1.bf16.xpose.msra.mxu0 0
      %404 = vmatprep.subr.bf16.mxu0 0
      %405 = vmatpush1.bf16.xpose.msra.mxu0 0
      %406 = vmatprep.subr.bf16.mxu0 0
      %407 = vmatpush1.bf16.xpose.msra.mxu0 0
      %408 = vmatprep.subr.bf16.mxu0 0
      %409 = vmatpush1.bf16.xpose.msra.mxu0 0
      %410 = vmatprep.subr.bf16.mxu0 0
      %411 = vmatpush1.bf16.xpose.msra.mxu0 0
      %412 = vmatprep.subr.bf16.mxu0 0
      %413 = vmatpush1.bf16.xpose.msra.mxu0 0
      %414 = vmatprep.subr.bf16.mxu0 0
      %415 = vmatpush1.bf16.xpose.msra.mxu0 %v398
      %416 = vmatprep.subr.bf16.mxu0 0
      %417 = vmatpush2.bf16.xpose.msra.mxu0 0
      %418 = vmatprep.subr.bf16.mxu0 0
      %419 = vmatpush2.bf16.xpose.msra.mxu0 0
      %420 = vmatprep.subr.bf16.mxu0 0
      %421 = vmatpush2.bf16.xpose.msra.mxu0 0
      %422 = vmatprep.subr.bf16.mxu0 0
      %423 = vmatpush2.bf16.xpose.msra.mxu0 0
      %424 = vmatprep.subr.bf16.mxu0 0
      %425 = vmatpush2.bf16.xpose.msra.mxu0 0
      %426 = vmatprep.subr.bf16.mxu0 0
      %427 = vmatpush2.bf16.xpose.msra.mxu0 0
      %428 = vmatprep.subr.bf16.mxu0 0
      %429 = vmatpush2.bf16.xpose.msra.mxu0 0
      %430 = vmatprep.subr.bf16.mxu0 0
      %431 = vmatpush2.bf16.xpose.msra.mxu0 0
      %432 = vmatprep.mubr.bf16.mxu0 0
      %433 = vmatmul.mubr.bf16.gmra.mxu0 %v395
      %v434 = vpop.f32.mrf.mxu0
      %v435 = vadd.f32 0.0, %v434
      %v436 = vpop.f32.mrf.mxu0
      %v437 = vpop.f32.mrf.mxu0
      %v438 = vpop.f32.mrf.mxu0
      %439 = vdwg.mxu0
      %v440 = vmul.f32 %v435, 0.35355338
      %v441 = vsel %vm272, %v440, -1e+30
      %v442 = vsel %vm273, %v441, -inf
      %443 = vmax.xlane.f32.xlu0 %v442
      %v444 = vpop.xlane.xlu0 %443
      %v445 = vsub.f32 %v441, %v444
      %v446 = vmul.f32 %v445, 1.442695
      %v447 = vpow.pop %v446
      %v448 = vsel %vm273, %v447, 0.0
      %449 = vadd.xlane.f32.xlu0 %v448
      %v450 = vpop.xlane.xlu0 %449
      %v451 = vrcp.pop %v450
      %v452 = vmul.f32 %v447, %v451
      %v453 = vsel %vm272, %v452, 0.0
      %v454 = vpack.c.bf16 %v453, %v453
      %455 = vrot.lane.b32.xlu0 %v337, 88
      %v456 = vpop.permute.xlu0 %455
      %v458 = vsel %vm273, %v454, 0
      %v461 = vsel %vm343, %v456, 0
      %463 = vmatprep.subr.bf16.mxu0 0
      %464 = vmatpush1.bf16.msra.mxu0 0
      %465 = vmatprep.subr.bf16.mxu0 0
      %466 = vmatpush1.bf16.msra.mxu0 0
      %467 = vmatprep.subr.bf16.mxu0 0
      %468 = vmatpush1.bf16.msra.mxu0 0
      %469 = vmatprep.subr.bf16.mxu0 0
      %470 = vmatpush1.bf16.msra.mxu0 0
      %471 = vmatprep.subr.bf16.mxu0 0
      %472 = vmatpush1.bf16.msra.mxu0 0
      %473 = vmatprep.subr.bf16.mxu0 0
      %474 = vmatpush1.bf16.msra.mxu0 0
      %475 = vmatprep.subr.bf16.mxu0 0
      %476 = vmatpush1.bf16.msra.mxu0 0
      %477 = vmatprep.subr.bf16.mxu0 0
      %478 = vmatpush1.bf16.msra.mxu0 %v461
      %479 = vmatprep.subr.bf16.mxu0 0
      %480 = vmatpush2.bf16.msra.mxu0 0
      %481 = vmatprep.subr.bf16.mxu0 0
      %482 = vmatpush2.bf16.msra.mxu0 0
      %483 = vmatprep.subr.bf16.mxu0 0
      %484 = vmatpush2.bf16.msra.mxu0 0
      %485 = vmatprep.subr.bf16.mxu0 0
      %486 = vmatpush2.bf16.msra.mxu0 0
      %487 = vmatprep.subr.bf16.mxu0 0
      %488 = vmatpush2.bf16.msra.mxu0 0
      %489 = vmatprep.subr.bf16.mxu0 0
      %490 = vmatpush2.bf16.msra.mxu0 0
      %491 = vmatprep.subr.bf16.mxu0 0
      %492 = vmatpush2.bf16.msra.mxu0 0
      %493 = vmatprep.subr.bf16.mxu0 0
      %494 = vmatpush2.bf16.msra.mxu0 0
      %495 = vmatprep.mubr.bf16.mxu0 0
      %496 = vmatmul.mubr.bf16.gmra.mxu0 %v458
      %v497 = vpop.f32.mrf.mxu0
      %v498 = vadd.f32 0.0, %v497
      %v499 = vpop.f32.mrf.mxu0
      %v500 = vpop.f32.mrf.mxu0
      %v501 = vpop.f32.mrf.mxu0
      %502 = vdwg.mxu0
      %503 = vrot.lane.b32.xlu0 %v389, 112
      %v504 = vpop.permute.xlu0 %503
      %505 = vrot.lane.b32.xlu0 %v337, 112
      %v506 = vpop.permute.xlu0 %505
      %v508 = vsel %vm273, %v504, 0
      %v511 = vsel %vm273, %v506, 0
      %513 = vmatprep.subr.bf16.mxu0 0
      %514 = vmatpush1.bf16.xpose.msra.mxu0 0
      %515 = vmatprep.subr.bf16.mxu0 0
      %516 = vmatpush1.bf16.xpose.msra.mxu0 0
      %517 = vmatprep.subr.bf16.mxu0 0
      %518 = vmatpush1.bf16.xpose.msra.mxu0 0
      %519 = vmatprep.subr.bf16.mxu0 0
      %520 = vmatpush1.bf16.xpose.msra.mxu0 0
      %521 = vmatprep.subr.bf16.mxu0 0
      %522 = vmatpush1.bf16.xpose.msra.mxu0 0
      %523 = vmatprep.subr.bf16.mxu0 0
      %524 = vmatpush1.bf16.xpose.msra.mxu0 0
      %525 = vmatprep.subr.bf16.mxu0 0
      %526 = vmatpush1.bf16.xpose.msra.mxu0 0
      %527 = vmatprep.subr.bf16.mxu0 0
      %528 = vmatpush1.bf16.xpose.msra.mxu0 %v511
      %529 = vmatprep.subr.bf16.mxu0 0
      %530 = vmatpush2.bf16.xpose.msra.mxu0 0
      %531 = vmatprep.subr.bf16.mxu0 0
      %532 = vmatpush2.bf16.xpose.msra.mxu0 0
      %533 = vmatprep.subr.bf16.mxu0 0
      %534 = vmatpush2.bf16.xpose.msra.mxu0 0
      %535 = vmatprep.subr.bf16.mxu0 0
      %536 = vmatpush2.bf16.xpose.msra.mxu0 0
      %537 = vmatprep.subr.bf16.mxu0 0
      %538 = vmatpush2.bf16.xpose.msra.mxu0 0
      %539 = vmatprep.subr.bf16.mxu0 0
      %540 = vmatpush2.bf16.xpose.msra.mxu0 0
      %541 = vmatprep.subr.bf16.mxu0 0
      %542 = vmatpush2.bf16.xpose.msra.mxu0 0
      %543 = vmatprep.subr.bf16.mxu0 0
      %544 = vmatpush2.bf16.xpose.msra.mxu0 0
      %545 = vmatprep.mubr.bf16.mxu0 0
      %546 = vmatmul.mubr.bf16.gmra.mxu0 %v508
      %v547 = vpop.f32.mrf.mxu0
      %v548 = vadd.f32 0.0, %v547
      %v549 = vpop.f32.mrf.mxu0
      %v550 = vpop.f32.mrf.mxu0
      %v551 = vpop.f32.mrf.mxu0
      %552 = vdwg.mxu0
      %v553 = vmul.f32 %v548, 0.35355338
      %v554 = vsel %vm272, %v553, -1e+30
      %v555 = vsel %vm273, %v554, -inf
      %556 = vmax.xlane.f32.xlu0 %v555
      %v557 = vpop.xlane.xlu0 %556
      %v558 = vsub.f32 %v554, %v557
      %v559 = vmul.f32 %v558, 1.442695
      %v560 = vpow.pop %v559
      %v561 = vsel %vm273, %v560, 0.0
      %562 = vadd.xlane.f32.xlu0 %v561
      %v563 = vpop.xlane.xlu0 %562
      %v564 = vrcp.pop %v563
      %v565 = vmul.f32 %v560, %v564
      %v566 = vsel %vm272, %v565, 0.0
      %v567 = vpack.c.bf16 %v566, %v566
      %568 = vrot.lane.b32.xlu0 %v337, 80
      %v569 = vpop.permute.xlu0 %568
      %v571 = vsel %vm273, %v567, 0
      %v574 = vsel %vm343, %v569, 0
      %576 = vmatprep.subr.bf16.mxu0 0
      %577 = vmatpush1.bf16.msra.mxu0 0
      %578 = vmatprep.subr.bf16.mxu0 0
      %579 = vmatpush1.bf16.msra.mxu0 0
      %580 = vmatprep.subr.bf16.mxu0 0
      %581 = vmatpush1.bf16.msra.mxu0 0
      %582 = vmatprep.subr.bf16.mxu0 0
      %583 = vmatpush1.bf16.msra.mxu0 0
      %584 = vmatprep.subr.bf16.mxu0 0
      %585 = vmatpush1.bf16.msra.mxu0 0
      %586 = vmatprep.subr.bf16.mxu0 0
      %587 = vmatpush1.bf16.msra.mxu0 0
      %588 = vmatprep.subr.bf16.mxu0 0
      %589 = vmatpush1.bf16.msra.mxu0 0
      %590 = vmatprep.subr.bf16.mxu0 0
      %591 = vmatpush1.bf16.msra.mxu0 %v574
      %592 = vmatprep.subr.bf16.mxu0 0
      %593 = vmatpush2.bf16.msra.mxu0 0
      %594 = vmatprep.subr.bf16.mxu0 0
      %595 = vmatpush2.bf16.msra.mxu0 0
      %596 = vmatprep.subr.bf16.mxu0 0
      %597 = vmatpush2.bf16.msra.mxu0 0
      %598 = vmatprep.subr.bf16.mxu0 0
      %599 = vmatpush2.bf16.msra.mxu0 0
      %600 = vmatprep.subr.bf16.mxu0 0
      %601 = vmatpush2.bf16.msra.mxu0 0
      %602 = vmatprep.subr.bf16.mxu0 0
      %603 = vmatpush2.bf16.msra.mxu0 0
      %604 = vmatprep.subr.bf16.mxu0 0
      %605 = vmatpush2.bf16.msra.mxu0 0
      %606 = vmatprep.subr.bf16.mxu0 0
      %607 = vmatpush2.bf16.msra.mxu0 0
      %608 = vmatprep.mubr.bf16.mxu0 0
      %609 = vmatmul.mubr.bf16.gmra.mxu0 %v571
      %v610 = vpop.f32.mrf.mxu0
      %v611 = vadd.f32 0.0, %v610
      %v612 = vpop.f32.mrf.mxu0
      %v613 = vpop.f32.mrf.mxu0
      %v614 = vpop.f32.mrf.mxu0
      %615 = vdwg.mxu0
      %616 = vrot.lane.b32.xlu0 %v389, 104
      %v617 = vpop.permute.xlu0 %616
      %618 = vrot.lane.b32.xlu0 %v337, 104
      %v619 = vpop.permute.xlu0 %618
      %v621 = vsel %vm273, %v617, 0
      %v624 = vsel %vm273, %v619, 0
      %626 = vmatprep.subr.bf16.mxu0 0
      %627 = vmatpush1.bf16.xpose.msra.mxu0 0
      %628 = vmatprep.subr.bf16.mxu0 0
      %629 = vmatpush1.bf16.xpose.msra.mxu0 0
      %630 = vmatprep.subr.bf16.mxu0 0
      %631 = vmatpush1.bf16.xpose.msra.mxu0 0
      %632 = vmatprep.subr.bf16.mxu0 0
      %633 = vmatpush1.bf16.xpose.msra.mxu0 0
      %634 = vmatprep.subr.bf16.mxu0 0
      %635 = vmatpush1.bf16.xpose.msra.mxu0 0
      %636 = vmatprep.subr.bf16.mxu0 0
      %637 = vmatpush1.bf16.xpose.msra.mxu0 0
      %638 = vmatprep.subr.bf16.mxu0 0
      %639 = vmatpush1.bf16.xpose.msra.mxu0 0
      %640 = vmatprep.subr.bf16.mxu0 0
      %641 = vmatpush1.bf16.xpose.msra.mxu0 %v624
      %642 = vmatprep.subr.bf16.mxu0 0
      %643 = vmatpush2.bf16.xpose.msra.mxu0 0
      %644 = vmatprep.subr.bf16.mxu0 0
      %645 = vmatpush2.bf16.xpose.msra.mxu0 0
      %646 = vmatprep.subr.bf16.mxu0 0
      %647 = vmatpush2.bf16.xpose.msra.mxu0 0
      %648 = vmatprep.subr.bf16.mxu0 0
      %649 = vmatpush2.bf16.xpose.msra.mxu0 0
      %650 = vmatprep.subr.bf16.mxu0 0
      %651 = vmatpush2.bf16.xpose.msra.mxu0 0
      %652 = vmatprep.subr.bf16.mxu0 0
      %653 = vmatpush2.bf16.xpose.msra.mxu0 0
      %654 = vmatprep.subr.bf16.mxu0 0
      %655 = vmatpush2.bf16.xpose.msra.mxu0 0
      %656 = vmatprep.subr.bf16.mxu0 0
      %657 = vmatpush2.bf16.xpose.msra.mxu0 0
      %658 = vmatprep.mubr.bf16.mxu0 0
      %659 = vmatmul.mubr.bf16.gmra.mxu0 %v621
      %v660 = vpop.f32.mrf.mxu0
      %v661 = vadd.f32 0.0, %v660
      %v662 = vpop.f32.mrf.mxu0
      %v663 = vpop.f32.mrf.mxu0
      %v664 = vpop.f32.mrf.mxu0
      %665 = vdwg.mxu0
      %v666 = vmul.f32 %v661, 0.35355338
      %v667 = vsel %vm272, %v666, -1e+30
      %v668 = vsel %vm273, %v667, -inf
      %669 = vmax.xlane.f32.xlu0 %v668
      %v670 = vpop.xlane.xlu0 %669
      %v671 = vsub.f32 %v667, %v670
      %v672 = vmul.f32 %v671, 1.442695
      %v673 = vpow.pop %v672
      %v674 = vsel %vm273, %v673, 0.0
      %675 = vadd.xlane.f32.xlu0 %v674
      %v676 = vpop.xlane.xlu0 %675
      %v677 = vrcp.pop %v676
      %v678 = vmul.f32 %v673, %v677
      %v679 = vsel %vm272, %v678, 0.0
      %v680 = vpack.c.bf16 %v679, %v679
      %681 = vrot.lane.b32.xlu0 %v337, 72
      %v682 = vpop.permute.xlu0 %681
      %v684 = vsel %vm273, %v680, 0
      %v687 = vsel %vm343, %v682, 0
      %689 = vmatprep.subr.bf16.mxu0 0
      %690 = vmatpush1.bf16.msra.mxu0 0
      %691 = vmatprep.subr.bf16.mxu0 0
      %692 = vmatpush1.bf16.msra.mxu0 0
      %693 = vmatprep.subr.bf16.mxu0 0
      %694 = vmatpush1.bf16.msra.mxu0 0
      %695 = vmatprep.subr.bf16.mxu0 0
      %696 = vmatpush1.bf16.msra.mxu0 0
      %697 = vmatprep.subr.bf16.mxu0 0
      %698 = vmatpush1.bf16.msra.mxu0 0
      %699 = vmatprep.subr.bf16.mxu0 0
      %700 = vmatpush1.bf16.msra.mxu0 0
      %701 = vmatprep.subr.bf16.mxu0 0
      %702 = vmatpush1.bf16.msra.mxu0 0
      %703 = vmatprep.subr.bf16.mxu0 0
      %704 = vmatpush1.bf16.msra.mxu0 %v687
      %705 = vmatprep.subr.bf16.mxu0 0
      %706 = vmatpush2.bf16.msra.mxu0 0
      %707 = vmatprep.subr.bf16.mxu0 0
      %708 = vmatpush2.bf16.msra.mxu0 0
      %709 = vmatprep.subr.bf16.mxu0 0
      %710 = vmatpush2.bf16.msra.mxu0 0
      %711 = vmatprep.subr.bf16.mxu0 0
      %712 = vmatpush2.bf16.msra.mxu0 0
      %713 = vmatprep.subr.bf16.mxu0 0
      %714 = vmatpush2.bf16.msra.mxu0 0
      %715 = vmatprep.subr.bf16.mxu0 0
      %716 = vmatpush2.bf16.msra.mxu0 0
      %717 = vmatprep.subr.bf16.mxu0 0
      %718 = vmatpush2.bf16.msra.mxu0 0
      %719 = vmatprep.subr.bf16.mxu0 0
      %720 = vmatpush2.bf16.msra.mxu0 0
      %721 = vmatprep.mubr.bf16.mxu0 0
      %722 = vmatmul.mubr.bf16.gmra.mxu0 %v684
      %v723 = vpop.f32.mrf.mxu0
      %v724 = vadd.f32 0.0, %v723
      %v725 = vpop.f32.mrf.mxu0
      %v726 = vpop.f32.mrf.mxu0
      %v727 = vpop.f32.mrf.mxu0
      %728 = vdwg.mxu0
      %730 = vrot.lane.b32.xlu0 %v498, 8
      %v731 = vpop.permute.xlu0 %730
      %734 = vrot.lane.b32.xlu0 %v611, 16
      %v735 = vpop.permute.xlu0 %734
      %738 = vrot.lane.b32.xlu0 %v724, 24
      %v739 = vpop.permute.xlu0 %738
      %v741 = vsel %vm273, %v382, %v731
      %vm742 = vcmask 130048
      %v743 = vsel %vm742, %v741, %v735
      %vm744 = vcmask 195584
      %v745 = vsel %vm744, %v743, %v739
      %v746 = vpack.c.bf16 %v745, %v745
      %v747 = vld [vmem:[%s3] sm:$0xf]
      %v748 = vld [vmem:[%s3 + $0x4] sm:$0xf]
      %v749 = vld [vmem:[%s3 + $0x8] sm:$0xf]
      %v750 = vld [vmem:[%s3 + $0xc] sm:$0xf]
      %v751 = vld [vmem:[%s4] sm:$0x1]
      %v753 = vlaneseq
      %v754 = vshrl.u32 %v753, 7
      %v755 = vsub.s32 0, %v754
      %v756 = vrot.slane %v751, %v755
      %v762 = vunpack.c.l.b16 %v747
      %v763 = vunpack.c.l.b16 %v748
      %v764 = vunpack.c.l.b16 %v749
      %v765 = vunpack.c.l.b16 %v750
      %v766 = vpack.c.b16 %v763, %v762
      %v767 = vpack.c.b16 %v765, %v764
      %vm770 = vcmask 261120
      %v772 = vsel %vm770, %v746, 0
      %774 = vmatprep.subr.bf16.mxu0 0
      %775 = vmatpush1.bf16.msra.mxu0 0
      %776 = vmatprep.subr.bf16.mxu0 0
      %777 = vmatpush1.bf16.msra.mxu0 0
      %778 = vmatprep.subr.bf16.mxu0 0
      %779 = vmatpush1.bf16.msra.mxu0 0
      %780 = vmatprep.subr.bf16.mxu0 0
      %781 = vmatpush1.bf16.msra.mxu0 0
      %782 = vmatprep.subr.bf16.mxu0 0
      %783 = vmatpush1.bf16.msra.mxu0 0
      %784 = vmatprep.subr.bf16.mxu0 0
      %785 = vmatpush1.bf16.msra.mxu0 0
      %786 = vmatprep.subr.bf16.mxu0 0
      %787 = vmatpush1.bf16.msra.mxu0 %v767
      %788 = vmatprep.subr.bf16.mxu0 0
      %789 = vmatpush1.bf16.msra.mxu0 %v766
      %790 = vmatprep.subr.bf16.mxu0 0
      %791 = vmatpush2.bf16.msra.mxu0 0
      %792 = vmatprep.subr.bf16.mxu0 0
      %793 = vmatpush2.bf16.msra.mxu0 0
      %794 = vmatprep.subr.bf16.mxu0 0
      %795 = vmatpush2.bf16.msra.mxu0 0
      %796 = vmatprep.subr.bf16.mxu0 0
      %797 = vmatpush2.bf16.msra.mxu0 0
      %798 = vmatprep.subr.bf16.mxu0 0
      %799 = vmatpush2.bf16.msra.mxu0 0
      %800 = vmatprep.subr.bf16.mxu0 0
      %801 = vmatpush2.bf16.msra.mxu0 0
      %802 = vmatprep.subr.bf16.mxu0 0
      %803 = vmatpush2.bf16.msra.mxu0 0
      %804 = vmatprep.subr.bf16.mxu0 0
      %805 = vmatpush2.bf16.msra.mxu0 0
      %806 = vmatprep.mubr.bf16.mxu0 0
      %807 = vmatmul.mubr.bf16.gmra.mxu0 %v772
      %v808 = vpop.f32.mrf.mxu0
      %v809 = vadd.f32 %v756, %v808
      %v810 = vpop.f32.mrf.mxu0
      %v811 = vpop.f32.mrf.mxu0
      %v812 = vpop.f32.mrf.mxu0
      %813 = vdwg.mxu0
      %v814 = vld [vmem:[%s256] sm:$0xff]
      %v815 = vadd.f32 %v814, %v809
      %816 = vst.msk [vmem:[%s260] sm:$0xff] %vm770, %v815
      %p817 = scmp.lt.s32.totalorder %s23, 1
      %s818 = scalar_select %p817, %s23, 1
      %s819 = smul.addr %s818, 8
      %s820 = scalar_lea.vmem %s6, %s819
      // Predicated region
      $region41: #{bi_transformer_decoder_forward.21} parent=39 // pred_check
        %p821 = pneg %p161
      $region42: #{bi_transformer_decoder_forward.21} parent=39 // pred_check_branch
        %823 = sbr.rel (%p821) target = $region44
      $region43: #{bi_transformer_decoder_forward.21} parent=39 // pred_region
        _
      $region44: #{bi_transformer_decoder_forward.21} parent=39 // pred_fallthru
        _
    $region40: #{bi_transformer_decoder_forward.21} parent=5 // pred_fallthru
      _
    %p824 = scmp.le.s32.totalorder 2, %s18
    // Predicated region
    $region45: #{bi_transformer_decoder_forward.21} parent=5 // pred_check
      %p825 = pneg %p824
    $region46: #{bi_transformer_decoder_forward.21} parent=5 // pred_check_branch
      %827 = sbr.rel (%p825) target = $region48
    $region47: #{bi_transformer_decoder_forward.21} parent=5 // pred_region
      %s828 = ssub.s32 %s18, 2
      // Predicated region
      $region49: #{bi_transformer_decoder_forward.21} parent=47 // pred_check
        %p829 = pneg %p167
      $region50: #{bi_transformer_decoder_forward.21} parent=47 // pred_check_branch
        %831 = sbr.rel (%p829) target = $region52
      $region51: #{bi_transformer_decoder_forward.21} parent=47 // pred_region
        %p832 = scmp.lt.s32.totalorder %s24, 1
        %s833 = scalar_select %p832, %s24, 1
        %s834 = smul.addr %s833, 8
        %s835 = scalar_lea.vmem %s6, %s834
      $region52: #{bi_transformer_decoder_forward.21} parent=47 // pred_fallthru
        _
    $region48: #{bi_transformer_decoder_forward.21} parent=5 // pred_fallthru
      _
  $region6: #{bi_transformer_decoder_forward.21} parent=0 // loop_footer
    %s22 = sadd.s32 1, %s18
  $region7: #{bi_transformer_decoder_forward.21} parent=0 // loop_footer_branch
    %17 = sbr.rel target = $region3
  $region8: #{bi_transformer_decoder_forward.21} parent=0 // loop_exit
    _

// kernel: bi_transformer_decoder_forward.25
$region0: #{bi_transformer_decoder_forward.25}
  #allocation0 [shape = 'u32[]', space=smem, size = 0x4, offset = 0x4, fixed_abs, tag = 'smem constant byte address 0x4 - core index']
  #allocation1 [shape = 'u32[144,128]{1,0:T(1,128)}', space=vmem, size = 0x12000, scoped, tag = 'internal scratch']
  %s0 = inlined_call_operand.vmem [shape: f32[16,32], index: 0, kind: input, shape index: {}]
  %s1 = inlined_call_operand.vmem [shape: f32[1,32], index: 1, kind: input, shape index: {}]
  %s2 = inlined_call_operand.vmem [shape: f32[1,32], index: 2, kind: input, shape index: {}]
  %s3 = inlined_call_operand.vmem [shape: bf16[32,64], index: 3, kind: input, shape index: {}]
  %s4 = inlined_call_operand.vmem [shape: f32[1,64], index: 4, kind: input, shape index: {}]
  %s5 = inlined_call_operand.vmem [shape: bf16[64,32], index: 5, kind: input, shape index: {}]
  %s6 = inlined_call_operand.vmem [shape: f32[1,32], index: 6, kind: input, shape index: {}]
  %s7 = inlined_call_operand.vmem [shape: f32[16,32], index: 7, kind: output, shape index: {}]
  %s8 = sld [smem:[#allocation0]]
  $region38: #{bi_transformer_decoder_forward.25} parent=0
    _
  %s10 = ssub.s32 1, %s8
  %s11 = scalar_select 0, %s10, %s8
  // Predicated region
  $region2: #{bi_transformer_decoder_forward.25} parent=0 // pred_check
    _
  $region3: #{bi_transformer_decoder_forward.25} parent=0 // pred_check_branch
    %13 = sbr.rel (0) target = $region5
  $region4: #{bi_transformer_decoder_forward.25} parent=0 // pred_region
    _
  $region5: #{bi_transformer_decoder_forward.25} parent=0 // pred_fallthru
    _
  // Predicated region
  $region6: #{bi_transformer_decoder_forward.25} parent=0 // pred_check
    _
  $region7: #{bi_transformer_decoder_forward.25} parent=0 // pred_check_branch
    %15 = sbr.rel (0) target = $region9
  $region8: #{bi_transformer_decoder_forward.25} parent=0 // pred_region
    _
  $region9: #{bi_transformer_decoder_forward.25} parent=0 // pred_fallthru
    _
  // Predicated region
  $region10: #{bi_transformer_decoder_forward.25} parent=0 // pred_check
    _
  $region11: #{bi_transformer_decoder_forward.25} parent=0 // pred_check_branch
    %17 = sbr.rel (0) target = $region13
  $region12: #{bi_transformer_decoder_forward.25} parent=0 // pred_region
    _
  $region13: #{bi_transformer_decoder_forward.25} parent=0 // pred_fallthru
    _
  // Predicated region
  $region14: #{bi_transformer_decoder_forward.25} parent=0 // pred_check
    _
  $region15: #{bi_transformer_decoder_forward.25} parent=0 // pred_check_branch
    %19 = sbr.rel (0) target = $region17
  $region16: #{bi_transformer_decoder_forward.25} parent=0 // pred_region
    _
  $region17: #{bi_transformer_decoder_forward.25} parent=0 // pred_fallthru
    _
  // Predicated region
  $region18: #{bi_transformer_decoder_forward.25} parent=0 // pred_check
    _
  $region19: #{bi_transformer_decoder_forward.25} parent=0 // pred_check_branch
    %21 = sbr.rel (0) target = $region21
  $region20: #{bi_transformer_decoder_forward.25} parent=0 // pred_region
    _
  $region21: #{bi_transformer_decoder_forward.25} parent=0 // pred_fallthru
    _
  // Predicated region
  $region22: #{bi_transformer_decoder_forward.25} parent=0 // pred_check
    _
  $region23: #{bi_transformer_decoder_forward.25} parent=0 // pred_check_branch
    %23 = sbr.rel (0) target = $region25
  $region24: #{bi_transformer_decoder_forward.25} parent=0 // pred_region
    _
  $region25: #{bi_transformer_decoder_forward.25} parent=0 // pred_fallthru
    _
  // Predicated region
  $region26: #{bi_transformer_decoder_forward.25} parent=0 // pred_check
    _
  $region27: #{bi_transformer_decoder_forward.25} parent=0 // pred_check_branch
    %25 = sbr.rel (0) target = $region29
  $region28: #{bi_transformer_decoder_forward.25} parent=0 // pred_region
    _
  $region29: #{bi_transformer_decoder_forward.25} parent=0 // pred_fallthru
    _
  %v27 = vld [vmem:[%s0] sm:$0xff]
  %v28 = vld [vmem:[%s0 + $0x8] sm:$0xff]
  %v29 = vld [vmem:[%s1] sm:$0x1]
  %v30 = vld [vmem:[%s2] sm:$0x1]
  %vm31 = vcmask 261120
  %v32 = vsel %vm31, %v27, 0.0
  %33 = vadd.xlane.f32.xlu0 %v32
  %v34 = vpop.xlane.xlu0 %33
  %v35 = vsel %vm31, %v28, 0.0
  %36 = vadd.xlane.f32.xlu0 %v35
  %v37 = vpop.xlane.xlu0 %36
  %v38 = vrcp.pop 32.0
  %v39 = vmul.f32 %v34, %v38
  %v40 = vmul.f32 %v37, %v38
  %v41 = vsub.f32 %v27, %v39
  %v42 = vsub.f32 %v28, %v40
  %v43 = vmul.f32 %v41, %v41
  %v44 = vmul.f32 %v42, %v42
  %v45 = vsel %vm31, %v43, 0.0
  %46 = vadd.xlane.f32.xlu0 %v45
  %v47 = vpop.xlane.xlu0 %46
  %v48 = vsel %vm31, %v44, 0.0
  %49 = vadd.xlane.f32.xlu0 %v48
  %v50 = vpop.xlane.xlu0 %49
  %v51 = vmul.f32 %v47, %v38
  %v52 = vmul.f32 %v50, %v38
  %v53 = vadd.f32 %v51, 1e-05
  %v54 = vadd.f32 %v52, 1e-05
  %v55 = vrsqrt.pop %v53
  %v56 = vrsqrt.pop %v54
  %v57 = vmul.f32 %v41, %v55
  %v58 = vmul.f32 %v42, %v56
  %v60 = vlaneseq
  %v61 = vshrl.u32 %v60, 7
  %v62 = vsub.s32 0, %v61
  %v63 = vrot.slane %v29, %v62
  %v65 = vmul.f32 %v57, %v63
  %v66 = vmul.f32 %v58, %v63
  %v68 = vlaneseq
  %v69 = vshrl.u32 %v68, 7
  %v70 = vsub.s32 0, %v69
  %v71 = vrot.slane %v30, %v70
  %v73 = vadd.f32 %v65, %v71
  %v74 = vadd.f32 %v66, %v71
  %v75 = vpack.c.bf16 %v74, %v73
  %v76 = vld [vmem:[%s3] sm:$0xf]
  %v77 = vld [vmem:[%s3 + $0x4] sm:$0xf]
  %v78 = vld [vmem:[%s3 + $0x8] sm:$0xf]
  %v79 = vld [vmem:[%s3 + $0xc] sm:$0xf]
  %v80 = vld [vmem:[%s4] sm:$0x1]
  %v82 = vlaneseq
  %v83 = vshrl.u32 %v82, 7
  %v84 = vsub.s32 0, %v83
  %v85 = vrot.slane %v80, %v84
  %v91 = vunpack.c.l.b16 %v76
  %v92 = vunpack.c.l.b16 %v77
  %v93 = vunpack.c.l.b16 %v78
  %v94 = vunpack.c.l.b16 %v79
  %v95 = vpack.c.b16 %v92, %v91
  %v96 = vpack.c.b16 %v94, %v93
  %v100 = vsel %vm31, %v75, 0
  %102 = vmatprep.subr.bf16.mxu0 0
  %103 = vmatpush1.bf16.msra.mxu0 0
  %104 = vmatprep.subr.bf16.mxu0 0
  %105 = vmatpush1.bf16.msra.mxu0 0
  %106 = vmatprep.subr.bf16.mxu0 0
  %107 = vmatpush1.bf16.msra.mxu0 0
  %108 = vmatprep.subr.bf16.mxu0 0
  %109 = vmatpush1.bf16.msra.mxu0 0
  %110 = vmatprep.subr.bf16.mxu0 0
  %111 = vmatpush1.bf16.msra.mxu0 0
  %112 = vmatprep.subr.bf16.mxu0 0
  %113 = vmatpush1.bf16.msra.mxu0 0
  %114 = vmatprep.subr.bf16.mxu0 0
  %115 = vmatpush1.bf16.msra.mxu0 %v96
  %116 = vmatprep.subr.bf16.mxu0 0
  %117 = vmatpush1.bf16.msra.mxu0 %v95
  %118 = vmatprep.subr.bf16.mxu0 0
  %119 = vmatpush2.bf16.msra.mxu0 0
  %120 = vmatprep.subr.bf16.mxu0 0
  %121 = vmatpush2.bf16.msra.mxu0 0
  %122 = vmatprep.subr.bf16.mxu0 0
  %123 = vmatpush2.bf16.msra.mxu0 0
  %124 = vmatprep.subr.bf16.mxu0 0
  %125 = vmatpush2.bf16.msra.mxu0 0
  %126 = vmatprep.subr.bf16.mxu0 0
  %127 = vmatpush2.bf16.msra.mxu0 0
  %128 = vmatprep.subr.bf16.mxu0 0
  %129 = vmatpush2.bf16.msra.mxu0 0
  %130 = vmatprep.subr.bf16.mxu0 0
  %131 = vmatpush2.bf16.msra.mxu0 0
  %132 = vmatprep.subr.bf16.mxu0 0
  %133 = vmatpush2.bf16.msra.mxu0 0
  %134 = vmatprep.mubr.bf16.mxu0 0
  %135 = vmatmul.mubr.bf16.gmra.mxu0 %v100
  %v136 = vpop.f32.mrf.mxu0
  %v137 = vadd.f32 %v85, %v136
  %v138 = vpop.f32.mrf.mxu0
  %v139 = vpop.f32.mrf.mxu0
  %v140 = vadd.f32 %v85, %v139
  %v141 = vpop.f32.mrf.mxu0
  %142 = vdwg.mxu0
  %v143 = vmax.f32 %v137, 0.0
  %v144 = vmax.f32 %v140, 0.0
  %v145 = vpack.c.bf16 %v144, %v143
  %v146 = vld [vmem:[%s5] sm:$0xf]
  %v147 = vld [vmem:[%s5 + $0x4] sm:$0xf]
  %v148 = vld [vmem:[%s5 + $0x8] sm:$0xf]
  %v149 = vld [vmem:[%s5 + $0xc] sm:$0xf]
  %v150 = vld [vmem:[%s5 + $0x10] sm:$0xf]
  %v151 = vld [vmem:[%s5 + $0x14] sm:$0xf]
  %v152 = vld [vmem:[%s5 + $0x18] sm:$0xf]
  %v153 = vld [vmem:[%s5 + $0x1c] sm:$0xf]
  %v154 = vld [vmem:[%s6] sm:$0x1]
  %v156 = vlaneseq
  %v157 = vshrl.u32 %v156, 7
  %v158 = vsub.s32 0, %v157
  %v159 = vrot.slane %v154, %v158
  %v169 = vunpack.c.l.b16 %v146
  %v170 = vunpack.c.l.b16 %v147
  %v171 = vunpack.c.l.b16 %v148
  %v172 = vunpack.c.l.b16 %v149
  %v173 = vunpack.c.l.b16 %v150
  %v174 = vunpack.c.l.b16 %v151
  %v175 = vunpack.c.l.b16 %v152
  %v176 = vunpack.c.l.b16 %v153
  %v177 = vpack.c.b16 %v170, %v169
  %v178 = vpack.c.b16 %v172, %v171
  %v179 = vpack.c.b16 %v174, %v173
  %v180 = vpack.c.b16 %v176, %v175
  %vm185 = vcmask 523264
  %v187 = vsel %vm185, %v145, 0
  %189 = vmatprep.subr.bf16.mxu0 0
  %190 = vmatpush1.bf16.msra.mxu0 0
  %191 = vmatprep.subr.bf16.mxu0 0
  %192 = vmatpush1.bf16.msra.mxu0 0
  %193 = vmatprep.subr.bf16.mxu0 0
  %194 = vmatpush1.bf16.msra.mxu0 0
  %195 = vmatprep.subr.bf16.mxu0 0
  %196 = vmatpush1.bf16.msra.mxu0 0
  %197 = vmatprep.subr.bf16.mxu0 0
  %198 = vmatpush1.bf16.msra.mxu0 %v180
  %199 = vmatprep.subr.bf16.mxu0 0
  %200 = vmatpush1.bf16.msra.mxu0 %v179
  %201 = vmatprep.subr.bf16.mxu0 0
  %202 = vmatpush1.bf16.msra.mxu0 %v178
  %203 = vmatprep.subr.bf16.mxu0 0
  %204 = vmatpush1.bf16.msra.mxu0 %v177
  %205 = vmatprep.subr.bf16.mxu0 0
  %206 = vmatpush2.bf16.msra.mxu0 0
  %207 = vmatprep.subr.bf16.mxu0 0
  %208 = vmatpush2.bf16.msra.mxu0 0
  %209 = vmatprep.subr.bf16.mxu0 0
  %210 = vmatpush2.bf16.msra.mxu0 0
  %211 = vmatprep.subr.bf16.mxu0 0
  %212 = vmatpush2.bf16.msra.mxu0 0
  %213 = vmatprep.subr.bf16.mxu0 0
  %214 = vmatpush2.bf16.msra.mxu0 0
  %215 = vmatprep.subr.bf16.mxu0 0
  %216 = vmatpush2.bf16.msra.mxu0 0
  %217 = vmatprep.subr.bf16.mxu0 0
  %218 = vmatpush2.bf16.msra.mxu0 0
  %219 = vmatprep.subr.bf16.mxu0 0
  %220 = vmatpush2.bf16.msra.mxu0 0
  %221 = vmatprep.mubr.bf16.mxu0 0
  %222 = vmatmul.mubr.bf16.gmra.mxu0 %v187
  %v223 = vpop.f32.mrf.mxu0
  %v224 = vadd.f32 %v159, %v223
  %v225 = vpop.f32.mrf.mxu0
  %v226 = vpop.f32.mrf.mxu0
  %v227 = vadd.f32 %v159, %v226
  %v228 = vpop.f32.mrf.mxu0
  %229 = vdwg.mxu0
  %v230 = vadd.f32 %v27, %v224
  %v231 = vadd.f32 %v28, %v227
  %232 = vst.msk [vmem:[%s7] sm:$0xff] %vm31, %v230
  %233 = vst.msk [vmem:[%s7 + $0x8] sm:$0xff] %vm31, %v231
  // Predicated region
  $region30: #{bi_transformer_decoder_forward.25} parent=0 // pred_check
    _
  $region31: #{bi_transformer_decoder_forward.25} parent=0 // pred_check_branch
    %235 = sbr.rel (0) target = $region33
  $region32: #{bi_transformer_decoder_forward.25} parent=0 // pred_region
    _
  $region33: #{bi_transformer_decoder_forward.25} parent=0 // pred_fallthru
    _
  // Predicated region
  $region34: #{bi_transformer_decoder_forward.25} parent=0 // pred_check
    _
  $region35: #{bi_transformer_decoder_forward.25} parent=0 // pred_check_branch
    %237 = sbr.rel (0) target = $region37
  $region36: #{bi_transformer_decoder_forward.25} parent=0 // pred_region
    _
  $region37: #{bi_transformer_decoder_forward.25} parent=0 // pred_fallthru
    _

// kernel: bi_transformer_decoder_forward.32
$region0: #{bi_transformer_decoder_forward.32}
  #allocation0 [shape = 'u32[]', space=smem, size = 0x4, offset = 0x4, fixed_abs, tag = 'smem constant byte address 0x4 - core index']
  #allocation1 [shape = 'u32[144,128]{1,0:T(1,128)}', space=vmem, size = 0x12000, scoped, tag = 'internal scratch']
  %s0 = inlined_call_operand.vmem [shape: f32[16,32], index: 0, kind: input, shape index: {}]
  %s1 = inlined_call_operand.vmem [shape: f32[1,32], index: 1, kind: input, shape index: {}]
  %s2 = inlined_call_operand.vmem [shape: f32[1,32], index: 2, kind: input, shape index: {}]
  %s3 = inlined_call_operand.vmem [shape: bf16[32,16], index: 3, kind: input, shape index: {}]
  %s4 = inlined_call_operand.vmem [shape: f32[1,16], index: 4, kind: input, shape index: {}]
  %s5 = inlined_call_operand.hbm [shape: f32[16,16], index: 5, kind: output, shape index: {}]
  %s6 = sld [smem:[#allocation0]]
  $region30: #{bi_transformer_decoder_forward.32} parent=0
    _
  %s8 = ssub.s32 1, %s6
  %s9 = scalar_select 0, %s8, %s6
  $region1: #{bi_transformer_decoder_forward.32} parent=0
    #allocation2 [shape = 'u8[8192]{0}', space=vmem, size = 0x2000, scoped, tag = 'output window, operand 0, single buffered']
    #allocation3 [shape = 's32[1]{0}', space=sflag, size = 0x4, scoped, tag = 'scoped memory for bi_transformer_decoder_forward.32']
    %10 = vsyncpa [#allocation3], 0
    // Predicated region
    $region2: #{bi_transformer_decoder_forward.32} parent=1 // pred_check
      _
    $region3: #{bi_transformer_decoder_forward.32} parent=1 // pred_check_branch
      %12 = sbr.rel (0) target = $region5
    $region4: #{bi_transformer_decoder_forward.32} parent=1 // pred_region
      _
    $region5: #{bi_transformer_decoder_forward.32} parent=1 // pred_fallthru
      _
    // Predicated region
    $region6: #{bi_transformer_decoder_forward.32} parent=1 // pred_check
      _
    $region7: #{bi_transformer_decoder_forward.32} parent=1 // pred_check_branch
      %14 = sbr.rel (0) target = $region9
    $region8: #{bi_transformer_decoder_forward.32} parent=1 // pred_region
      _
    $region9: #{bi_transformer_decoder_forward.32} parent=1 // pred_fallthru
      _
    // Predicated region
    $region10: #{bi_transformer_decoder_forward.32} parent=1 // pred_check
      _
    $region11: #{bi_transformer_decoder_forward.32} parent=1 // pred_check_branch
      %16 = sbr.rel (0) target = $region13
    $region12: #{bi_transformer_decoder_forward.32} parent=1 // pred_region
      _
    $region13: #{bi_transformer_decoder_forward.32} parent=1 // pred_fallthru
      _
    // Predicated region
    $region14: #{bi_transformer_decoder_forward.32} parent=1 // pred_check
      _
    $region15: #{bi_transformer_decoder_forward.32} parent=1 // pred_check_branch
      %18 = sbr.rel (0) target = $region17
    $region16: #{bi_transformer_decoder_forward.32} parent=1 // pred_region
      _
    $region17: #{bi_transformer_decoder_forward.32} parent=1 // pred_fallthru
      _
    // Predicated region
    $region18: #{bi_transformer_decoder_forward.32} parent=1 // pred_check
      _
    $region19: #{bi_transformer_decoder_forward.32} parent=1 // pred_check_branch
      %20 = sbr.rel (0) target = $region21
    $region20: #{bi_transformer_decoder_forward.32} parent=1 // pred_region
      _
    $region21: #{bi_transformer_decoder_forward.32} parent=1 // pred_fallthru
      _
    %v22 = vld [vmem:[%s0] sm:$0xff]
    %v23 = vld [vmem:[%s0 + $0x8] sm:$0xff]
    %v24 = vld [vmem:[%s1] sm:$0x1]
    %v25 = vld [vmem:[%s2] sm:$0x1]
    %vm26 = vcmask 261120
    %v27 = vsel %vm26, %v22, 0.0
    %28 = vadd.xlane.f32.xlu0 %v27
    %v29 = vpop.xlane.xlu0 %28
    %v30 = vsel %vm26, %v23, 0.0
    %31 = vadd.xlane.f32.xlu0 %v30
    %v32 = vpop.xlane.xlu0 %31
    %v33 = vrcp.pop 32.0
    %v34 = vmul.f32 %v29, %v33
    %v35 = vmul.f32 %v32, %v33
    %v36 = vsub.f32 %v22, %v34
    %v37 = vsub.f32 %v23, %v35
    %v38 = vmul.f32 %v36, %v36
    %v39 = vmul.f32 %v37, %v37
    %v40 = vsel %vm26, %v38, 0.0
    %41 = vadd.xlane.f32.xlu0 %v40
    %v42 = vpop.xlane.xlu0 %41
    %v43 = vsel %vm26, %v39, 0.0
    %44 = vadd.xlane.f32.xlu0 %v43
    %v45 = vpop.xlane.xlu0 %44
    %v46 = vmul.f32 %v42, %v33
    %v47 = vmul.f32 %v45, %v33
    %v48 = vadd.f32 %v46, 1e-05
    %v49 = vadd.f32 %v47, 1e-05
    %v50 = vrsqrt.pop %v48
    %v51 = vrsqrt.pop %v49
    %v52 = vmul.f32 %v36, %v50
    %v53 = vmul.f32 %v37, %v51
    %v55 = vlaneseq
    %v56 = vshrl.u32 %v55, 7
    %v57 = vsub.s32 0, %v56
    %v58 = vrot.slane %v24, %v57
    %v60 = vmul.f32 %v52, %v58
    %v61 = vmul.f32 %v53, %v58
    %v63 = vlaneseq
    %v64 = vshrl.u32 %v63, 7
    %v65 = vsub.s32 0, %v64
    %v66 = vrot.slane %v25, %v65
    %v68 = vadd.f32 %v60, %v66
    %v69 = vadd.f32 %v61, %v66
    %v70 = vpack.c.bf16 %v69, %v68
    %v71 = vld [vmem:[%s3] sm:$0xf]
    %v72 = vld [vmem:[%s3 + $0x4] sm:$0xf]
    %v73 = vld [vmem:[%s3 + $0x8] sm:$0xf]
    %v74 = vld [vmem:[%s3 + $0xc] sm:$0xf]
    %v75 = vld [vmem:[%s4] sm:$0x1]
    %v77 = vlaneseq
    %v78 = vshrl.u32 %v77, 7
    %v79 = vsub.s32 0, %v78
    %v80 = vrot.slane %v75, %v79
    %v86 = vunpack.c.l.b16 %v71
    %v87 = vunpack.c.l.b16 %v72
    %v88 = vunpack.c.l.b16 %v73
    %v89 = vunpack.c.l.b16 %v74
    %v90 = vpack.c.b16 %v87, %v86
    %v91 = vpack.c.b16 %v89, %v88
    %v95 = vsel %vm26, %v70, 0
    %97 = vmatprep.subr.bf16.mxu0 0
    %98 = vmatpush1.bf16.msra.mxu0 0
    %99 = vmatprep.subr.bf16.mxu0 0
    %100 = vmatpush1.bf16.msra.mxu0 0
    %101 = vmatprep.subr.bf16.mxu0 0
    %102 = vmatpush1.bf16.msra.mxu0 0
    %103 = vmatprep.subr.bf16.mxu0 0
    %104 = vmatpush1.bf16.msra.mxu0 0
    %105 = vmatprep.subr.bf16.mxu0 0
    %106 = vmatpush1.bf16.msra.mxu0 0
    %107 = vmatprep.subr.bf16.mxu0 0
    %108 = vmatpush1.bf16.msra.mxu0 0
    %109 = vmatprep.subr.bf16.mxu0 0
    %110 = vmatpush1.bf16.msra.mxu0 %v91
    %111 = vmatprep.subr.bf16.mxu0 0
    %112 = vmatpush1.bf16.msra.mxu0 %v90
    %113 = vmatprep.subr.bf16.mxu0 0
    %114 = vmatpush2.bf16.msra.mxu0 0
    %115 = vmatprep.subr.bf16.mxu0 0
    %116 = vmatpush2.bf16.msra.mxu0 0
    %117 = vmatprep.subr.bf16.mxu0 0
    %118 = vmatpush2.bf16.msra.mxu0 0
    %119 = vmatprep.subr.bf16.mxu0 0
    %120 = vmatpush2.bf16.msra.mxu0 0
    %121 = vmatprep.subr.bf16.mxu0 0
    %122 = vmatpush2.bf16.msra.mxu0 0
    %123 = vmatprep.subr.bf16.mxu0 0
    %124 = vmatpush2.bf16.msra.mxu0 0
    %125 = vmatprep.subr.bf16.mxu0 0
    %126 = vmatpush2.bf16.msra.mxu0 0
    %127 = vmatprep.subr.bf16.mxu0 0
    %128 = vmatpush2.bf16.msra.mxu0 0
    %129 = vmatprep.mubr.bf16.mxu0 0
    %130 = vmatmul.mubr.bf16.gmra.mxu0 %v95
    %v131 = vpop.f32.mrf.mxu0
    %v132 = vadd.f32 %v80, %v131
    %v133 = vpop.f32.mrf.mxu0
    %v134 = vpop.f32.mrf.mxu0
    %v135 = vadd.f32 %v80, %v134
    %v136 = vpop.f32.mrf.mxu0
    %137 = vdwg.mxu0
    %vm138 = vcmask 130048
    %139 = vst.msk [vmem:[#allocation2] sm:$0xff] %vm138, %v132
    %140 = vst.msk [vmem:[#allocation2 + $0x8] sm:$0xff] %vm138, %v135
    // Predicated region
    $region22: #{bi_transformer_decoder_forward.32} parent=1 // pred_check
      _
    $region23: #{bi_transformer_decoder_forward.32} parent=1 // pred_check_branch
      %142 = sbr.rel (0) target = $region25
    $region24: #{bi_transformer_decoder_forward.32} parent=1 // pred_region
      %s144 = ssub.s32 256, 256
      %145 = vsyncadd [#allocation3], %s144
      %s146 = sshll.u32 [#allocation2], 4
      %s147 = int_to_ptr.vmem [resolvable:$true] %s146
      %152 = dma.vmem_to_hbm [thread:$0]  %s147, 256, %s5, [#allocation3], 128, 128, 8
    $region25: #{bi_transformer_decoder_forward.32} parent=1 // pred_fallthru
      _
    // Predicated region
    $region26: #{bi_transformer_decoder_forward.32} parent=1 // pred_check
      _
    $region27: #{bi_transformer_decoder_forward.32} parent=1 // pred_check_branch
      %154 = sbr.rel (0) target = $region29
    $region28: #{bi_transformer_decoder_forward.32} parent=1 // pred_region
      %155 = dma.done [#allocation3], 256
    $region29: #{bi_transformer_decoder_forward.32} parent=1 // pred_fallthru
      _
    %156 = vsyncpa [#allocation3], 1

// kernel: bi_transformer_decoder_forward.24
$region0: #{bi_transformer_decoder_forward.24}
  #allocation0 [shape = 'u32[]', space=smem, size = 0x4, offset = 0x4, fixed_abs, tag = 'smem constant byte address 0x4 - core index']
  #allocation1 [shape = 'u32[144,128]{1,0:T(1,128)}', space=vmem, size = 0x12000, scoped, tag = 'internal scratch']
  #allocation2 [shape = 's32[1]{0}', space=sflag, size = 0x4, scoped, tag = 'scoped memory for bi_transformer_decoder_forward.24']
  #allocation3 [shape = 'u8[512]{0}', space=smem, size = 0x200, scoped, tag = 'prefetched SMEM operand 0']
  %s0 = inlined_call_operand.vmem [shape: s32[2], index: 0, kind: input, shape index: {}]
  %s1 = inlined_call_operand.vmem [shape: bf16[2,8,32], index: 1, kind: input, shape index: {}]
  %s2 = inlined_call_operand.vmem [shape: bf16[2,10,64], index: 2, kind: input, shape index: {}]
  %s3 = inlined_call_operand.vmem [shape: bf16[32,32], index: 3, kind: input, shape index: {}]
  %s4 = inlined_call_operand.vmem [shape: f32[1,32], index: 4, kind: input, shape index: {}]
  %s5 = inlined_call_operand.vmem [shape: f32[2,8,32], index: 5, kind: input, shape index: {}]
  %s6 = inlined_call_operand.vmem [shape: f32[2,8,32], index: 6, kind: output, shape index: {}]
  %s7 = sld [smem:[#allocation0]]
  $region53: #{bi_transformer_decoder_forward.24} parent=0
    _
  %s9 = ssub.s32 1, %s7
  %s10 = scalar_select 0, %s9, %s7
  %s11 = sshll.u32 %s0, 4
  %s12 = int_to_ptr.vmem [resolvable:$true] %s11
  %14 = dma.vmem_to_smem %s12, 16, [#allocation3], [#allocation2]
  %15 = dma.done [#allocation2], 16
  %16 = sfence
  loop: start=0, step=1, limit=4
  $region2: #{bi_transformer_decoder_forward.24} parent=0 // loop_pre_header
    _
  $region3: #{bi_transformer_decoder_forward.24} parent=0 // loop_header
    %s18 = sphi 0, %s22
    %p19 = scmp.ge.s32.totalorder %s18, 4
    %s28 = sphi 0, %s30
    %s31 = sphi 0, %s28
    %s32 = sphi 0, %s31
    %s48 = sphi 0, %s32
    %s54 = sphi 0, %s56
    %s57 = sphi 0, %s54
    %s58 = sphi 0, %s57
    %s74 = sphi 0, %s58
    %s78 = sphi 0, %s78
    %s80 = sphi 0, %s78
    %s81 = sphi 0, %s80
    %s95 = sphi 0, %s81
    %s99 = sphi 0, %s99
    %s101 = sphi 0, %s99
    %s102 = sphi 0, %s101
    %s116 = sphi 0, %s102
    %s122 = sphi 0, %s124
    %s125 = sphi 0, %s122
    %s126 = sphi 0, %s125
    %s142 = sphi 0, %s126
    %s148 = sphi 0, %s150
    %s151 = sphi 0, %s148
    %s152 = sphi 0, %s151
    %s168 = sphi 0, %s152
  $region4: #{bi_transformer_decoder_forward.24} parent=0 // loop_header_branch
    %21 = sbr.rel (%p19) target = $region8
  $region5: #{bi_transformer_decoder_forward.24} parent=0 // loop_body
    %s23 = ssub.s32 %s18, 1
    %s24 = ssub.s32 %s18, 2
    %s25 = sadd.s32 %s18, 1
    %s26 = ssub.s32 %s18, %s25
    %p27 = scmp.eq.s32.totalorder %s26, 0
    %s29 = sadd.s32 %s28, 1
    %s30 = scalar_select %p27, %s28, %s29
    %p33 = pneg %p27
    %p34 = scmp.eq.s32.totalorder %s18, 1
    %p35 = por %p33, %p34
    %p36 = scmp.ne.s32.totalorder %s28, %s31
    %p37 = scmp.eq.s32.totalorder %s18, 0
    %p38 = por %p36, %p37
    %p39 = scmp.ne.s32.totalorder %s28, %s31
    %p40 = scmp.eq.s32.totalorder %s23, 1
    %p41 = por %p39, %p40
    %p42 = scmp.ne.s32.totalorder %s31, %s32
    %p43 = scmp.eq.s32.totalorder %s23, 0
    %p44 = por %p42, %p43
    %p45 = scmp.ne.s32.totalorder %s31, %s32
    %p46 = scmp.eq.s32.totalorder %s24, 1
    %p47 = por %p45, %p46
    %p49 = scmp.ne.s32.totalorder %s32, %s48
    %p50 = scmp.eq.s32.totalorder %s24, 0
    %p51 = por %p49, %p50
    %s52 = ssub.s32 %s18, %s25
    %p53 = scmp.eq.s32.totalorder %s52, 0
    %s55 = sadd.s32 %s54, 1
    %s56 = scalar_select %p53, %s54, %s55
    %p59 = pneg %p53
    %p60 = scmp.eq.s32.totalorder %s18, 1
    %p61 = por %p59, %p60
    %p62 = scmp.ne.s32.totalorder %s54, %s57
    %p63 = scmp.eq.s32.totalorder %s18, 0
    %p64 = por %p62, %p63
    %p65 = scmp.ne.s32.totalorder %s54, %s57
    %p66 = scmp.eq.s32.totalorder %s23, 1
    %p67 = por %p65, %p66
    %p68 = scmp.ne.s32.totalorder %s57, %s58
    %p69 = scmp.eq.s32.totalorder %s23, 0
    %p70 = por %p68, %p69
    %p71 = scmp.ne.s32.totalorder %s57, %s58
    %p72 = scmp.eq.s32.totalorder %s24, 1
    %p73 = por %p71, %p72
    %p75 = scmp.ne.s32.totalorder %s58, %s74
    %p76 = scmp.eq.s32.totalorder %s24, 0
    %p77 = por %p75, %p76
    %s79 = sadd.s32 %s78, 1
    %p82 = scmp.eq.s32.totalorder %s18, 1
    %p83 = scmp.ne.s32.totalorder %s78, %s80
    %p84 = scmp.eq.s32.totalorder %s18, 0
    %p85 = por %p83, %p84
    %p86 = scmp.ne.s32.totalorder %s78, %s80
    %p87 = scmp.eq.s32.totalorder %s23, 1
    %p88 = por %p86, %p87
    %p89 = scmp.ne.s32.totalorder %s80, %s81
    %p90 = scmp.eq.s32.totalorder %s23, 0
    %p91 = por %p89, %p90
    %p92 = scmp.ne.s32.totalorder %s80, %s81
    %p93 = scmp.eq.s32.totalorder %s24, 1
    %p94 = por %p92, %p93
    %p96 = scmp.ne.s32.totalorder %s81, %s95
    %p97 = scmp.eq.s32.totalorder %s24, 0
    %p98 = por %p96, %p97
    %s100 = sadd.s32 %s99, 1
    %p103 = scmp.eq.s32.totalorder %s18, 1
    %p104 = scmp.ne.s32.totalorder %s99, %s101
    %p105 = scmp.eq.s32.totalorder %s18, 0
    %p106 = por %p104, %p105
    %p107 = scmp.ne.s32.totalorder %s99, %s101
    %p108 = scmp.eq.s32.totalorder %s23, 1
    %p109 = por %p107, %p108
    %p110 = scmp.ne.s32.totalorder %s101, %s102
    %p111 = scmp.eq.s32.totalorder %s23, 0
    %p112 = por %p110, %p111
    %p113 = scmp.ne.s32.totalorder %s101, %s102
    %p114 = scmp.eq.s32.totalorder %s24, 1
    %p115 = por %p113, %p114
    %p117 = scmp.ne.s32.totalorder %s102, %s116
    %p118 = scmp.eq.s32.totalorder %s24, 0
    %p119 = por %p117, %p118
    %s120 = ssub.s32 %s18, %s25
    %p121 = scmp.eq.s32.totalorder %s120, 0
    %s123 = sadd.s32 %s122, 1
    %s124 = scalar_select %p121, %s122, %s123
    %p127 = pneg %p121
    %p128 = scmp.eq.s32.totalorder %s18, 1
    %p129 = por %p127, %p128
    %p130 = scmp.ne.s32.totalorder %s122, %s125
    %p131 = scmp.eq.s32.totalorder %s18, 0
    %p132 = por %p130, %p131
    %p133 = scmp.ne.s32.totalorder %s122, %s125
    %p134 = scmp.eq.s32.totalorder %s23, 1
    %p135 = por %p133, %p134
    %p136 = scmp.ne.s32.totalorder %s125, %s126
    %p137 = scmp.eq.s32.totalorder %s23, 0
    %p138 = por %p136, %p137
    %p139 = scmp.ne.s32.totalorder %s125, %s126
    %p140 = scmp.eq.s32.totalorder %s24, 1
    %p141 = por %p139, %p140
    %p143 = scmp.ne.s32.totalorder %s126, %s142
    %p144 = scmp.eq.s32.totalorder %s24, 0
    %p145 = por %p143, %p144
    %s146 = ssub.s32 %s18, %s25
    %p147 = scmp.eq.s32.totalorder %s146, 0
    %s149 = sadd.s32 %s148, 1
    %s150 = scalar_select %p147, %s148, %s149
    %p153 = pneg %p147
    %p154 = scmp.eq.s32.totalorder %s18, 1
    %p155 = por %p153, %p154
    %p156 = scmp.ne.s32.totalorder %s148, %s151
    %p157 = scmp.eq.s32.totalorder %s18, 0
    %p158 = por %p156, %p157
    %p159 = scmp.ne.s32.totalorder %s148, %s151
    %p160 = scmp.eq.s32.totalorder %s23, 1
    %p161 = por %p159, %p160
    %p162 = scmp.ne.s32.totalorder %s151, %s152
    %p163 = scmp.eq.s32.totalorder %s23, 0
    %p164 = por %p162, %p163
    %p165 = scmp.ne.s32.totalorder %s151, %s152
    %p166 = scmp.eq.s32.totalorder %s24, 1
    %p167 = por %p165, %p166
    %p169 = scmp.ne.s32.totalorder %s152, %s168
    %p170 = scmp.eq.s32.totalorder %s24, 0
    %p171 = por %p169, %p170
    %p172 = scmp.le.s32.totalorder 1, %s18
    %p173 = scmp.lt.s32.totalorder %s18, 3
    %p174 = pnand %p172, %p173
    %p175 = pneg %p174
    // Predicated region
    $region9: #{bi_transformer_decoder_forward.24} parent=5 // pred_check
      _
    $region10: #{bi_transformer_decoder_forward.24} parent=5 // pred_check_branch
      %177 = sbr.rel (%p174) target = $region12
    $region11: #{bi_transformer_decoder_forward.24} parent=5 // pred_region
      %s178 = ssub.s32 %s18, 1
      // Predicated region
      $region13: #{bi_transformer_decoder_forward.24} parent=11 // pred_check
        %p179 = pneg %p91
      $region14: #{bi_transformer_decoder_forward.24} parent=11 // pred_check_branch
        %181 = sbr.rel (%p179) target = $region16
      $region15: #{bi_transformer_decoder_forward.24} parent=11 // pred_region
        _
      $region16: #{bi_transformer_decoder_forward.24} parent=11 // pred_fallthru
        _
      // Predicated region
      $region17: #{bi_transformer_decoder_forward.24} parent=11 // pred_check
        %p182 = pneg %p112
      $region18: #{bi_transformer_decoder_forward.24} parent=11 // pred_check_branch
        %184 = sbr.rel (%p182) target = $region20
      $region19: #{bi_transformer_decoder_forward.24} parent=11 // pred_region
        _
      $region20: #{bi_transformer_decoder_forward.24} parent=11 // pred_fallthru
        _
    $region12: #{bi_transformer_decoder_forward.24} parent=5 // pred_fallthru
      _
    %p185 = scmp.lt.s32.totalorder %s18, 2
    // Predicated region
    $region21: #{bi_transformer_decoder_forward.24} parent=5 // pred_check
      %p186 = pneg %p185
    $region22: #{bi_transformer_decoder_forward.24} parent=5 // pred_check_branch
      %188 = sbr.rel (%p186) target = $region24
    $region23: #{bi_transformer_decoder_forward.24} parent=5 // pred_region
      // Predicated region
      $region25: #{bi_transformer_decoder_forward.24} parent=23 // pred_check
        %p189 = pneg %p38
      $region26: #{bi_transformer_decoder_forward.24} parent=23 // pred_check_branch
        %191 = sbr.rel (%p189) target = $region28
      $region27: #{bi_transformer_decoder_forward.24} parent=23 // pred_region
        %p192 = scmp.lt.s32.totalorder %s18, 1
        %s193 = scalar_select %p192, %s18, 1
        %s194 = smul.addr %s193, 4
        %s195 = scalar_lea.vmem %s1, %s194
      $region28: #{bi_transformer_decoder_forward.24} parent=23 // pred_fallthru
        _
      // Predicated region
      $region29: #{bi_transformer_decoder_forward.24} parent=23 // pred_check
        %p196 = pneg %p64
      $region30: #{bi_transformer_decoder_forward.24} parent=23 // pred_check_branch
        %198 = sbr.rel (%p196) target = $region32
      $region31: #{bi_transformer_decoder_forward.24} parent=23 // pred_region
        %p199 = scmp.lt.s32.totalorder %s18, 1
        %s200 = scalar_select %p199, %s18, 1
        %s201 = smul.addr %s200, 2
        %s202 = smul.addr %s201, 4
        %s203 = scalar_lea.vmem %s2, %s202
      $region32: #{bi_transformer_decoder_forward.24} parent=23 // pred_fallthru
        _
      // Predicated region
      $region33: #{bi_transformer_decoder_forward.24} parent=23 // pred_check
        %p204 = pneg %p132
      $region34: #{bi_transformer_decoder_forward.24} parent=23 // pred_check_branch
        %206 = sbr.rel (%p204) target = $region36
      $region35: #{bi_transformer_decoder_forward.24} parent=23 // pred_region
        %p207 = scmp.lt.s32.totalorder %s18, 1
        %s208 = scalar_select %p207, %s18, 1
        %s209 = smul.addr %s208, 8
        %s210 = scalar_lea.vmem %s5, %s209
      $region36: #{bi_transformer_decoder_forward.24} parent=23 // pred_fallthru
        _
    $region24: #{bi_transformer_decoder_forward.24} parent=5 // pred_fallthru
      _
    %p211 = scmp.le.s32.totalorder 1, %s18
    %p212 = scmp.lt.s32.totalorder %s18, 3
    %p213 = pnand %p211, %p212
    %p214 = pneg %p213
    // Predicated region
    $region37: #{bi_transformer_decoder_forward.24} parent=5 // pred_check
      _
    $region38: #{bi_transformer_decoder_forward.24} parent=5 // pred_check_branch
      %216 = sbr.rel (%p213) target = $region40
    $region39: #{bi_transformer_decoder_forward.24} parent=5 // pred_region
      %s217 = ssub.s32 %s18, 1
      %p218 = scmp.lt.s32.totalorder %s23, 1
      %s219 = scalar_select %p218, %s23, 1
      %s220 = smul.addr %s219, 4
      %s221 = scalar_lea.vmem %s1, %s220
      %p222 = pneg %p44
      %p223 = pneg %p41
      %p224 = scmp.lt.s32.totalorder %s23, 1
      %s225 = scalar_select %p224, %s23, 1
      %s226 = smul.addr %s225, 2
      %s227 = smul.addr %s226, 4
      %s228 = scalar_lea.vmem %s2, %s227
      %p229 = pneg %p70
      %p230 = pneg %p67
      %p231 = pneg %p91
      %p232 = pneg %p88
      %p233 = pneg %p112
      %p234 = pneg %p109
      %p235 = scmp.lt.s32.totalorder %s23, 1
      %s236 = scalar_select %p235, %s23, 1
      %s237 = smul.addr %s236, 8
      %s238 = scalar_lea.vmem %s5, %s237
      %p239 = pneg %p138
      %p240 = pneg %p135
      %p241 = pneg %p164
      %p242 = pneg %p161
      %p243 = scmp.lt.s32.totalorder %s23, 1
      %s244 = scalar_select %p243, %s23, 1
      %s245 = smul.addr %s244, 8
      %s246 = scalar_lea.vmem %s6, %s245
      %p247 = scmp.lt.s32.totalorder %s23, 1
      %s248 = scalar_select %p247, %s23, 1
      %s249 = smul.addr %s248, 4
      %s250 = scalar_lea.vmem %s1, %s249
      %p251 = scmp.lt.s32.totalorder %s23, 1
      %s252 = scalar_select %p251, %s23, 1
      %s253 = smul.addr %s252, 2
      %s254 = smul.addr %s253, 4
      %s255 = scalar_lea.vmem %s2, %s254
      %p256 = scmp.lt.s32.totalorder %s23, 1
      %s257 = scalar_select %p256, %s23, 1
      %s258 = smul.addr %s257, 8
      %s259 = scalar_lea.vmem %s5, %s258
      %p260 = scmp.lt.s32.totalorder %s23, 1
      %s261 = scalar_select %p260, %s23, 1
      %s262 = smul.addr %s261, 8
      %s263 = scalar_lea.vmem %s6, %s262
      %s265 = sld [smem:[#allocation3 + %s23]]
      %v266 = vld [vmem:[%s250] sm:$0xf]
      %v267 = vld [vmem:[%s255] sm:$0xf]
      %v268 = vld [vmem:[%s255 + $0x4] sm:$0x1]
      %v269 = vlaneseq
      %v270 = vand.u32 %v269, 127
      %v271 = vstv %s265
      %vm272 = vcmp.lt.s32.totalorder %v270, %v271
      %v275 = vunpack.c.l.b16 %v267
      %v276 = vunpack.c.l.b16 %v268
      %v277 = vpack.c.b16 %v276, %v275
      %vm278 = vcmask 64512
      %v280 = vsel %vm278, %v266, 0
      %v283 = vsel %vm278, %v277, 0
      %285 = vmatprep.subr.bf16.mxu0 0
      %286 = vmatpush1.bf16.xpose.msra.mxu0 0
      %287 = vmatprep.subr.bf16.mxu0 0
      %288 = vmatpush1.bf16.xpose.msra.mxu0 0
      %289 = vmatprep.subr.bf16.mxu0 0
      %290 = vmatpush1.bf16.xpose.msra.mxu0 0
      %291 = vmatprep.subr.bf16.mxu0 0
      %292 = vmatpush1.bf16.xpose.msra.mxu0 0
      %293 = vmatprep.subr.bf16.mxu0 0
      %294 = vmatpush1.bf16.xpose.msra.mxu0 0
      %295 = vmatprep.subr.bf16.mxu0 0
      %296 = vmatpush1.bf16.xpose.msra.mxu0 0
      %297 = vmatprep.subr.bf16.mxu0 0
      %298 = vmatpush1.bf16.xpose.msra.mxu0 0
      %299 = vmatprep.subr.bf16.mxu0 0
      %300 = vmatpush1.bf16.xpose.msra.mxu0 %v283
      %301 = vmatprep.subr.bf16.mxu0 0
      %302 = vmatpush2.bf16.xpose.msra.mxu0 0
      %303 = vmatprep.subr.bf16.mxu0 0
      %304 = vmatpush2.bf16.xpose.msra.mxu0 0
      %305 = vmatprep.subr.bf16.mxu0 0
      %306 = vmatpush2.bf16.xpose.msra.mxu0 0
      %307 = vmatprep.subr.bf16.mxu0 0
      %308 = vmatpush2.bf16.xpose.msra.mxu0 0
      %309 = vmatprep.subr.bf16.mxu0 0
      %310 = vmatpush2.bf16.xpose.msra.mxu0 0
      %311 = vmatprep.subr.bf16.mxu0 0
      %312 = vmatpush2.bf16.xpose.msra.mxu0 0
      %313 = vmatprep.subr.bf16.mxu0 0
      %314 = vmatpush2.bf16.xpose.msra.mxu0 0
      %315 = vmatprep.subr.bf16.mxu0 0
      %316 = vmatpush2.bf16.xpose.msra.mxu0 0
      %317 = vmatprep.mubr.bf16.mxu0 0
      %318 = vmatmul.mubr.bf16.gmra.mxu0 %v280
      %v319 = vpop.f32.mrf.mxu0
      %v320 = vadd.f32 0.0, %v319
      %v321 = vpop.f32.mrf.mxu0
      %v322 = vpop.f32.mrf.mxu0
      %v323 = vpop.f32.mrf.mxu0
      %324 = vdwg.mxu0
      %v325 = vmul.f32 %v320, 0.35355338
      %v326 = vsel %vm272, %v325, -1e+30
      %vm327 = vcmask 80896
      %v328 = vsel %vm327, %v326, -inf
      %329 = vmax.xlane.f32.xlu0 %v328
      %v330 = vpop.xlane.xlu0 %329
      %v331 = vsub.f32 %v326, %v330
      %v332 = vmul.f32 %v331, 1.442695
      %v333 = vpow.pop %v332
      %v334 = vsel %vm327, %v333, 0.0
      %335 = vadd.xlane.f32.xlu0 %v334
      %v336 = vpop.xlane.xlu0 %335
      %v337 = vrcp.pop %v336
      %v338 = vmul.f32 %v333, %v337
      %v339 = vsel %vm272, %v338, 0.0
      %v340 = vpack.c.bf16 %v339, %v339
      %341 = vrot.lane.b32.xlu0 %v277, 96
      %v342 = vpop.permute.xlu0 %341
      %v344 = vsel %vm327, %v340, 0
      %vm346 = vcmask 1044480
      %v348 = vsel %vm346, %v342, 0
      %350 = vmatprep.subr.bf16.mxu0 0
      %351 = vmatpush1.bf16.msra.mxu0 0
      %352 = vmatprep.subr.bf16.mxu0 0
      %353 = vmatpush1.bf16.msra.mxu0 0
      %354 = vmatprep.subr.bf16.mxu0 0
      %355 = vmatpush1.bf16.msra.mxu0 0
      %356 = vmatprep.subr.bf16.mxu0 0
      %357 = vmatpush1.bf16.msra.mxu0 0
      %358 = vmatprep.subr.bf16.mxu0 0
      %359 = vmatpush1.bf16.msra.mxu0 0
      %360 = vmatprep.subr.bf16.mxu0 0
      %361 = vmatpush1.bf16.msra.mxu0 0
      %362 = vmatprep.subr.bf16.mxu0 0
      %363 = vmatpush1.bf16.msra.mxu0 0
      %364 = vmatprep.subr.bf16.mxu0 0
      %365 = vmatpush1.bf16.msra.mxu0 %v348
      %366 = vmatprep.subr.bf16.mxu0 0
      %367 = vmatpush2.bf16.msra.mxu0 0
      %368 = vmatprep.subr.bf16.mxu0 0
      %369 = vmatpush2.bf16.msra.mxu0 0
      %370 = vmatprep.subr.bf16.mxu0 0
      %371 = vmatpush2.bf16.msra.mxu0 0
      %372 = vmatprep.subr.bf16.mxu0 0
      %373 = vmatpush2.bf16.msra.mxu0 0
      %374 = vmatprep.subr.bf16.mxu0 0
      %375 = vmatpush2.bf16.msra.mxu0 0
      %376 = vmatprep.subr.bf16.mxu0 0
      %377 = vmatpush2.bf16.msra.mxu0 0
      %378 = vmatprep.subr.bf16.mxu0 0
      %379 = vmatpush2.bf16.msra.mxu0 0
      %380 = vmatprep.subr.bf16.mxu0 0
      %381 = vmatpush2.bf16.msra.mxu0 0
      %382 = vmatprep.mubr.bf16.mxu0 0
      %383 = vmatmul.mubr.bf16.gmra.mxu0 %v344
      %v384 = vpop.f32.mrf.mxu0
      %v385 = vadd.f32 0.0, %v384
      %v386 = vpop.f32.mrf.mxu0
      %v387 = vpop.f32.mrf.mxu0
      %v388 = vpop.f32.mrf.mxu0
      %389 = vdwg.mxu0
      %v391 = vunpack.c.l.b16 %v266
      %v392 = vpack.c.b16 %v391, %v391
      %393 = vrot.lane.b32.xlu0 %v392, 120
      %v394 = vpop.permute.xlu0 %393
      %395 = vrot.lane.b32.xlu0 %v277, 120
      %v396 = vpop.permute.xlu0 %395
      %v398 = vsel %vm278, %v394, 0
      %v401 = vsel %vm278, %v396, 0
      %403 = vmatprep.subr.bf16.mxu0 0
      %404 = vmatpush1.bf16.xpose.msra.mxu0 0
      %405 = vmatprep.subr.bf16.mxu0 0
      %406 = vmatpush1.bf16.xpose.msra.mxu0 0
      %407 = vmatprep.subr.bf16.mxu0 0
      %408 = vmatpush1.bf16.xpose.msra.mxu0 0
      %409 = vmatprep.subr.bf16.mxu0 0
      %410 = vmatpush1.bf16.xpose.msra.mxu0 0
      %411 = vmatprep.subr.bf16.mxu0 0
      %412 = vmatpush1.bf16.xpose.msra.mxu0 0
      %413 = vmatprep.subr.bf16.mxu0 0
      %414 = vmatpush1.bf16.xpose.msra.mxu0 0
      %415 = vmatprep.subr.bf16.mxu0 0
      %416 = vmatpush1.bf16.xpose.msra.mxu0 0
      %417 = vmatprep.subr.bf16.mxu0 0
      %418 = vmatpush1.bf16.xpose.msra.mxu0 %v401
      %419 = vmatprep.subr.bf16.mxu0 0
      %420 = vmatpush2.bf16.xpose.msra.mxu0 0
      %421 = vmatprep.subr.bf16.mxu0 0
      %422 = vmatpush2.bf16.xpose.msra.mxu0 0
      %423 = vmatprep.subr.bf16.mxu0 0
      %424 = vmatpush2.bf16.xpose.msra.mxu0 0
      %425 = vmatprep.subr.bf16.mxu0 0
      %426 = vmatpush2.bf16.xpose.msra.mxu0 0
      %427 = vmatprep.subr.bf16.mxu0 0
      %428 = vmatpush2.bf16.xpose.msra.mxu0 0
      %429 = vmatprep.subr.bf16.mxu0 0
      %430 = vmatpush2.bf16.xpose.msra.mxu0 0
      %431 = vmatprep.subr.bf16.mxu0 0
      %432 = vmatpush2.bf16.xpose.msra.mxu0 0
      %433 = vmatprep.subr.bf16.mxu0 0
      %434 = vmatpush2.bf16.xpose.msra.mxu0 0
      %435 = vmatprep.mubr.bf16.mxu0 0
      %436 = vmatmul.mubr.bf16.gmra.mxu0 %v398
      %v437 = vpop.f32.mrf.mxu0
      %v438 = vadd.f32 0.0, %v437
      %v439 = vpop.f32.mrf.mxu0
      %v440 = vpop.f32.mrf.mxu0
      %v441 = vpop.f32.mrf.mxu0
      %442 = vdwg.mxu0
      %v443 = vmul.f32 %v438, 0.35355338
      %v444 = vsel %vm272, %v443, -1e+30
      %v445 = vsel %vm327, %v444, -inf
      %446 = vmax.xlane.f32.xlu0 %v445
      %v447 = vpop.xlane.xlu0 %446
      %v448 = vsub.f32 %v444, %v447
      %v449 = vmul.f32 %v448, 1.442695
      %v450 = vpow.pop %v449
      %v451 = vsel %vm327, %v450, 0.0
      %452 = vadd.xlane.f32.xlu0 %v451
      %v453 = vpop.xlane.xlu0 %452
      %v454 = vrcp.pop %v453
      %v455 = vmul.f32 %v450, %v454
      %v456 = vsel %vm272, %v455, 0.0
      %v457 = vpack.c.bf16 %v456, %v456
      %458 = vrot.lane.b32.xlu0 %v277, 88
      %v459 = vpop.permute.xlu0 %458
      %v461 = vsel %vm327, %v457, 0
      %v464 = vsel %vm346, %v459, 0
      %466 = vmatprep.subr.bf16.mxu0 0
      %467 = vmatpush1.bf16.msra.mxu0 0
      %468 = vmatprep.subr.bf16.mxu0 0
      %469 = vmatpush1.bf16.msra.mxu0 0
      %470 = vmatprep.subr.bf16.mxu0 0
      %471 = vmatpush1.bf16.msra.mxu0 0
      %472 = vmatprep.subr.bf16.mxu0 0
      %473 = vmatpush1.bf16.msra.mxu0 0
      %474 = vmatprep.subr.bf16.mxu0 0
      %475 = vmatpush1.bf16.msra.mxu0 0
      %476 = vmatprep.subr.bf16.mxu0 0
      %477 = vmatpush1.bf16.msra.mxu0 0
      %478 = vmatprep.subr.bf16.mxu0 0
      %479 = vmatpush1.bf16.msra.mxu0 0
      %480 = vmatprep.subr.bf16.mxu0 0
      %481 = vmatpush1.bf16.msra.mxu0 %v464
      %482 = vmatprep.subr.bf16.mxu0 0
      %483 = vmatpush2.bf16.msra.mxu0 0
      %484 = vmatprep.subr.bf16.mxu0 0
      %485 = vmatpush2.bf16.msra.mxu0 0
      %486 = vmatprep.subr.bf16.mxu0 0
      %487 = vmatpush2.bf16.msra.mxu0 0
      %488 = vmatprep.subr.bf16.mxu0 0
      %489 = vmatpush2.bf16.msra.mxu0 0
      %490 = vmatprep.subr.bf16.mxu0 0
      %491 = vmatpush2.bf16.msra.mxu0 0
      %492 = vmatprep.subr.bf16.mxu0 0
      %493 = vmatpush2.bf16.msra.mxu0 0
      %494 = vmatprep.subr.bf16.mxu0 0
      %495 = vmatpush2.bf16.msra.mxu0 0
      %496 = vmatprep.subr.bf16.mxu0 0
      %497 = vmatpush2.bf16.msra.mxu0 0
      %498 = vmatprep.mubr.bf16.mxu0 0
      %499 = vmatmul.mubr.bf16.gmra.mxu0 %v461
      %v500 = vpop.f32.mrf.mxu0
      %v501 = vadd.f32 0.0, %v500
      %v502 = vpop.f32.mrf.mxu0
      %v503 = vpop.f32.mrf.mxu0
      %v504 = vpop.f32.mrf.mxu0
      %505 = vdwg.mxu0
      %506 = vrot.lane.b32.xlu0 %v392, 112
      %v507 = vpop.permute.xlu0 %506
      %508 = vrot.lane.b32.xlu0 %v277, 112
      %v509 = vpop.permute.xlu0 %508
      %v511 = vsel %vm278, %v507, 0
      %v514 = vsel %vm278, %v509, 0
      %516 = vmatprep.subr.bf16.mxu0 0
      %517 = vmatpush1.bf16.xpose.msra.mxu0 0
      %518 = vmatprep.subr.bf16.mxu0 0
      %519 = vmatpush1.bf16.xpose.msra.mxu0 0
      %520 = vmatprep.subr.bf16.mxu0 0
      %521 = vmatpush1.bf16.xpose.msra.mxu0 0
      %522 = vmatprep.subr.bf16.mxu0 0
      %523 = vmatpush1.bf16.xpose.msra.mxu0 0
      %524 = vmatprep.subr.bf16.mxu0 0
      %525 = vmatpush1.bf16.xpose.msra.mxu0 0
      %526 = vmatprep.subr.bf16.mxu0 0
      %527 = vmatpush1.bf16.xpose.msra.mxu0 0
      %528 = vmatprep.subr.bf16.mxu0 0
      %529 = vmatpush1.bf16.xpose.msra.mxu0 0
      %530 = vmatprep.subr.bf16.mxu0 0
      %531 = vmatpush1.bf16.xpose.msra.mxu0 %v514
      %532 = vmatprep.subr.bf16.mxu0 0
      %533 = vmatpush2.bf16.xpose.msra.mxu0 0
      %534 = vmatprep.subr.bf16.mxu0 0
      %535 = vmatpush2.bf16.xpose.msra.mxu0 0
      %536 = vmatprep.subr.bf16.mxu0 0
      %537 = vmatpush2.bf16.xpose.msra.mxu0 0
      %538 = vmatprep.subr.bf16.mxu0 0
      %539 = vmatpush2.bf16.xpose.msra.mxu0 0
      %540 = vmatprep.subr.bf16.mxu0 0
      %541 = vmatpush2.bf16.xpose.msra.mxu0 0
      %542 = vmatprep.subr.bf16.mxu0 0
      %543 = vmatpush2.bf16.xpose.msra.mxu0 0
      %544 = vmatprep.subr.bf16.mxu0 0
      %545 = vmatpush2.bf16.xpose.msra.mxu0 0
      %546 = vmatprep.subr.bf16.mxu0 0
      %547 = vmatpush2.bf16.xpose.msra.mxu0 0
      %548 = vmatprep.mubr.bf16.mxu0 0
      %549 = vmatmul.mubr.bf16.gmra.mxu0 %v511
      %v550 = vpop.f32.mrf.mxu0
      %v551 = vadd.f32 0.0, %v550
      %v552 = vpop.f32.mrf.mxu0
      %v553 = vpop.f32.mrf.mxu0
      %v554 = vpop.f32.mrf.mxu0
      %555 = vdwg.mxu0
      %v556 = vmul.f32 %v551, 0.35355338
      %v557 = vsel %vm272, %v556, -1e+30
      %v558 = vsel %vm327, %v557, -inf
      %559 = vmax.xlane.f32.xlu0 %v558
      %v560 = vpop.xlane.xlu0 %559
      %v561 = vsub.f32 %v557, %v560
      %v562 = vmul.f32 %v561, 1.442695
      %v563 = vpow.pop %v562
      %v564 = vsel %vm327, %v563, 0.0
      %565 = vadd.xlane.f32.xlu0 %v564
      %v566 = vpop.xlane.xlu0 %565
      %v567 = vrcp.pop %v566
      %v568 = vmul.f32 %v563, %v567
      %v569 = vsel %vm272, %v568, 0.0
      %v570 = vpack.c.bf16 %v569, %v569
      %571 = vrot.lane.b32.xlu0 %v277, 80
      %v572 = vpop.permute.xlu0 %571
      %v574 = vsel %vm327, %v570, 0
      %v577 = vsel %vm346, %v572, 0
      %579 = vmatprep.subr.bf16.mxu0 0
      %580 = vmatpush1.bf16.msra.mxu0 0
      %581 = vmatprep.subr.bf16.mxu0 0
      %582 = vmatpush1.bf16.msra.mxu0 0
      %583 = vmatprep.subr.bf16.mxu0 0
      %584 = vmatpush1.bf16.msra.mxu0 0
      %585 = vmatprep.subr.bf16.mxu0 0
      %586 = vmatpush1.bf16.msra.mxu0 0
      %587 = vmatprep.subr.bf16.mxu0 0
      %588 = vmatpush1.bf16.msra.mxu0 0
      %589 = vmatprep.subr.bf16.mxu0 0
      %590 = vmatpush1.bf16.msra.mxu0 0
      %591 = vmatprep.subr.bf16.mxu0 0
      %592 = vmatpush1.bf16.msra.mxu0 0
      %593 = vmatprep.subr.bf16.mxu0 0
      %594 = vmatpush1.bf16.msra.mxu0 %v577
      %595 = vmatprep.subr.bf16.mxu0 0
      %596 = vmatpush2.bf16.msra.mxu0 0
      %597 = vmatprep.subr.bf16.mxu0 0
      %598 = vmatpush2.bf16.msra.mxu0 0
      %599 = vmatprep.subr.bf16.mxu0 0
      %600 = vmatpush2.bf16.msra.mxu0 0
      %601 = vmatprep.subr.bf16.mxu0 0
      %602 = vmatpush2.bf16.msra.mxu0 0
      %603 = vmatprep.subr.bf16.mxu0 0
      %604 = vmatpush2.bf16.msra.mxu0 0
      %605 = vmatprep.subr.bf16.mxu0 0
      %606 = vmatpush2.bf16.msra.mxu0 0
      %607 = vmatprep.subr.bf16.mxu0 0
      %608 = vmatpush2.bf16.msra.mxu0 0
      %609 = vmatprep.subr.bf16.mxu0 0
      %610 = vmatpush2.bf16.msra.mxu0 0
      %611 = vmatprep.mubr.bf16.mxu0 0
      %612 = vmatmul.mubr.bf16.gmra.mxu0 %v574
      %v613 = vpop.f32.mrf.mxu0
      %v614 = vadd.f32 0.0, %v613
      %v615 = vpop.f32.mrf.mxu0
      %v616 = vpop.f32.mrf.mxu0
      %v617 = vpop.f32.mrf.mxu0
      %618 = vdwg.mxu0
      %619 = vrot.lane.b32.xlu0 %v392, 104
      %v620 = vpop.permute.xlu0 %619
      %621 = vrot.lane.b32.xlu0 %v277, 104
      %v622 = vpop.permute.xlu0 %621
      %v624 = vsel %vm278, %v620, 0
      %v627 = vsel %vm278, %v622, 0
      %629 = vmatprep.subr.bf16.mxu0 0
      %630 = vmatpush1.bf16.xpose.msra.mxu0 0
      %631 = vmatprep.subr.bf16.mxu0 0
      %632 = vmatpush1.bf16.xpose.msra.mxu0 0
      %633 = vmatprep.subr.bf16.mxu0 0
      %634 = vmatpush1.bf16.xpose.msra.mxu0 0
      %635 = vmatprep.subr.bf16.mxu0 0
      %636 = vmatpush1.bf16.xpose.msra.mxu0 0
      %637 = vmatprep.subr.bf16.mxu0 0
      %638 = vmatpush1.bf16.xpose.msra.mxu0 0
      %639 = vmatprep.subr.bf16.mxu0 0
      %640 = vmatpush1.bf16.xpose.msra.mxu0 0
      %641 = vmatprep.subr.bf16.mxu0 0
      %642 = vmatpush1.bf16.xpose.msra.mxu0 0
      %643 = vmatprep.subr.bf16.mxu0 0
      %644 = vmatpush1.bf16.xpose.msra.mxu0 %v627
      %645 = vmatprep.subr.bf16.mxu0 0
      %646 = vmatpush2.bf16.xpose.msra.mxu0 0
      %647 = vmatprep.subr.bf16.mxu0 0
      %648 = vmatpush2.bf16.xpose.msra.mxu0 0
      %649 = vmatprep.subr.bf16.mxu0 0
      %650 = vmatpush2.bf16.xpose.msra.mxu0 0
      %651 = vmatprep.subr.bf16.mxu0 0
      %652 = vmatpush2.bf16.xpose.msra.mxu0 0
      %653 = vmatprep.subr.bf16.mxu0 0
      %654 = vmatpush2.bf16.xpose.msra.mxu0 0
      %655 = vmatprep.subr.bf16.mxu0 0
      %656 = vmatpush2.bf16.xpose.msra.mxu0 0
      %657 = vmatprep.subr.bf16.mxu0 0
      %658 = vmatpush2.bf16.xpose.msra.mxu0 0
      %659 = vmatprep.subr.bf16.mxu0 0
      %660 = vmatpush2.bf16.xpose.msra.mxu0 0
      %661 = vmatprep.mubr.bf16.mxu0 0
      %662 = vmatmul.mubr.bf16.gmra.mxu0 %v624
      %v663 = vpop.f32.mrf.mxu0
      %v664 = vadd.f32 0.0, %v663
      %v665 = vpop.f32.mrf.mxu0
      %v666 = vpop.f32.mrf.mxu0
      %v667 = vpop.f32.mrf.mxu0
      %668 = vdwg.mxu0
      %v669 = vmul.f32 %v664, 0.35355338
      %v670 = vsel %vm272, %v669, -1e+30
      %v671 = vsel %vm327, %v670, -inf
      %672 = vmax.xlane.f32.xlu0 %v671
      %v673 = vpop.xlane.xlu0 %672
      %v674 = vsub.f32 %v670, %v673
      %v675 = vmul.f32 %v674, 1.442695
      %v676 = vpow.pop %v675
      %v677 = vsel %vm327, %v676, 0.0
      %678 = vadd.xlane.f32.xlu0 %v677
      %v679 = vpop.xlane.xlu0 %678
      %v680 = vrcp.pop %v679
      %v681 = vmul.f32 %v676, %v680
      %v682 = vsel %vm272, %v681, 0.0
      %v683 = vpack.c.bf16 %v682, %v682
      %684 = vrot.lane.b32.xlu0 %v277, 72
      %v685 = vpop.permute.xlu0 %684
      %v687 = vsel %vm327, %v683, 0
      %v690 = vsel %vm346, %v685, 0
      %692 = vmatprep.subr.bf16.mxu0 0
      %693 = vmatpush1.bf16.msra.mxu0 0
      %694 = vmatprep.subr.bf16.mxu0 0
      %695 = vmatpush1.bf16.msra.mxu0 0
      %696 = vmatprep.subr.bf16.mxu0 0
      %697 = vmatpush1.bf16.msra.mxu0 0
      %698 = vmatprep.subr.bf16.mxu0 0
      %699 = vmatpush1.bf16.msra.mxu0 0
      %700 = vmatprep.subr.bf16.mxu0 0
      %701 = vmatpush1.bf16.msra.mxu0 0
      %702 = vmatprep.subr.bf16.mxu0 0
      %703 = vmatpush1.bf16.msra.mxu0 0
      %704 = vmatprep.subr.bf16.mxu0 0
      %705 = vmatpush1.bf16.msra.mxu0 0
      %706 = vmatprep.subr.bf16.mxu0 0
      %707 = vmatpush1.bf16.msra.mxu0 %v690
      %708 = vmatprep.subr.bf16.mxu0 0
      %709 = vmatpush2.bf16.msra.mxu0 0
      %710 = vmatprep.subr.bf16.mxu0 0
      %711 = vmatpush2.bf16.msra.mxu0 0
      %712 = vmatprep.subr.bf16.mxu0 0
      %713 = vmatpush2.bf16.msra.mxu0 0
      %714 = vmatprep.subr.bf16.mxu0 0
      %715 = vmatpush2.bf16.msra.mxu0 0
      %716 = vmatprep.subr.bf16.mxu0 0
      %717 = vmatpush2.bf16.msra.mxu0 0
      %718 = vmatprep.subr.bf16.mxu0 0
      %719 = vmatpush2.bf16.msra.mxu0 0
      %720 = vmatprep.subr.bf16.mxu0 0
      %721 = vmatpush2.bf16.msra.mxu0 0
      %722 = vmatprep.subr.bf16.mxu0 0
      %723 = vmatpush2.bf16.msra.mxu0 0
      %724 = vmatprep.mubr.bf16.mxu0 0
      %725 = vmatmul.mubr.bf16.gmra.mxu0 %v687
      %v726 = vpop.f32.mrf.mxu0
      %v727 = vadd.f32 0.0, %v726
      %v728 = vpop.f32.mrf.mxu0
      %v729 = vpop.f32.mrf.mxu0
      %v730 = vpop.f32.mrf.mxu0
      %731 = vdwg.mxu0
      %733 = vrot.lane.b32.xlu0 %v501, 8
      %v734 = vpop.permute.xlu0 %733
      %737 = vrot.lane.b32.xlu0 %v614, 16
      %v738 = vpop.permute.xlu0 %737
      %741 = vrot.lane.b32.xlu0 %v727, 24
      %v742 = vpop.permute.xlu0 %741
      %v744 = vsel %vm278, %v385, %v734
      %vm745 = vcmask 130048
      %v746 = vsel %vm745, %v744, %v738
      %vm747 = vcmask 195584
      %v748 = vsel %vm747, %v746, %v742
      %v749 = vpack.c.bf16 %v748, %v748
      %v750 = vld [vmem:[%s3] sm:$0xf]
      %v751 = vld [vmem:[%s3 + $0x4] sm:$0xf]
      %v752 = vld [vmem:[%s3 + $0x8] sm:$0xf]
      %v753 = vld [vmem:[%s3 + $0xc] sm:$0xf]
      %v754 = vld [vmem:[%s4] sm:$0x1]
      %v756 = vlaneseq
      %v757 = vshrl.u32 %v756, 7
      %v758 = vsub.s32 0, %v757
      %v759 = vrot.slane %v754, %v758
      %v765 = vunpack.c.l.b16 %v750
      %v766 = vunpack.c.l.b16 %v751
      %v767 = vunpack.c.l.b16 %v752
      %v768 = vunpack.c.l.b16 %v753
      %v769 = vpack.c.b16 %v766, %v765
      %v770 = vpack.c.b16 %v768, %v767
      %vm773 = vcmask 261120
      %v775 = vsel %vm773, %v749, 0
      %777 = vmatprep.subr.bf16.mxu0 0
      %778 = vmatpush1.bf16.msra.mxu0 0
      %779 = vmatprep.subr.bf16.mxu0 0
      %780 = vmatpush1.bf16.msra.mxu0 0
      %781 = vmatprep.subr.bf16.mxu0 0
      %782 = vmatpush1.bf16.msra.mxu0 0
      %783 = vmatprep.subr.bf16.mxu0 0
      %784 = vmatpush1.bf16.msra.mxu0 0
      %785 = vmatprep.subr.bf16.mxu0 0
      %786 = vmatpush1.bf16.msra.mxu0 0
      %787 = vmatprep.subr.bf16.mxu0 0
      %788 = vmatpush1.bf16.msra.mxu0 0
      %789 = vmatprep.subr.bf16.mxu0 0
      %790 = vmatpush1.bf16.msra.mxu0 %v770
      %791 = vmatprep.subr.bf16.mxu0 0
      %792 = vmatpush1.bf16.msra.mxu0 %v769
      %793 = vmatprep.subr.bf16.mxu0 0
      %794 = vmatpush2.bf16.msra.mxu0 0
      %795 = vmatprep.subr.bf16.mxu0 0
      %796 = vmatpush2.bf16.msra.mxu0 0
      %797 = vmatprep.subr.bf16.mxu0 0
      %798 = vmatpush2.bf16.msra.mxu0 0
      %799 = vmatprep.subr.bf16.mxu0 0
      %800 = vmatpush2.bf16.msra.mxu0 0
      %801 = vmatprep.subr.bf16.mxu0 0
      %802 = vmatpush2.bf16.msra.mxu0 0
      %803 = vmatprep.subr.bf16.mxu0 0
      %804 = vmatpush2.bf16.msra.mxu0 0
      %805 = vmatprep.subr.bf16.mxu0 0
      %806 = vmatpush2.bf16.msra.mxu0 0
      %807 = vmatprep.subr.bf16.mxu0 0
      %808 = vmatpush2.bf16.msra.mxu0 0
      %809 = vmatprep.mubr.bf16.mxu0 0
      %810 = vmatmul.mubr.bf16.gmra.mxu0 %v775
      %v811 = vpop.f32.mrf.mxu0
      %v812 = vadd.f32 %v759, %v811
      %v813 = vpop.f32.mrf.mxu0
      %v814 = vpop.f32.mrf.mxu0
      %v815 = vpop.f32.mrf.mxu0
      %816 = vdwg.mxu0
      %v817 = vld [vmem:[%s259] sm:$0xff]
      %v818 = vadd.f32 %v817, %v812
      %819 = vst.msk [vmem:[%s263] sm:$0xff] %vm773, %v818
      %p820 = scmp.lt.s32.totalorder %s23, 1
      %s821 = scalar_select %p820, %s23, 1
      %s822 = smul.addr %s821, 8
      %s823 = scalar_lea.vmem %s6, %s822
      // Predicated region
      $region41: #{bi_transformer_decoder_forward.24} parent=39 // pred_check
        %p824 = pneg %p161
      $region42: #{bi_transformer_decoder_forward.24} parent=39 // pred_check_branch
        %826 = sbr.rel (%p824) target = $region44
      $region43: #{bi_transformer_decoder_forward.24} parent=39 // pred_region
        _
      $region44: #{bi_transformer_decoder_forward.24} parent=39 // pred_fallthru
        _
    $region40: #{bi_transformer_decoder_forward.24} parent=5 // pred_fallthru
      _
    %p827 = scmp.le.s32.totalorder 2, %s18
    // Predicated region
    $region45: #{bi_transformer_decoder_forward.24} parent=5 // pred_check
      %p828 = pneg %p827
    $region46: #{bi_transformer_decoder_forward.24} parent=5 // pred_check_branch
      %830 = sbr.rel (%p828) target = $region48
    $region47: #{bi_transformer_decoder_forward.24} parent=5 // pred_region
      %s831 = ssub.s32 %s18, 2
      // Predicated region
      $region49: #{bi_transformer_decoder_forward.24} parent=47 // pred_check
        %p832 = pneg %p167
      $region50: #{bi_transformer_decoder_forward.24} parent=47 // pred_check_branch
        %834 = sbr.rel (%p832) target = $region52
      $region51: #{bi_transformer_decoder_forward.24} parent=47 // pred_region
        %p835 = scmp.lt.s32.totalorder %s24, 1
        %s836 = scalar_select %p835, %s24, 1
        %s837 = smul.addr %s836, 8
        %s838 = scalar_lea.vmem %s6, %s837
      $region52: #{bi_transformer_decoder_forward.24} parent=47 // pred_fallthru
        _
    $region48: #{bi_transformer_decoder_forward.24} parent=5 // pred_fallthru
      _
  $region6: #{bi_transformer_decoder_forward.24} parent=0 // loop_footer
    %s22 = sadd.s32 1, %s18
  $region7: #{bi_transformer_decoder_forward.24} parent=0 // loop_footer_branch
    %17 = sbr.rel target = $region3
  $region8: #{bi_transformer_decoder_forward.24} parent=0 // loop_exit
    _

</llo_original>
